<compile_context>
chip_gen: v5e
topology: v5e:2x2
jax: 0.10.0
libtpu: 0.0.40
codegen_flags: <defaults>
</compile_context>

<pallas_src>
import jax
import jax.numpy as jnp
from jax.experimental import pallas as pl
from jax.experimental.pallas import tpu as pltpu

# ----------------------------- shapes ---------------------------------------
B, C_IN, H, W = 2, 4, 16, 16      # batch, channels, spatial (NCHW input)
T_DIM = 32                        # sinusoidal timestep-embedding dim
HALF = T_DIM // 2
C_HID = 32                        # hidden conv channels == temb output dim
HW = H * W
GAP = 64                          # zero lanes after each image (>= W+1), keeps NL % 128 == 0
S = HW + GAP                      # lane stride per image
NL = B * S                        # total lane width (640 = 5*128, lane-dense)

# 3x3 tap offsets, row-major -- must match the flattened weight packing below.
_TAPS = tuple((dy, dx) for dy in (-1, 0, 1) for dx in (-1, 0, 1))
K1 = 9 * C_IN + B                 # conv1 stacked contraction dim (taps + selector rows)
K2 = 9 * C_HID                    # conv2 stacked contraction dim

# weight-slab column layout (single (C_HID, 128) packed array)
_COL_W1C = 0                      # (C_HID, HALF)  acts on cos features
_COL_W1S = _COL_W1C + HALF        # (C_HID, HALF)  acts on sin features
_COL_W2T = _COL_W1S + HALF        # (C_HID, C_HID)
_COL_CW1 = _COL_W2T + C_HID       # (C_HID, 9*C_IN) flattened conv1 weight
_COL_B1 = _COL_CW1 + 9 * C_IN     # (C_HID, 1)
_COL_B2 = _COL_B1 + 1             # (C_HID, 1)
_COL_CB1 = _COL_B2 + 1            # (C_HID, 1)
_COL_CB2 = _COL_CB1 + 1           # (C_IN, 1)   rows 0:C_IN
_COL_FREQS = _COL_CB2 + 1         # (HALF, 1)   rows 0:HALF
WSLAB_COLS = 128
assert _COL_FREQS < WSLAB_COLS


# --------------------------- fused Pallas kernel -----------------------------
def _fused_net_kernel(t_ref, x_ref, msel_ref, wslab_ref, cw2_ref, out_ref,
                      w1d_ref, x1s_ref, x2s_ref):
    f32 = jnp.float32

    # ---- unpack lane-axis slab: gapped image, masks, per-batch selector ----
    x_g = x_ref[...]                               # (C_IN, NL); gap lanes are 0
    m_v = msel_ref[0:1, :]                         # valid (non-gap) lanes
    m_l = msel_ref[1:2, :]                         # valid & source col != W-1 (dx=-1 taps)
    m_r = msel_ref[2:3, :]                         # valid & source col != 0   (dx=+1 taps)
    sel = msel_ref[3:3 + B, :]                     # (B, NL) one-hot batch selector

    # ---- timestep-embedding MLP (features on sublanes, batch on lanes) ----
    freqs = wslab_ref[0:HALF, _COL_FREQS:_COL_FREQS + 1]          # (HALF, 1)
    targ = freqs * t_ref[...]                                     # (HALF, B)
    w1c = wslab_ref[:, _COL_W1C:_COL_W1C + HALF]
    w1s = wslab_ref[:, _COL_W1S:_COL_W1S + HALF]
    b1 = wslab_ref[:, _COL_B1:_COL_B1 + 1]
    h = (jnp.dot(w1c, jnp.cos(targ), preferred_element_type=f32)
         + jnp.dot(w1s, jnp.sin(targ), preferred_element_type=f32) + b1)
    h = h * jax.nn.sigmoid(h)                                     # SiLU
    w2t = wslab_ref[:, _COL_W2T:_COL_W2T + C_HID]
    b2 = wslab_ref[:, _COL_B2:_COL_B2 + 1]
    temb = jnp.dot(w2t, h, preferred_element_type=f32) + b2       # (C_HID, B)

    # ---- conv1: build stacked operand (9 rolled taps of x + selector rows) ----
    # Column masks are applied to the SOURCE before rolling (equivalent to
    # masking the destination column after the shift); vertical taps need no
    # mask because the GAP >= W+1 zero lanes between images absorb them.
    x_l = x_g * m_l
    x_r = x_g * m_r
    for k, (dy, dx) in enumerate(_TAPS):
        src = x_l if dx < 0 else (x_r if dx > 0 else x_g)
        off = dy * W + dx
        x1s_ref[k * C_IN:(k + 1) * C_IN, :] = (
            src if off == 0 else pltpu.roll(src, (-off) % NL, axis=1))
    x1s_ref[9 * C_IN:9 * C_IN + B, :] = sel

    # conv1 weight, with (temb + conv1 bias) folded in as B extra K-columns
    cb1 = wslab_ref[:, _COL_CB1:_COL_CB1 + 1]
    w1d_ref[:, 0:9 * C_IN] = wslab_ref[:, _COL_CW1:_COL_CW1 + 9 * C_IN]
    w1d_ref[:, 9 * C_IN:9 * C_IN + B] = temb + cb1

    acc1 = jnp.dot(w1d_ref[...], x1s_ref[...],
                   preferred_element_type=f32)                    # (C_HID, NL)
    h1 = acc1 * jax.nn.sigmoid(acc1)                              # SiLU

    # ---- conv2: build stacked operand (9 rolled taps of h1) ----
    h1v = h1 * m_v          # zero the gap lanes (junk from conv1 there)
    h1l = h1 * m_l
    h1r = h1 * m_r
    for k, (dy, dx) in enumerate(_TAPS):
        src = h1l if dx < 0 else (h1r if dx > 0 else h1v)
        off = dy * W + dx
        x2s_ref[k * C_HID:(k + 1) * C_HID, :] = (
            src if off == 0 else pltpu.roll(src, (-off) % NL, axis=1))

    cb2 = wslab_ref[0:C_IN, _COL_CB2:_COL_CB2 + 1]                # (C_IN, 1)
    out_ref[...] = jnp.dot(cw2_ref[...], x2s_ref[...],
                           preferred_element_type=f32) + cb2      # (C_IN, NL)


# --------------------------- wrapper / glue ----------------------------------
def _full_spec(shape):
    zeros = (0,) * len(shape)
    return pl.BlockSpec(shape, lambda i, _z=zeros: _z)


def _fused_net(t_row, x_g, msel, wslab, cw2flat):
    operands = (t_row, x_g, msel, wslab, cw2flat)
    return pl.pallas_call(
        _fused_net_kernel,
        out_shape=jax.ShapeDtypeStruct((C_IN, NL), jnp.float32),
        grid=(1,),
        in_specs=[_full_spec(op.shape) for op in operands],
        out_specs=_full_spec((C_IN, NL)),
        scratch_shapes=[
            pltpu.VMEM((C_HID, K1), jnp.float32),   # conv1 weight + temb columns
            pltpu.VMEM((K1, NL), jnp.float32),      # conv1 stacked operand
            pltpu.VMEM((K2, NL), jnp.float32),      # conv2 stacked operand
        ],
        compiler_params=pltpu.CompilerParams(
            dimension_semantics=("arbitrary",)),
        # TODO(synk): at larger H*W, add a lane-axis grid dim ("parallel") and
        # size blocks for v7x's 64 MiB VMEM / 2 TensorCores.
    )(*operands)


def _build_msel():
    """(3+B, NL) slab: [valid, valid&col!=W-1, valid&col!=0, sel_0..sel_{B-1}]."""
    lane = jnp.arange(NL, dtype=jnp.int32)
    within = lane % S
    col = within % W
    valid = within < HW
    m_v = valid
    m_l = valid & (col != W - 1)
    m_r = valid & (col != 0)
    sel = valid[None, :] & ((lane // S)[None, :]
                            == jnp.arange(B, dtype=jnp.int32)[:, None])
    rows = jnp.concatenate([m_v[None, :], m_l[None, :], m_r[None, :], sel], axis=0)
    return rows.astype(jnp.float32)


def _pack_params(params):
    """Pack all weights into one (C_HID, 128) slab + one (C_IN, 9*C_HID) slab."""
    w = jnp.zeros((C_HID, WSLAB_COLS), jnp.float32)
    w = w.at[:, _COL_W1C:_COL_W1C + HALF].set(params["w1"][:HALF].T)
    w = w.at[:, _COL_W1S:_COL_W1S + HALF].set(params["w1"][HALF:].T)
    w = w.at[:, _COL_W2T:_COL_W2T + C_HID].set(params["w2"].T)
    cw1flat = jnp.transpose(params["cw1"], (3, 0, 1, 2)).reshape(C_HID, 9 * C_IN)
    w = w.at[:, _COL_CW1:_COL_CW1 + 9 * C_IN].set(cw1flat)
    w = w.at[:, _COL_B1].set(params["b1"])
    w = w.at[:, _COL_B2].set(params["b2"])
    w = w.at[:, _COL_CB1].set(params["cb1"])
    w = w.at[0:C_IN, _COL_CB2].set(params["cb2"])
    w = w.at[0:HALF, _COL_FREQS].set(params["freqs"].reshape(HALF))
    cw2flat = jnp.transpose(params["cw2"], (3, 0, 1, 2)).reshape(C_IN, 9 * C_HID)
    return w, cw2flat


# ----------------------- DiffusionFlow (forward) -----------------------------
def init_params(key):
    ks = jax.random.split(key, 4)
    freqs = jnp.exp(-jnp.log(10000.0) * jnp.arange(HALF, dtype=jnp.float32) / HALF)
    return {
        "freqs": freqs.reshape(1, HALF),
        "w1": 0.02 * jax.random.normal(ks[0], (T_DIM, C_HID), jnp.float32),
        "b1": jnp.zeros((C_HID,), jnp.float32),
        "w2": 0.02 * jax.random.normal(ks[1], (C_HID, C_HID), jnp.float32),
        "b2": jnp.zeros((C_HID,), jnp.float32),
        "cw1": 0.05 * jax.random.normal(ks[2], (3, 3, C_IN, C_HID), jnp.float32),
        "cb1": jnp.zeros((C_HID,), jnp.float32),
        "cw2": 0.05 * jax.random.normal(ks[3], (3, 3, C_HID, C_IN), jnp.float32),
        "cb2": jnp.zeros((C_IN,), jnp.float32),
    }


def make_diffusion_flow_forward(params):
    """Packs params/masks ONCE and returns a jitted forward(x, t) == net(x, t).

    Use this in sampling loops so weights/masks are not re-packed or
    re-uploaded on every denoiser call.
    """
    wslab, cw2flat = _pack_params(params)
    msel = _build_msel()

    @jax.jit
    def forward(x_nchw, t):
        assert x_nchw.shape == (B, C_IN, H, W), x_nchw.shape
        t_row = t.astype(jnp.float32).reshape(1, B)
        # NCHW -> channels-first with batch*(HW+GAP) folded onto the lane axis.
        x_cb = jnp.transpose(x_nchw.astype(jnp.float32),
                             (1, 0, 2, 3)).reshape(C_IN, B, HW)
        x_g = jnp.pad(x_cb, ((0, 0), (0, 0), (0, GAP))).reshape(C_IN, NL)
        out_g = _fused_net(t_row, x_g, msel, wslab, cw2flat)       # (C_IN, NL)
        out = out_g.reshape(C_IN, B, S)[:, :, :HW]
        return out.reshape(C_IN, B, H, W).transpose(1, 0, 2, 3)    # NCHW

    return forward


# pure-JAX reference for a correctness sanity check
def _reference_forward(params, x_nchw, t):
    t = t.astype(jnp.float32).reshape(-1, 1)
    args = t * params["freqs"]
    emb = jnp.concatenate([jnp.cos(args), jnp.sin(args)], axis=-1)
    h = emb @ params["w1"] + params["b1"]
    h = h * jax.nn.sigmoid(h)
    temb = h @ params["w2"] + params["b2"]
    x = jnp.transpose(x_nchw, (0, 2, 3, 1)).astype(jnp.float32)
    h1 = jax.lax.conv_general_dilated(
        x, params["cw1"], (1, 1), "SAME",
        dimension_numbers=("NHWC", "HWIO", "NHWC")) + params["cb1"]
    h1 = h1 + temb[:, None, None, :]
    h1 = h1 * jax.nn.sigmoid(h1)
    o = jax.lax.conv_general_dilated(
        h1, params["cw2"], (1, 1), "SAME",
        dimension_numbers=("NHWC", "HWIO", "NHWC")) + params["cb2"]
    return jnp.transpose(o, (0, 3, 1, 2))


# TODO(synk): training_losses / generate (DDPM/DDIM sampling loops, CFG) are
# host-side orchestration around repeated net calls and are not kernelized.

if __name__ == "__main__":
    key = jax.random.PRNGKey(0)
    kx, kt, kp = jax.random.split(key, 3)
    x = jax.random.normal(kx, (B, C_IN, H, W), jnp.float32)
    t = jax.random.randint(kt, (B,), 0, 1000)
    params = init_params(kp)

    forward = make_diffusion_flow_forward(params)
    out = jax.block_until_ready(forward(x, t))
    ref = jax.block_until_ready(_reference_forward(params, x, t))

    assert out.shape == (B, C_IN, H, W), out.shape
    err = float(jnp.max(jnp.abs(out - ref)))
    assert jnp.allclose(out, ref, atol=1e-4, rtol=1e-4), err
    print("KERNEL_OK")
</pallas_src>

<mosaic_0001>
module attributes {stable_mosaic.version = 11 : i64} {
  func.func @_fused_net_kernel(%arg0: i32, %arg1: memref<1x2xf32, #tpu.memory_space<vmem>>, %arg2: memref<4x640xf32, #tpu.memory_space<vmem>>, %arg3: memref<5x640xf32, #tpu.memory_space<vmem>>, %arg4: memref<32x128xf32, #tpu.memory_space<vmem>>, %arg5: memref<4x288xf32, #tpu.memory_space<vmem>>, %arg6: memref<4x640xf32, #tpu.memory_space<vmem>>, %arg7: memref<32x38xf32, #tpu.memory_space<vmem>>, %arg8: memref<38x640xf32, #tpu.memory_space<vmem>>, %arg9: memref<288x640xf32, #tpu.memory_space<vmem>>) attributes {dimension_semantics = [#tpu.dimension_semantics<arbitrary>], iteration_bounds = array<i64: 1>, scalar_prefetch = 0 : i64, scratch_operands = 3 : i64, tpu.core_type = #tpu.core_type<tc>, window_params = [{pipeline_mode = #tpu.pipeline_mode<synchronous>, transform_indices = @transform_0, window_bounds = array<i64: 1, 2>}, {pipeline_mode = #tpu.pipeline_mode<synchronous>, transform_indices = @transform_1, window_bounds = array<i64: 4, 640>}, {pipeline_mode = #tpu.pipeline_mode<synchronous>, transform_indices = @transform_2, window_bounds = array<i64: 5, 640>}, {pipeline_mode = #tpu.pipeline_mode<synchronous>, transform_indices = @transform_3, window_bounds = array<i64: 32, 128>}, {pipeline_mode = #tpu.pipeline_mode<synchronous>, transform_indices = @transform_4, window_bounds = array<i64: 4, 288>}, {pipeline_mode = #tpu.pipeline_mode<synchronous>, transform_indices = @transform_5, window_bounds = array<i64: 4, 640>}]} {
    %c0 = arith.constant 0 : index
    %c0_0 = arith.constant 0 : index
    %0 = vector.load %arg2[%c0, %c0_0] : memref<4x640xf32, #tpu.memory_space<vmem>>, vector<4x640xf32>
    %c0_1 = arith.constant 0 : index
    %c0_2 = arith.constant 0 : index
    %1 = vector.load %arg3[%c0_1, %c0_2] : memref<5x640xf32, #tpu.memory_space<vmem>>, vector<1x640xf32>
    %c1 = arith.constant 1 : index
    %c0_3 = arith.constant 0 : index
    %2 = vector.load %arg3[%c1, %c0_3] : memref<5x640xf32, #tpu.memory_space<vmem>>, vector<1x640xf32>
    %c2 = arith.constant 2 : index
    %c0_4 = arith.constant 0 : index
    %3 = vector.load %arg3[%c2, %c0_4] : memref<5x640xf32, #tpu.memory_space<vmem>>, vector<1x640xf32>
    %c3 = arith.constant 3 : index
    %c0_5 = arith.constant 0 : index
    %4 = vector.load %arg3[%c3, %c0_5] : memref<5x640xf32, #tpu.memory_space<vmem>>, vector<2x640xf32>
    %c0_6 = arith.constant 0 : index
    %c104 = arith.constant 104 : index
    %5 = vector.load %arg4[%c0_6, %c104] : memref<32x128xf32, #tpu.memory_space<vmem>>, vector<16x1xf32>
    %c0_7 = arith.constant 0 : index
    %c0_8 = arith.constant 0 : index
    %6 = vector.load %arg1[%c0_7, %c0_8] : memref<1x2xf32, #tpu.memory_space<vmem>>, vector<1x2xf32>
    %7 = vector.broadcast %5 : vector<16x1xf32> to vector<16x2xf32>
    %8 = vector.broadcast %6 : vector<1x2xf32> to vector<16x2xf32>
    %9 = arith.mulf %7, %8 : vector<16x2xf32>
    %c0_9 = arith.constant 0 : index
    %c0_10 = arith.constant 0 : index
    %10 = vector.load %arg4[%c0_9, %c0_10] : memref<32x128xf32, #tpu.memory_space<vmem>>, vector<32x16xf32>
    %c0_11 = arith.constant 0 : index
    %c16 = arith.constant 16 : index
    %11 = vector.load %arg4[%c0_11, %c16] : memref<32x128xf32, #tpu.memory_space<vmem>>, vector<32x16xf32>
    %c0_12 = arith.constant 0 : index
    %c100 = arith.constant 100 : index
    %12 = vector.load %arg4[%c0_12, %c100] : memref<32x128xf32, #tpu.memory_space<vmem>>, vector<32x1xf32>
    %13 = math.cos %9 : vector<16x2xf32>
    %cst = arith.constant dense<0.000000e+00> : vector<32x2xf32>
    %14 = tpu.matmul %10, %13, %cst {dimension_numbers = #tpu.dot_dimension_numbers<[1], [0], [0], [1], [0, 0, 1, 1], [], []>} : vector<32x16xf32>, vector<16x2xf32>, vector<32x2xf32> -> vector<32x2xf32>
    %15 = math.sin %9 : vector<16x2xf32>
    %cst_13 = arith.constant dense<0.000000e+00> : vector<32x2xf32>
    %16 = tpu.matmul %11, %15, %cst_13 {dimension_numbers = #tpu.dot_dimension_numbers<[1], [0], [0], [1], [0, 0, 1, 1], [], []>} : vector<32x16xf32>, vector<16x2xf32>, vector<32x2xf32> -> vector<32x2xf32>
    %17 = arith.addf %14, %16 : vector<32x2xf32>
    %18 = vector.broadcast %12 : vector<32x1xf32> to vector<32x2xf32>
    %19 = arith.addf %17, %18 : vector<32x2xf32>
    %20 = arith.negf %19 : vector<32x2xf32>
    %21 = math.exp %20 : vector<32x2xf32>
    %cst_14 = arith.constant 1.000000e+00 : f32
    %22 = vector.broadcast %cst_14 : f32 to vector<32x2xf32>
    %23 = arith.addf %22, %21 : vector<32x2xf32>
    %24 = arith.divf %22, %23 : vector<32x2xf32>
    %25 = arith.mulf %19, %24 : vector<32x2xf32>
    %c0_15 = arith.constant 0 : index
    %c32 = arith.constant 32 : index
    %26 = vector.load %arg4[%c0_15, %c32] : memref<32x128xf32, #tpu.memory_space<vmem>>, vector<32x32xf32>
    %c0_16 = arith.constant 0 : index
    %c101 = arith.constant 101 : index
    %27 = vector.load %arg4[%c0_16, %c101] : memref<32x128xf32, #tpu.memory_space<vmem>>, vector<32x1xf32>
    %cst_17 = arith.constant dense<0.000000e+00> : vector<32x2xf32>
    %28 = tpu.matmul %26, %25, %cst_17 {dimension_numbers = #tpu.dot_dimension_numbers<[1], [0], [0], [1], [0, 0, 1, 1], [], []>} : vector<32x32xf32>, vector<32x2xf32>, vector<32x2xf32> -> vector<32x2xf32>
    %29 = vector.broadcast %27 : vector<32x1xf32> to vector<32x2xf32>
    %30 = arith.addf %28, %29 : vector<32x2xf32>
    %31 = vector.broadcast %2 : vector<1x640xf32> to vector<4x640xf32>
    %32 = arith.mulf %0, %31 : vector<4x640xf32>
    %33 = vector.broadcast %3 : vector<1x640xf32> to vector<4x640xf32>
    %34 = arith.mulf %0, %33 : vector<4x640xf32>
    %c17_i32 = arith.constant 17 : i32
    %35 = tpu.dynamic_rotate %32 by %c17_i32 dim 1 : vector<4x640xf32>, i32 -> vector<4x640xf32>
    %c0_18 = arith.constant 0 : index
    %c0_19 = arith.constant 0 : index
    %36 = vector.load %arg8[%c0_18, %c0_19] : memref<38x640xf32, #tpu.memory_space<vmem>>, vector<4x640xf32>
    tpu.vector_store %arg8[%c0_18, %c0_19], %35 {strides = array<i32>} : memref<38x640xf32, #tpu.memory_space<vmem>>, vector<4x640xf32>,
    %c16_i32 = arith.constant 16 : i32
    %37 = tpu.dynamic_rotate %0 by %c16_i32 dim 1 : vector<4x640xf32>, i32 -> vector<4x640xf32>
    %c4 = arith.constant 4 : index
    %c0_20 = arith.constant 0 : index
    %38 = vector.load %arg8[%c4, %c0_20] : memref<38x640xf32, #tpu.memory_space<vmem>>, vector<4x640xf32>
    tpu.vector_store %arg8[%c4, %c0_20], %37 {strides = array<i32>} : memref<38x640xf32, #tpu.memory_space<vmem>>, vector<4x640xf32>,
    %c15_i32 = arith.constant 15 : i32
    %39 = tpu.dynamic_rotate %34 by %c15_i32 dim 1 : vector<4x640xf32>, i32 -> vector<4x640xf32>
    %c8 = arith.constant 8 : index
    %c0_21 = arith.constant 0 : index
    %40 = vector.load %arg8[%c8, %c0_21] : memref<38x640xf32, #tpu.memory_space<vmem>>, vector<4x640xf32>
    tpu.vector_store %arg8[%c8, %c0_21], %39 {strides = array<i32>} : memref<38x640xf32, #tpu.memory_space<vmem>>, vector<4x640xf32>,
    %c1_i32 = arith.constant 1 : i32
    %41 = tpu.dynamic_rotate %32 by %c1_i32 dim 1 : vector<4x640xf32>, i32 -> vector<4x640xf32>
    %c12 = arith.constant 12 : index
    %c0_22 = arith.constant 0 : index
    %42 = vector.load %arg8[%c12, %c0_22] : memref<38x640xf32, #tpu.memory_space<vmem>>, vector<4x640xf32>
    tpu.vector_store %arg8[%c12, %c0_22], %41 {strides = array<i32>} : memref<38x640xf32, #tpu.memory_space<vmem>>, vector<4x640xf32>,
    %c16_23 = arith.constant 16 : index
    %c0_24 = arith.constant 0 : index
    %43 = vector.load %arg8[%c16_23, %c0_24] : memref<38x640xf32, #tpu.memory_space<vmem>>, vector<4x640xf32>
    tpu.vector_store %arg8[%c16_23, %c0_24], %0 {strides = array<i32>} : memref<38x640xf32, #tpu.memory_space<vmem>>, vector<4x640xf32>,
    %c639_i32 = arith.constant 639 : i32
    %44 = tpu.dynamic_rotate %34 by %c639_i32 dim 1 : vector<4x640xf32>, i32 -> vector<4x640xf32>
    %c20 = arith.constant 20 : index
    %c0_25 = arith.constant 0 : index
    %45 = vector.load %arg8[%c20, %c0_25] : memref<38x640xf32, #tpu.memory_space<vmem>>, vector<4x640xf32>
    tpu.vector_store %arg8[%c20, %c0_25], %44 {strides = array<i32>} : memref<38x640xf32, #tpu.memory_space<vmem>>, vector<4x640xf32>,
    %c625_i32 = arith.constant 625 : i32
    %46 = tpu.dynamic_rotate %32 by %c625_i32 dim 1 : vector<4x640xf32>, i32 -> vector<4x640xf32>
    %c24 = arith.constant 24 : index
    %c0_26 = arith.constant 0 : index
    %47 = vector.load %arg8[%c24, %c0_26] : memref<38x640xf32, #tpu.memory_space<vmem>>, vector<4x640xf32>
    tpu.vector_store %arg8[%c24, %c0_26], %46 {strides = array<i32>} : memref<38x640xf32, #tpu.memory_space<vmem>>, vector<4x640xf32>,
    %c624_i32 = arith.constant 624 : i32
    %48 = tpu.dynamic_rotate %0 by %c624_i32 dim 1 : vector<4x640xf32>, i32 -> vector<4x640xf32>
    %c28 = arith.constant 28 : index
    %c0_27 = arith.constant 0 : index
    %49 = vector.load %arg8[%c28, %c0_27] : memref<38x640xf32, #tpu.memory_space<vmem>>, vector<4x640xf32>
    tpu.vector_store %arg8[%c28, %c0_27], %48 {strides = array<i32>} : memref<38x640xf32, #tpu.memory_space<vmem>>, vector<4x640xf32>,
    %c623_i32 = arith.constant 623 : i32
    %50 = tpu.dynamic_rotate %34 by %c623_i32 dim 1 : vector<4x640xf32>, i32 -> vector<4x640xf32>
    %c32_28 = arith.constant 32 : index
    %c0_29 = arith.constant 0 : index
    %51 = vector.load %arg8[%c32_28, %c0_29] : memref<38x640xf32, #tpu.memory_space<vmem>>, vector<4x640xf32>
    tpu.vector_store %arg8[%c32_28, %c0_29], %50 {strides = array<i32>} : memref<38x640xf32, #tpu.memory_space<vmem>>, vector<4x640xf32>,
    %c36 = arith.constant 36 : index
    %c0_30 = arith.constant 0 : index
    %52 = vector.load %arg8[%c36, %c0_30] : memref<38x640xf32, #tpu.memory_space<vmem>>, vector<2x640xf32>
    tpu.vector_store %arg8[%c36, %c0_30], %4 {strides = array<i32>} : memref<38x640xf32, #tpu.memory_space<vmem>>, vector<2x640xf32>,
    %c0_31 = arith.constant 0 : index
    %c102 = arith.constant 102 : index
    %53 = vector.load %arg4[%c0_31, %c102] : memref<32x128xf32, #tpu.memory_space<vmem>>, vector<32x1xf32>
    %c0_32 = arith.constant 0 : index
    %c64 = arith.constant 64 : index
    %54 = vector.load %arg4[%c0_32, %c64] : memref<32x128xf32, #tpu.memory_space<vmem>>, vector<32x36xf32>
    %c0_33 = arith.constant 0 : index
    %c0_34 = arith.constant 0 : index
    %55 = vector.load %arg7[%c0_33, %c0_34] : memref<32x38xf32, #tpu.memory_space<vmem>>, vector<32x36xf32>
    tpu.vector_store %arg7[%c0_33, %c0_34], %54 {strides = array<i32>} : memref<32x38xf32, #tpu.memory_space<vmem>>, vector<32x36xf32>,
    %56 = vector.broadcast %53 : vector<32x1xf32> to vector<32x2xf32>
    %57 = arith.addf %30, %56 : vector<32x2xf32>
    %c0_35 = arith.constant 0 : index
    %c36_36 = arith.constant 36 : index
    %58 = vector.load %arg7[%c0_35, %c36_36] : memref<32x38xf32, #tpu.memory_space<vmem>>, vector<32x2xf32>
    tpu.vector_store %arg7[%c0_35, %c36_36], %57 {strides = array<i32>} : memref<32x38xf32, #tpu.memory_space<vmem>>, vector<32x2xf32>,
    %c0_37 = arith.constant 0 : index
    %c0_38 = arith.constant 0 : index
    %59 = vector.load %arg7[%c0_37, %c0_38] : memref<32x38xf32, #tpu.memory_space<vmem>>, vector<32x38xf32>
    %c0_39 = arith.constant 0 : index
    %c0_40 = arith.constant 0 : index
    %60 = vector.load %arg8[%c0_39, %c0_40] : memref<38x640xf32, #tpu.memory_space<vmem>>, vector<38x640xf32>
    %cst_41 = arith.constant dense<0.000000e+00> : vector<32x640xf32>
    %61 = tpu.matmul %59, %60, %cst_41 {dimension_numbers = #tpu.dot_dimension_numbers<[1], [0], [0], [1], [0, 0, 1, 1], [], []>} : vector<32x38xf32>, vector<38x640xf32>, vector<32x640xf32> -> vector<32x640xf32>
    %62 = arith.negf %61 : vector<32x640xf32>
    %63 = math.exp %62 : vector<32x640xf32>
    %cst_42 = arith.constant 1.000000e+00 : f32
    %64 = vector.broadcast %cst_42 : f32 to vector<32x640xf32>
    %65 = arith.addf %64, %63 : vector<32x640xf32>
    %66 = arith.divf %64, %65 : vector<32x640xf32>
    %67 = arith.mulf %61, %66 : vector<32x640xf32>
    %68 = vector.broadcast %1 : vector<1x640xf32> to vector<32x640xf32>
    %69 = arith.mulf %67, %68 : vector<32x640xf32>
    %70 = vector.broadcast %2 : vector<1x640xf32> to vector<32x640xf32>
    %71 = arith.mulf %67, %70 : vector<32x640xf32>
    %72 = vector.broadcast %3 : vector<1x640xf32> to vector<32x640xf32>
    %73 = arith.mulf %67, %72 : vector<32x640xf32>
    %c17_i32_43 = arith.constant 17 : i32
    %74 = tpu.dynamic_rotate %71 by %c17_i32_43 dim 1 : vector<32x640xf32>, i32 -> vector<32x640xf32>
    %c0_44 = arith.constant 0 : index
    %c0_45 = arith.constant 0 : index
    %75 = vector.load %arg9[%c0_44, %c0_45] : memref<288x640xf32, #tpu.memory_space<vmem>>, vector<32x640xf32>
    tpu.vector_store %arg9[%c0_44, %c0_45], %74 {strides = array<i32>} : memref<288x640xf32, #tpu.memory_space<vmem>>, vector<32x640xf32>,
    %c16_i32_46 = arith.constant 16 : i32
    %76 = tpu.dynamic_rotate %69 by %c16_i32_46 dim 1 : vector<32x640xf32>, i32 -> vector<32x640xf32>
    %c32_47 = arith.constant 32 : index
    %c0_48 = arith.constant 0 : index
    %77 = vector.load %arg9[%c32_47, %c0_48] : memref<288x640xf32, #tpu.memory_space<vmem>>, vector<32x640xf32>
    tpu.vector_store %arg9[%c32_47, %c0_48], %76 {strides = array<i32>} : memref<288x640xf32, #tpu.memory_space<vmem>>, vector<32x640xf32>,
    %c15_i32_49 = arith.constant 15 : i32
    %78 = tpu.dynamic_rotate %73 by %c15_i32_49 dim 1 : vector<32x640xf32>, i32 -> vector<32x640xf32>
    %c64_50 = arith.constant 64 : index
    %c0_51 = arith.constant 0 : index
    %79 = vector.load %arg9[%c64_50, %c0_51] : memref<288x640xf32, #tpu.memory_space<vmem>>, vector<32x640xf32>
    tpu.vector_store %arg9[%c64_50, %c0_51], %78 {strides = array<i32>} : memref<288x640xf32, #tpu.memory_space<vmem>>, vector<32x640xf32>,
    %c1_i32_52 = arith.constant 1 : i32
    %80 = tpu.dynamic_rotate %71 by %c1_i32_52 dim 1 : vector<32x640xf32>, i32 -> vector<32x640xf32>
    %c96 = arith.constant 96 : index
    %c0_53 = arith.constant 0 : index
    %81 = vector.load %arg9[%c96, %c0_53] : memref<288x640xf32, #tpu.memory_space<vmem>>, vector<32x640xf32>
    tpu.vector_store %arg9[%c96, %c0_53], %80 {strides = array<i32>} : memref<288x640xf32, #tpu.memory_space<vmem>>, vector<32x640xf32>,
    %c128 = arith.constant 128 : index
    %c0_54 = arith.constant 0 : index
    %82 = vector.load %arg9[%c128, %c0_54] : memref<288x640xf32, #tpu.memory_space<vmem>>, vector<32x640xf32>
    tpu.vector_store %arg9[%c128, %c0_54], %69 {strides = array<i32>} : memref<288x640xf32, #tpu.memory_space<vmem>>, vector<32x640xf32>,
    %c639_i32_55 = arith.constant 639 : i32
    %83 = tpu.dynamic_rotate %73 by %c639_i32_55 dim 1 : vector<32x640xf32>, i32 -> vector<32x640xf32>
    %c160 = arith.constant 160 : index
    %c0_56 = arith.constant 0 : index
    %84 = vector.load %arg9[%c160, %c0_56] : memref<288x640xf32, #tpu.memory_space<vmem>>, vector<32x640xf32>
    tpu.vector_store %arg9[%c160, %c0_56], %83 {strides = array<i32>} : memref<288x640xf32, #tpu.memory_space<vmem>>, vector<32x640xf32>,
    %c625_i32_57 = arith.constant 625 : i32
    %85 = tpu.dynamic_rotate %71 by %c625_i32_57 dim 1 : vector<32x640xf32>, i32 -> vector<32x640xf32>
    %c192 = arith.constant 192 : index
    %c0_58 = arith.constant 0 : index
    %86 = vector.load %arg9[%c192, %c0_58] : memref<288x640xf32, #tpu.memory_space<vmem>>, vector<32x640xf32>
    tpu.vector_store %arg9[%c192, %c0_58], %85 {strides = array<i32>} : memref<288x640xf32, #tpu.memory_space<vmem>>, vector<32x640xf32>,
    %c624_i32_59 = arith.constant 624 : i32
    %87 = tpu.dynamic_rotate %69 by %c624_i32_59 dim 1 : vector<32x640xf32>, i32 -> vector<32x640xf32>
    %c224 = arith.constant 224 : index
    %c0_60 = arith.constant 0 : index
    %88 = vector.load %arg9[%c224, %c0_60] : memref<288x640xf32, #tpu.memory_space<vmem>>, vector<32x640xf32>
    tpu.vector_store %arg9[%c224, %c0_60], %87 {strides = array<i32>} : memref<288x640xf32, #tpu.memory_space<vmem>>, vector<32x640xf32>,
    %c623_i32_61 = arith.constant 623 : i32
    %89 = tpu.dynamic_rotate %73 by %c623_i32_61 dim 1 : vector<32x640xf32>, i32 -> vector<32x640xf32>
    %c256 = arith.constant 256 : index
    %c0_62 = arith.constant 0 : index
    %90 = vector.load %arg9[%c256, %c0_62] : memref<288x640xf32, #tpu.memory_space<vmem>>, vector<32x640xf32>
    tpu.vector_store %arg9[%c256, %c0_62], %89 {strides = array<i32>} : memref<288x640xf32, #tpu.memory_space<vmem>>, vector<32x640xf32>,
    %c0_63 = arith.constant 0 : index
    %c103 = arith.constant 103 : index
    %91 = vector.load %arg4[%c0_63, %c103] : memref<32x128xf32, #tpu.memory_space<vmem>>, vector<4x1xf32>
    %c0_64 = arith.constant 0 : index
    %c0_65 = arith.constant 0 : index
    %92 = vector.load %arg5[%c0_64, %c0_65] : memref<4x288xf32, #tpu.memory_space<vmem>>, vector<4x288xf32>
    %c0_66 = arith.constant 0 : index
    %c0_67 = arith.constant 0 : index
    %93 = vector.load %arg9[%c0_66, %c0_67] : memref<288x640xf32, #tpu.memory_space<vmem>>, vector<288x640xf32>
    %cst_68 = arith.constant dense<0.000000e+00> : vector<4x640xf32>
    %94 = tpu.matmul %92, %93, %cst_68 {dimension_numbers = #tpu.dot_dimension_numbers<[1], [0], [0], [1], [0, 0, 1, 1], [], []>} : vector<4x288xf32>, vector<288x640xf32>, vector<4x640xf32> -> vector<4x640xf32>
    %95 = vector.broadcast %91 : vector<4x1xf32> to vector<4x640xf32>
    %96 = arith.addf %94, %95 : vector<4x640xf32>
    %c0_69 = arith.constant 0 : index
    %c0_70 = arith.constant 0 : index
    %97 = vector.load %arg6[%c0_69, %c0_70] : memref<4x640xf32, #tpu.memory_space<vmem>>, vector<4x640xf32>
    tpu.vector_store %arg6[%c0_69, %c0_70], %96 {strides = array<i32>} : memref<4x640xf32, #tpu.memory_space<vmem>>, vector<4x640xf32>,
    return
  }
  func.func @transform_0(%arg0: i32) -> (i32, i32) {
    %c0_i32 = arith.constant 0 : i32
    %c0_i32_0 = arith.constant 0 : i32
    %c0_i32_1 = arith.constant 0 : i32
    return %c0_i32, %c0_i32_0 : i32, i32
  }
  func.func @transform_1(%arg0: i32) -> (i32, i32) {
    %c0_i32 = arith.constant 0 : i32
    %c0_i32_0 = arith.constant 0 : i32
    %c0_i32_1 = arith.constant 0 : i32
    return %c0_i32, %c0_i32_0 : i32, i32
  }
  func.func @transform_2(%arg0: i32) -> (i32, i32) {
    %c0_i32 = arith.constant 0 : i32
    %c0_i32_0 = arith.constant 0 : i32
    %c0_i32_1 = arith.constant 0 : i32
    return %c0_i32, %c0_i32_0 : i32, i32
  }
  func.func @transform_3(%arg0: i32) -> (i32, i32) {
    %c0_i32 = arith.constant 0 : i32
    %c0_i32_0 = arith.constant 0 : i32
    %c0_i32_1 = arith.constant 0 : i32
    return %c0_i32, %c0_i32_0 : i32, i32
  }
  func.func @transform_4(%arg0: i32) -> (i32, i32) {
    %c0_i32 = arith.constant 0 : i32
    %c0_i32_0 = arith.constant 0 : i32
    %c0_i32_1 = arith.constant 0 : i32
    return %c0_i32, %c0_i32_0 : i32, i32
  }
  func.func @transform_5(%arg0: i32) -> (i32, i32) {
    %c0_i32 = arith.constant 0 : i32
    %c0_i32_0 = arith.constant 0 : i32
    %c0_i32_1 = arith.constant 0 : i32
    return %c0_i32, %c0_i32_0 : i32, i32
  }
}

</mosaic_0001>

<llo_original>
// kernel: forward.1
$region0: #{forward.1}
  #allocation0 [shape = 'u32[]', space=smem, size = 0x4, offset = 0x4, fixed_abs, tag = 'smem constant byte address 0x4 - core index']
  #allocation1 [shape = 'u32[72,128]{1,0:T(1,128)}', space=vmem, size = 0x9000, scoped, tag = 'internal scratch']
  #allocation2 [shape = 'f32[32,38]{1,0:T(8,128)}', space=vmem, size = 0x4000, scoped, tag = 'scratch operand']
  #allocation3 [shape = 'f32[38,640]{1,0:T(8,128)}', space=vmem, size = 0x19000, scoped, tag = 'scratch operand']
  #allocation4 [shape = 'f32[288,640]{1,0:T(8,128)}', space=vmem, size = 0xb4000, scoped, tag = 'scratch operand']
  %s0 = inlined_call_operand.vmem [shape: f32[1,2], index: 0, kind: input, shape index: {}]
  %s1 = inlined_call_operand.vmem [shape: f32[4,640], index: 1, kind: input, shape index: {}]
  %s2 = inlined_call_operand.vmem [shape: f32[5,640], index: 2, kind: input, shape index: {}]
  %s3 = inlined_call_operand.vmem [shape: f32[32,128], index: 3, kind: input, shape index: {}]
  %s4 = inlined_call_operand.vmem [shape: f32[4,288], index: 4, kind: input, shape index: {}]
  %s5 = inlined_call_operand.vmem [shape: f32[4,640], index: 5, kind: output, shape index: {}]
  %s6 = sld [smem:[#allocation0]]
  $region30: #{forward.1} parent=0
    _
  %s8 = ssub.s32 1, %s6
  %s9 = scalar_select 0, %s8, %s6
  // Predicated region
  $region2: #{forward.1} parent=0 // pred_check
    _
  $region3: #{forward.1} parent=0 // pred_check_branch
    %11 = sbr.rel (0) target = $region5
  $region4: #{forward.1} parent=0 // pred_region
    _
  $region5: #{forward.1} parent=0 // pred_fallthru
    _
  // Predicated region
  $region6: #{forward.1} parent=0 // pred_check
    _
  $region7: #{forward.1} parent=0 // pred_check_branch
    %13 = sbr.rel (0) target = $region9
  $region8: #{forward.1} parent=0 // pred_region
    _
  $region9: #{forward.1} parent=0 // pred_fallthru
    _
  // Predicated region
  $region10: #{forward.1} parent=0 // pred_check
    _
  $region11: #{forward.1} parent=0 // pred_check_branch
    %15 = sbr.rel (0) target = $region13
  $region12: #{forward.1} parent=0 // pred_region
    _
  $region13: #{forward.1} parent=0 // pred_fallthru
    _
  // Predicated region
  $region14: #{forward.1} parent=0 // pred_check
    _
  $region15: #{forward.1} parent=0 // pred_check_branch
    %17 = sbr.rel (0) target = $region17
  $region16: #{forward.1} parent=0 // pred_region
    _
  $region17: #{forward.1} parent=0 // pred_fallthru
    _
  // Predicated region
  $region18: #{forward.1} parent=0 // pred_check
    _
  $region19: #{forward.1} parent=0 // pred_check_branch
    %19 = sbr.rel (0) target = $region21
  $region20: #{forward.1} parent=0 // pred_region
    _
  $region21: #{forward.1} parent=0 // pred_fallthru
    _
  %v20 = vld [vmem:[%s1] sm:$0xff]
  %v21 = vld [vmem:[%s1 + $0x8] sm:$0xff]
  %v22 = vld [vmem:[%s1 + $0x10] sm:$0xf]
  %v23 = vld [vmem:[%s2] ss:$8 sm:$0xf]
  %v24 = vld [vmem:[%s2] ss:$8 sm:$0x10]
  %v25 = vor.u32 %v23, %v24
  %s26 = scalar_lea.vmem %s2, 1
  %v27 = vld [vmem:[%s26] ss:$8 sm:$0xf]
  %v28 = vld [vmem:[%s26] ss:$8 sm:$0x10]
  %v29 = vor.u32 %v27, %v28
  %s30 = scalar_lea.vmem %s2, 2
  %v31 = vld [vmem:[%s30] ss:$8 sm:$0xf]
  %v32 = vld [vmem:[%s30] ss:$8 sm:$0x10]
  %v33 = vor.u32 %v31, %v32
  %v34 = vld [vmem:[%s2] sm:$0x18]
  %v35 = vld [vmem:[%s2 + $0x8] sm:$0x18]
  %v36 = vld [vmem:[%s2 + $0x10] sm:$0x18]
  %v37 = vld [vmem:[%s2 + $0x18] sm:$0x18]
  %v38 = vld [vmem:[%s2 + $0x20] sm:$0x18]
  %v39 = vld [vmem:[%s3] sm:$0xff]
  %v40 = vld [vmem:[%s3 + $0x8] sm:$0xff]
  %v41 = vld [vmem:[%s0] sm:$0x1]
  %43 = vset.pattern.permute.xlu0 104
  %44 = vperm.xlu0 %43, %v39
  %v45 = vpop.permute.xlu0 %44
  %48 = vset.pattern.permute.xlu0 104
  %49 = vperm.xlu0 %48, %v40
  %v50 = vpop.permute.xlu0 %49
  %v53 = vperm.slane %v41, 0
  %v55 = vmul.f32 %v45, %v53
  %v56 = vmul.f32 %v50, %v53
  %v57 = vld [vmem:[%s3] sm:$0xff]
  %v58 = vld [vmem:[%s3 + $0x8] sm:$0xff]
  %v59 = vld [vmem:[%s3 + $0x10] sm:$0xff]
  %v60 = vld [vmem:[%s3 + $0x18] sm:$0xff]
  %v61 = vand.u32 2147483647, %v55
  %vm62 = vcmp.le.f32.partialorder %v61, 0.7853982
  %vm63 = vcmp.lt.s32.totalorder %v55, 0
  %v64 = vand.u32 %v55, 2139095040
  %v65 = vshrl.u32 %v64, 23
  %v66 = vsub.s32 %v65, 127
  %v67 = vand.u32 2147483647, %v55
  %v68 = vand.u32 %v67, 8388607
  %v69 = vor.u32 %v68, 8388608
  %v70 = vsub.s32 0, %v69
  %v71 = vadd.s32 %v66, 1
  %vm72 = vcmp.gt.s32.totalorder %v71, 0
  %v73 = vsel %vm72, %v71, 0
  %v74 = vshrl.u32 %v73, 5
  %v75 = vand.u32 %v73, 31
  %v76 = vsub.s32 32, %v75
  %v77 = vshrl.u32 683565275, %v76
  %v78 = vshll.u32 683565275, %v75
  %v79 = vshrl.u32 2475754826, %v76
  %v80 = vor.u32 %v78, %v79
  %v81 = vshll.u32 2475754826, %v75
  %v82 = vshrl.u32 2131351028, %v76
  %v83 = vor.u32 %v81, %v82
  %v84 = vshll.u32 2131351028, %v75
  %v85 = vshrl.u32 2102212464, %v76
  %v86 = vor.u32 %v84, %v85
  %v87 = vshll.u32 2102212464, %v75
  %v88 = vshrl.u32 920167782, %v76
  %v89 = vor.u32 %v87, %v88
  %v90 = vshll.u32 920167782, %v75
  %v91 = vshrl.u32 1326507024, %v76
  %v92 = vor.u32 %v90, %v91
  %vm93 = vcmp.lt.s32.totalorder %v74, 1
  %vm94 = vcmp.lt.s32.totalorder %v74, 2
  %vm95 = vcmp.lt.s32.totalorder %v74, 3
  %vm96 = vcmp.lt.s32.totalorder %v74, 4
  %v97 = vsel %vm93, %v77, %v80
  %v98 = vsel %vm96, %v86, 2102212464
  %v99 = vsel %vm95, %v83, %v98
  %v100 = vsel %vm94, %v97, %v99
  %v101 = vsel %vm93, %v80, %v83
  %v102 = vsel %vm96, %v89, 920167782
  %v103 = vsel %vm95, %v86, %v102
  %v104 = vsel %vm94, %v101, %v103
  %v105 = vsel %vm93, %v83, %v86
  %v106 = vsel %vm96, %v92, 1326507024
  %v107 = vsel %vm95, %v89, %v106
  %v108 = vsel %vm94, %v105, %v107
  %v109 = vshll.u32 %v69, 8
  %v110 = vand.u32 %v109, 65535
  %v111 = vshrl.u32 %v109, 16
  %v112 = vand.u32 %v108, 65535
  %v113 = vshrl.u32 %v108, 16
  %v114 = vmul.u32 %v110, %v112
  %v115 = vmul.u32 %v110, %v113
  %v116 = vmul.u32 %v111, %v112
  %v117 = vmul.u32 %v111, %v113
  %v118 = vshll.u32 %v115, 16
  %v119 = vshrl.u32 %v115, 16
  %v120 = vshll.u32 %v116, 16
  %v121 = vshrl.u32 %v116, 16
  %vm122 = vc.u32 %v114, %v118
  %v123 = vsel %vm122, 1, 0
  %v124 = vadd.s32 %v114, %v118
  %v125 = vadd.s32 %v117, %v123
  %vm126 = vc.u32 %v124, %v120
  %v127 = vsel %vm126, 1, 0
  %v128 = vadd.s32 %v124, %v120
  %v129 = vadd.s32 %v125, %v127
  %v130 = vadd.s32 %v129, %v119
  %v131 = vadd.s32 %v130, %v121
  %v132 = vand.u32 %v109, 65535
  %v133 = vshrl.u32 %v109, 16
  %v134 = vand.u32 %v104, 65535
  %v135 = vshrl.u32 %v104, 16
  %v136 = vmul.u32 %v132, %v134
  %v137 = vmul.u32 %v132, %v135
  %v138 = vmul.u32 %v133, %v134
  %v139 = vmul.u32 %v133, %v135
  %v140 = vshll.u32 %v137, 16
  %v141 = vshrl.u32 %v137, 16
  %v142 = vshll.u32 %v138, 16
  %v143 = vshrl.u32 %v138, 16
  %vm144 = vc.u32 %v136, %v140
  %v145 = vsel %vm144, 1, 0
  %v146 = vadd.s32 %v136, %v140
  %v147 = vadd.s32 %v139, %v145
  %vm148 = vc.u32 %v146, %v142
  %v149 = vsel %vm148, 1, 0
  %v150 = vadd.s32 %v146, %v142
  %v151 = vadd.s32 %v147, %v149
  %v152 = vadd.s32 %v151, %v141
  %v153 = vadd.s32 %v152, %v143
  %v154 = vmul.u32 %v109, %v100
  %v155 = vadd.s32 %v131, %v150
  %vm156 = vc.u32 %v131, %v150
  %v157 = vadd.s32 %v153, 1
  %v158 = vsel %vm156, %v157, %v153
  %v159 = vadd.s32 %v154, %v158
  %v160 = vadd.s32 %v159, 536870912
  %v161 = vshrl.u32 %v160, 30
  %v162 = vshll.u32 %v161, 30
  %v163 = vsub.s32 %v159, %v162
  %vm164 = vcmp.lt.s32.totalorder %v163, 0
  %v165 = vsub.s32 0, %v163
  %v166 = vsel %vm164, %v165, %v163
  %v167 = vclz %v166
  %v168 = vsub.s32 %v167, 2
  %vm169 = vcmp.gt.s32.totalorder 0, %v168
  %v170 = vsel %vm169, 0, %v168
  %v171 = vsub.s32 32, %v170
  %v172 = vshll.u32 %v163, %v170
  %v173 = vshrl.u32 %v155, %v171
  %v174 = vor.u32 %v172, %v173
  %v175 = vsub.s32 4294967266, %v170
  %v176 = vadd.s32 %v175, 127
  %v177 = vshll.u32 %v176, 23
  %v178 = vor.u32 4788187, %v177
  %v179 = vand.u32 2147483647, %v178
  %v181 = vcvt.s32.f32 %v174
  %v182 = vmul.f32 %v181, %v179
  %v183 = vxor.u32 %v182, 2147483648
  %v184 = vsel %vm63, %v183, %v182
  %v185 = vsub.s32 4, %v161
  %v186 = vsel %vm63, %v185, %v161
  %v187 = vsel %vm62, %v55, %v184
  %v188 = vsel %vm62, 0, %v186
  %v189 = vmul.f32 %v187, %v187
  %v190 = vmul.f32 %v189, -0.001358992
  %v191 = vadd.f32 %v190, 0.041655596
  %v192 = vmul.f32 %v189, %v191
  %v193 = vadd.f32 %v192, -0.4999988
  %v194 = vmul.f32 %v189, %v193
  %v195 = vadd.f32 1.0, %v194
  %v196 = vmul.f32 %v187, %v187
  %v197 = vmul.f32 %v196, -0.00019511016
  %v198 = vadd.f32 %v197, 0.008332121
  %v199 = vmul.f32 %v196, %v198
  %v200 = vadd.f32 %v199, -0.16666654
  %v201 = vmul.f32 %v196, %v200
  %v202 = vadd.f32 %v201, 1.0
  %v203 = vmul.f32 %v202, %v187
  %vm204 = vweird.f32 %v55
  %v205 = vand.u32 %v188, 3
  %vm206 = vcmp.lt.s32.totalorder %v205, 2
  %vm207 = vcmp.eq.s32.totalorder %v205, 0
  %v208 = vxor.u32 %v203, 2147483648
  %v209 = vsel %vm207, %v195, %v208
  %vm210 = vcmp.eq.s32.totalorder %v205, 2
  %v211 = vxor.u32 %v195, 2147483648
  %v212 = vsel %vm210, %v211, %v203
  %v213 = vsel %vm206, %v209, %v212
  %v214 = vsel %vm204, nan, %v213
  %v215 = vand.u32 2147483647, %v56
  %vm216 = vcmp.le.f32.partialorder %v215, 0.7853982
  %vm217 = vcmp.lt.s32.totalorder %v56, 0
  %v218 = vand.u32 %v56, 2139095040
  %v219 = vshrl.u32 %v218, 23
  %v220 = vsub.s32 %v219, 127
  %v221 = vand.u32 2147483647, %v56
  %v222 = vand.u32 %v221, 8388607
  %v223 = vor.u32 %v222, 8388608
  %v224 = vsub.s32 0, %v223
  %v225 = vadd.s32 %v220, 1
  %vm226 = vcmp.gt.s32.totalorder %v225, 0
  %v227 = vsel %vm226, %v225, 0
  %v228 = vshrl.u32 %v227, 5
  %v229 = vand.u32 %v227, 31
  %v230 = vsub.s32 32, %v229
  %v231 = vshrl.u32 683565275, %v230
  %v232 = vshll.u32 683565275, %v229
  %v233 = vshrl.u32 2475754826, %v230
  %v234 = vor.u32 %v232, %v233
  %v235 = vshll.u32 2475754826, %v229
  %v236 = vshrl.u32 2131351028, %v230
  %v237 = vor.u32 %v235, %v236
  %v238 = vshll.u32 2131351028, %v229
  %v239 = vshrl.u32 2102212464, %v230
  %v240 = vor.u32 %v238, %v239
  %v241 = vshll.u32 2102212464, %v229
  %v242 = vshrl.u32 920167782, %v230
  %v243 = vor.u32 %v241, %v242
  %v244 = vshll.u32 920167782, %v229
  %v245 = vshrl.u32 1326507024, %v230
  %v246 = vor.u32 %v244, %v245
  %vm247 = vcmp.lt.s32.totalorder %v228, 1
  %vm248 = vcmp.lt.s32.totalorder %v228, 2
  %vm249 = vcmp.lt.s32.totalorder %v228, 3
  %vm250 = vcmp.lt.s32.totalorder %v228, 4
  %v251 = vsel %vm247, %v231, %v234
  %v252 = vsel %vm250, %v240, 2102212464
  %v253 = vsel %vm249, %v237, %v252
  %v254 = vsel %vm248, %v251, %v253
  %v255 = vsel %vm247, %v234, %v237
  %v256 = vsel %vm250, %v243, 920167782
  %v257 = vsel %vm249, %v240, %v256
  %v258 = vsel %vm248, %v255, %v257
  %v259 = vsel %vm247, %v237, %v240
  %v260 = vsel %vm250, %v246, 1326507024
  %v261 = vsel %vm249, %v243, %v260
  %v262 = vsel %vm248, %v259, %v261
  %v263 = vshll.u32 %v223, 8
  %v264 = vand.u32 %v263, 65535
  %v265 = vshrl.u32 %v263, 16
  %v266 = vand.u32 %v262, 65535
  %v267 = vshrl.u32 %v262, 16
  %v268 = vmul.u32 %v264, %v266
  %v269 = vmul.u32 %v264, %v267
  %v270 = vmul.u32 %v265, %v266
  %v271 = vmul.u32 %v265, %v267
  %v272 = vshll.u32 %v269, 16
  %v273 = vshrl.u32 %v269, 16
  %v274 = vshll.u32 %v270, 16
  %v275 = vshrl.u32 %v270, 16
  %vm276 = vc.u32 %v268, %v272
  %v277 = vsel %vm276, 1, 0
  %v278 = vadd.s32 %v268, %v272
  %v279 = vadd.s32 %v271, %v277
  %vm280 = vc.u32 %v278, %v274
  %v281 = vsel %vm280, 1, 0
  %v282 = vadd.s32 %v278, %v274
  %v283 = vadd.s32 %v279, %v281
  %v284 = vadd.s32 %v283, %v273
  %v285 = vadd.s32 %v284, %v275
  %v286 = vand.u32 %v263, 65535
  %v287 = vshrl.u32 %v263, 16
  %v288 = vand.u32 %v258, 65535
  %v289 = vshrl.u32 %v258, 16
  %v290 = vmul.u32 %v286, %v288
  %v291 = vmul.u32 %v286, %v289
  %v292 = vmul.u32 %v287, %v288
  %v293 = vmul.u32 %v287, %v289
  %v294 = vshll.u32 %v291, 16
  %v295 = vshrl.u32 %v291, 16
  %v296 = vshll.u32 %v292, 16
  %v297 = vshrl.u32 %v292, 16
  %vm298 = vc.u32 %v290, %v294
  %v299 = vsel %vm298, 1, 0
  %v300 = vadd.s32 %v290, %v294
  %v301 = vadd.s32 %v293, %v299
  %vm302 = vc.u32 %v300, %v296
  %v303 = vsel %vm302, 1, 0
  %v304 = vadd.s32 %v300, %v296
  %v305 = vadd.s32 %v301, %v303
  %v306 = vadd.s32 %v305, %v295
  %v307 = vadd.s32 %v306, %v297
  %v308 = vmul.u32 %v263, %v254
  %v309 = vadd.s32 %v285, %v304
  %vm310 = vc.u32 %v285, %v304
  %v311 = vadd.s32 %v307, 1
  %v312 = vsel %vm310, %v311, %v307
  %v313 = vadd.s32 %v308, %v312
  %v314 = vadd.s32 %v313, 536870912
  %v315 = vshrl.u32 %v314, 30
  %v316 = vshll.u32 %v315, 30
  %v317 = vsub.s32 %v313, %v316
  %vm318 = vcmp.lt.s32.totalorder %v317, 0
  %v319 = vsub.s32 0, %v317
  %v320 = vsel %vm318, %v319, %v317
  %v321 = vclz %v320
  %v322 = vsub.s32 %v321, 2
  %vm323 = vcmp.gt.s32.totalorder 0, %v322
  %v324 = vsel %vm323, 0, %v322
  %v325 = vsub.s32 32, %v324
  %v326 = vshll.u32 %v317, %v324
  %v327 = vshrl.u32 %v309, %v325
  %v328 = vor.u32 %v326, %v327
  %v329 = vsub.s32 4294967266, %v324
  %v330 = vadd.s32 %v329, 127
  %v331 = vshll.u32 %v330, 23
  %v332 = vor.u32 4788187, %v331
  %v333 = vand.u32 2147483647, %v332
  %v335 = vcvt.s32.f32 %v328
  %v336 = vmul.f32 %v335, %v333
  %v337 = vxor.u32 %v336, 2147483648
  %v338 = vsel %vm217, %v337, %v336
  %v339 = vsub.s32 4, %v315
  %v340 = vsel %vm217, %v339, %v315
  %v341 = vsel %vm216, %v56, %v338
  %v342 = vsel %vm216, 0, %v340
  %v343 = vmul.f32 %v341, %v341
  %v344 = vmul.f32 %v343, -0.001358992
  %v345 = vadd.f32 %v344, 0.041655596
  %v346 = vmul.f32 %v343, %v345
  %v347 = vadd.f32 %v346, -0.4999988
  %v348 = vmul.f32 %v343, %v347
  %v349 = vadd.f32 1.0, %v348
  %v350 = vmul.f32 %v341, %v341
  %v351 = vmul.f32 %v350, -0.00019511016
  %v352 = vadd.f32 %v351, 0.008332121
  %v353 = vmul.f32 %v350, %v352
  %v354 = vadd.f32 %v353, -0.16666654
  %v355 = vmul.f32 %v350, %v354
  %v356 = vadd.f32 %v355, 1.0
  %v357 = vmul.f32 %v356, %v341
  %vm358 = vweird.f32 %v56
  %v359 = vand.u32 %v342, 3
  %vm360 = vcmp.lt.s32.totalorder %v359, 2
  %vm361 = vcmp.eq.s32.totalorder %v359, 0
  %v362 = vxor.u32 %v357, 2147483648
  %v363 = vsel %vm361, %v349, %v362
  %vm364 = vcmp.eq.s32.totalorder %v359, 2
  %v365 = vxor.u32 %v349, 2147483648
  %v366 = vsel %vm364, %v365, %v357
  %v367 = vsel %vm360, %v363, %v366
  %v368 = vsel %vm358, nan, %v367
  %v369 = vand.u32 2147483647, %v55
  %vm370 = vcmp.le.f32.partialorder %v369, 0.7853982
  %vm371 = vcmp.lt.s32.totalorder %v55, 0
  %v372 = vand.u32 %v55, 2139095040
  %v373 = vshrl.u32 %v372, 23
  %v374 = vsub.s32 %v373, 127
  %v375 = vand.u32 2147483647, %v55
  %v376 = vand.u32 %v375, 8388607
  %v377 = vor.u32 %v376, 8388608
  %v378 = vsub.s32 0, %v377
  %v379 = vadd.s32 %v374, 1
  %vm380 = vcmp.gt.s32.totalorder %v379, 0
  %v381 = vsel %vm380, %v379, 0
  %v382 = vshrl.u32 %v381, 5
  %v383 = vand.u32 %v381, 31
  %v384 = vsub.s32 32, %v383
  %v385 = vshrl.u32 683565275, %v384
  %v386 = vshll.u32 683565275, %v383
  %v387 = vshrl.u32 2475754826, %v384
  %v388 = vor.u32 %v386, %v387
  %v389 = vshll.u32 2475754826, %v383
  %v390 = vshrl.u32 2131351028, %v384
  %v391 = vor.u32 %v389, %v390
  %v392 = vshll.u32 2131351028, %v383
  %v393 = vshrl.u32 2102212464, %v384
  %v394 = vor.u32 %v392, %v393
  %v395 = vshll.u32 2102212464, %v383
  %v396 = vshrl.u32 920167782, %v384
  %v397 = vor.u32 %v395, %v396
  %v398 = vshll.u32 920167782, %v383
  %v399 = vshrl.u32 1326507024, %v384
  %v400 = vor.u32 %v398, %v399
  %vm401 = vcmp.lt.s32.totalorder %v382, 1
  %vm402 = vcmp.lt.s32.totalorder %v382, 2
  %vm403 = vcmp.lt.s32.totalorder %v382, 3
  %vm404 = vcmp.lt.s32.totalorder %v382, 4
  %v405 = vsel %vm401, %v385, %v388
  %v406 = vsel %vm404, %v394, 2102212464
  %v407 = vsel %vm403, %v391, %v406
  %v408 = vsel %vm402, %v405, %v407
  %v409 = vsel %vm401, %v388, %v391
  %v410 = vsel %vm404, %v397, 920167782
  %v411 = vsel %vm403, %v394, %v410
  %v412 = vsel %vm402, %v409, %v411
  %v413 = vsel %vm401, %v391, %v394
  %v414 = vsel %vm404, %v400, 1326507024
  %v415 = vsel %vm403, %v397, %v414
  %v416 = vsel %vm402, %v413, %v415
  %v417 = vshll.u32 %v377, 8
  %v418 = vand.u32 %v417, 65535
  %v419 = vshrl.u32 %v417, 16
  %v420 = vand.u32 %v416, 65535
  %v421 = vshrl.u32 %v416, 16
  %v422 = vmul.u32 %v418, %v420
  %v423 = vmul.u32 %v418, %v421
  %v424 = vmul.u32 %v419, %v420
  %v425 = vmul.u32 %v419, %v421
  %v426 = vshll.u32 %v423, 16
  %v427 = vshrl.u32 %v423, 16
  %v428 = vshll.u32 %v424, 16
  %v429 = vshrl.u32 %v424, 16
  %vm430 = vc.u32 %v422, %v426
  %v431 = vsel %vm430, 1, 0
  %v432 = vadd.s32 %v422, %v426
  %v433 = vadd.s32 %v425, %v431
  %vm434 = vc.u32 %v432, %v428
  %v435 = vsel %vm434, 1, 0
  %v436 = vadd.s32 %v432, %v428
  %v437 = vadd.s32 %v433, %v435
  %v438 = vadd.s32 %v437, %v427
  %v439 = vadd.s32 %v438, %v429
  %v440 = vand.u32 %v417, 65535
  %v441 = vshrl.u32 %v417, 16
  %v442 = vand.u32 %v412, 65535
  %v443 = vshrl.u32 %v412, 16
  %v444 = vmul.u32 %v440, %v442
  %v445 = vmul.u32 %v440, %v443
  %v446 = vmul.u32 %v441, %v442
  %v447 = vmul.u32 %v441, %v443
  %v448 = vshll.u32 %v445, 16
  %v449 = vshrl.u32 %v445, 16
  %v450 = vshll.u32 %v446, 16
  %v451 = vshrl.u32 %v446, 16
  %vm452 = vc.u32 %v444, %v448
  %v453 = vsel %vm452, 1, 0
  %v454 = vadd.s32 %v444, %v448
  %v455 = vadd.s32 %v447, %v453
  %vm456 = vc.u32 %v454, %v450
  %v457 = vsel %vm456, 1, 0
  %v458 = vadd.s32 %v454, %v450
  %v459 = vadd.s32 %v455, %v457
  %v460 = vadd.s32 %v459, %v449
  %v461 = vadd.s32 %v460, %v451
  %v462 = vmul.u32 %v417, %v408
  %v463 = vadd.s32 %v439, %v458
  %vm464 = vc.u32 %v439, %v458
  %v465 = vadd.s32 %v461, 1
  %v466 = vsel %vm464, %v465, %v461
  %v467 = vadd.s32 %v462, %v466
  %v468 = vadd.s32 %v467, 536870912
  %v469 = vshrl.u32 %v468, 30
  %v470 = vshll.u32 %v469, 30
  %v471 = vsub.s32 %v467, %v470
  %vm472 = vcmp.lt.s32.totalorder %v471, 0
  %v473 = vsub.s32 0, %v471
  %v474 = vsel %vm472, %v473, %v471
  %v475 = vclz %v474
  %v476 = vsub.s32 %v475, 2
  %vm477 = vcmp.gt.s32.totalorder 0, %v476
  %v478 = vsel %vm477, 0, %v476
  %v479 = vsub.s32 32, %v478
  %v480 = vshll.u32 %v471, %v478
  %v481 = vshrl.u32 %v463, %v479
  %v482 = vor.u32 %v480, %v481
  %v483 = vsub.s32 4294967266, %v478
  %v484 = vadd.s32 %v483, 127
  %v485 = vshll.u32 %v484, 23
  %v486 = vor.u32 4788187, %v485
  %v487 = vand.u32 2147483647, %v486
  %v489 = vcvt.s32.f32 %v482
  %v490 = vmul.f32 %v489, %v487
  %v491 = vxor.u32 %v490, 2147483648
  %v492 = vsel %vm371, %v491, %v490
  %v493 = vsub.s32 4, %v469
  %v494 = vsel %vm371, %v493, %v469
  %v495 = vsel %vm370, %v55, %v492
  %v496 = vsel %vm370, 0, %v494
  %v497 = vmul.f32 %v495, %v495
  %v498 = vmul.f32 %v497, -0.001358992
  %v499 = vadd.f32 %v498, 0.041655596
  %v500 = vmul.f32 %v497, %v499
  %v501 = vadd.f32 %v500, -0.4999988
  %v502 = vmul.f32 %v497, %v501
  %v503 = vadd.f32 1.0, %v502
  %v504 = vmul.f32 %v495, %v495
  %v505 = vmul.f32 %v504, -0.00019511016
  %v506 = vadd.f32 %v505, 0.008332121
  %v507 = vmul.f32 %v504, %v506
  %v508 = vadd.f32 %v507, -0.16666654
  %v509 = vmul.f32 %v504, %v508
  %v510 = vadd.f32 %v509, 1.0
  %v511 = vmul.f32 %v510, %v495
  %vm512 = vweird.f32 %v55
  %v513 = vadd.s32 %v496, 3
  %v514 = vand.u32 %v513, 3
  %vm515 = vcmp.lt.s32.totalorder %v514, 2
  %vm516 = vcmp.eq.s32.totalorder %v514, 0
  %v517 = vxor.u32 %v511, 2147483648
  %v518 = vsel %vm516, %v503, %v517
  %vm519 = vcmp.eq.s32.totalorder %v514, 2
  %v520 = vxor.u32 %v503, 2147483648
  %v521 = vsel %vm519, %v520, %v511
  %v522 = vsel %vm515, %v518, %v521
  %v523 = vsel %vm512, nan, %v522
  %v524 = vand.u32 2147483647, %v56
  %vm525 = vcmp.le.f32.partialorder %v524, 0.7853982
  %vm526 = vcmp.lt.s32.totalorder %v56, 0
  %v527 = vand.u32 %v56, 2139095040
  %v528 = vshrl.u32 %v527, 23
  %v529 = vsub.s32 %v528, 127
  %v530 = vand.u32 2147483647, %v56
  %v531 = vand.u32 %v530, 8388607
  %v532 = vor.u32 %v531, 8388608
  %v533 = vsub.s32 0, %v532
  %v534 = vadd.s32 %v529, 1
  %vm535 = vcmp.gt.s32.totalorder %v534, 0
  %v536 = vsel %vm535, %v534, 0
  %v537 = vshrl.u32 %v536, 5
  %v538 = vand.u32 %v536, 31
  %v539 = vsub.s32 32, %v538
  %v540 = vshrl.u32 683565275, %v539
  %v541 = vshll.u32 683565275, %v538
  %v542 = vshrl.u32 2475754826, %v539
  %v543 = vor.u32 %v541, %v542
  %v544 = vshll.u32 2475754826, %v538
  %v545 = vshrl.u32 2131351028, %v539
  %v546 = vor.u32 %v544, %v545
  %v547 = vshll.u32 2131351028, %v538
  %v548 = vshrl.u32 2102212464, %v539
  %v549 = vor.u32 %v547, %v548
  %v550 = vshll.u32 2102212464, %v538
  %v551 = vshrl.u32 920167782, %v539
  %v552 = vor.u32 %v550, %v551
  %v553 = vshll.u32 920167782, %v538
  %v554 = vshrl.u32 1326507024, %v539
  %v555 = vor.u32 %v553, %v554
  %vm556 = vcmp.lt.s32.totalorder %v537, 1
  %vm557 = vcmp.lt.s32.totalorder %v537, 2
  %vm558 = vcmp.lt.s32.totalorder %v537, 3
  %vm559 = vcmp.lt.s32.totalorder %v537, 4
  %v560 = vsel %vm556, %v540, %v543
  %v561 = vsel %vm559, %v549, 2102212464
  %v562 = vsel %vm558, %v546, %v561
  %v563 = vsel %vm557, %v560, %v562
  %v564 = vsel %vm556, %v543, %v546
  %v565 = vsel %vm559, %v552, 920167782
  %v566 = vsel %vm558, %v549, %v565
  %v567 = vsel %vm557, %v564, %v566
  %v568 = vsel %vm556, %v546, %v549
  %v569 = vsel %vm559, %v555, 1326507024
  %v570 = vsel %vm558, %v552, %v569
  %v571 = vsel %vm557, %v568, %v570
  %v572 = vshll.u32 %v532, 8
  %v573 = vand.u32 %v572, 65535
  %v574 = vshrl.u32 %v572, 16
  %v575 = vand.u32 %v571, 65535
  %v576 = vshrl.u32 %v571, 16
  %v577 = vmul.u32 %v573, %v575
  %v578 = vmul.u32 %v573, %v576
  %v579 = vmul.u32 %v574, %v575
  %v580 = vmul.u32 %v574, %v576
  %v581 = vshll.u32 %v578, 16
  %v582 = vshrl.u32 %v578, 16
  %v583 = vshll.u32 %v579, 16
  %v584 = vshrl.u32 %v579, 16
  %vm585 = vc.u32 %v577, %v581
  %v586 = vsel %vm585, 1, 0
  %v587 = vadd.s32 %v577, %v581
  %v588 = vadd.s32 %v580, %v586
  %vm589 = vc.u32 %v587, %v583
  %v590 = vsel %vm589, 1, 0
  %v591 = vadd.s32 %v587, %v583
  %v592 = vadd.s32 %v588, %v590
  %v593 = vadd.s32 %v592, %v582
  %v594 = vadd.s32 %v593, %v584
  %v595 = vand.u32 %v572, 65535
  %v596 = vshrl.u32 %v572, 16
  %v597 = vand.u32 %v567, 65535
  %v598 = vshrl.u32 %v567, 16
  %v599 = vmul.u32 %v595, %v597
  %v600 = vmul.u32 %v595, %v598
  %v601 = vmul.u32 %v596, %v597
  %v602 = vmul.u32 %v596, %v598
  %v603 = vshll.u32 %v600, 16
  %v604 = vshrl.u32 %v600, 16
  %v605 = vshll.u32 %v601, 16
  %v606 = vshrl.u32 %v601, 16
  %vm607 = vc.u32 %v599, %v603
  %v608 = vsel %vm607, 1, 0
  %v609 = vadd.s32 %v599, %v603
  %v610 = vadd.s32 %v602, %v608
  %vm611 = vc.u32 %v609, %v605
  %v612 = vsel %vm611, 1, 0
  %v613 = vadd.s32 %v609, %v605
  %v614 = vadd.s32 %v610, %v612
  %v615 = vadd.s32 %v614, %v604
  %v616 = vadd.s32 %v615, %v606
  %v617 = vmul.u32 %v572, %v563
  %v618 = vadd.s32 %v594, %v613
  %vm619 = vc.u32 %v594, %v613
  %v620 = vadd.s32 %v616, 1
  %v621 = vsel %vm619, %v620, %v616
  %v622 = vadd.s32 %v617, %v621
  %v623 = vadd.s32 %v622, 536870912
  %v624 = vshrl.u32 %v623, 30
  %v625 = vshll.u32 %v624, 30
  %v626 = vsub.s32 %v622, %v625
  %vm627 = vcmp.lt.s32.totalorder %v626, 0
  %v628 = vsub.s32 0, %v626
  %v629 = vsel %vm627, %v628, %v626
  %v630 = vclz %v629
  %v631 = vsub.s32 %v630, 2
  %vm632 = vcmp.gt.s32.totalorder 0, %v631
  %v633 = vsel %vm632, 0, %v631
  %v634 = vsub.s32 32, %v633
  %v635 = vshll.u32 %v626, %v633
  %v636 = vshrl.u32 %v618, %v634
  %v637 = vor.u32 %v635, %v636
  %v638 = vsub.s32 4294967266, %v633
  %v639 = vadd.s32 %v638, 127
  %v640 = vshll.u32 %v639, 23
  %v641 = vor.u32 4788187, %v640
  %v642 = vand.u32 2147483647, %v641
  %v644 = vcvt.s32.f32 %v637
  %v645 = vmul.f32 %v644, %v642
  %v646 = vxor.u32 %v645, 2147483648
  %v647 = vsel %vm526, %v646, %v645
  %v648 = vsub.s32 4, %v624
  %v649 = vsel %vm526, %v648, %v624
  %v650 = vsel %vm525, %v56, %v647
  %v651 = vsel %vm525, 0, %v649
  %v652 = vmul.f32 %v650, %v650
  %v653 = vmul.f32 %v652, -0.001358992
  %v654 = vadd.f32 %v653, 0.041655596
  %v655 = vmul.f32 %v652, %v654
  %v656 = vadd.f32 %v655, -0.4999988
  %v657 = vmul.f32 %v652, %v656
  %v658 = vadd.f32 1.0, %v657
  %v659 = vmul.f32 %v650, %v650
  %v660 = vmul.f32 %v659, -0.00019511016
  %v661 = vadd.f32 %v660, 0.008332121
  %v662 = vmul.f32 %v659, %v661
  %v663 = vadd.f32 %v662, -0.16666654
  %v664 = vmul.f32 %v659, %v663
  %v665 = vadd.f32 %v664, 1.0
  %v666 = vmul.f32 %v665, %v650
  %vm667 = vweird.f32 %v56
  %v668 = vadd.s32 %v651, 3
  %v669 = vand.u32 %v668, 3
  %vm670 = vcmp.lt.s32.totalorder %v669, 2
  %vm671 = vcmp.eq.s32.totalorder %v669, 0
  %v672 = vxor.u32 %v666, 2147483648
  %v673 = vsel %vm671, %v658, %v672
  %vm674 = vcmp.eq.s32.totalorder %v669, 2
  %v675 = vxor.u32 %v658, 2147483648
  %v676 = vsel %vm674, %v675, %v666
  %v677 = vsel %vm670, %v673, %v676
  %v678 = vsel %vm667, nan, %v677
  %683 = vrot.lane.b32.xlu0 %v57, 112
  %v684 = vpop.permute.xlu0 %683
  %685 = vrot.lane.b32.xlu0 %v58, 112
  %v686 = vpop.permute.xlu0 %685
  %687 = vrot.lane.b32.xlu0 %v59, 112
  %v688 = vpop.permute.xlu0 %687
  %689 = vrot.lane.b32.xlu0 %v60, 112
  %v690 = vpop.permute.xlu0 %689
  %vm691 = vcmask 130048
  %v692 = vsel %vm691, %v684, 0
  %v694 = vsel %vm691, %v686, 0
  %v696 = vsel %vm691, %v688, 0
  %v698 = vsel %vm691, %v690, 0
  %700 = vmatpush.msra.mxu0 0.0
  %701 = vmatpush.msra.mxu0 0.0
  %702 = vmatpush.msra.mxu0 0.0
  %703 = vmatpush.msra.mxu0 0.0
  %704 = vmatpush.msra.mxu0 0.0
  %705 = vmatpush.msra.mxu0 0.0
  %706 = vmatpush.msra.mxu0 0.0
  %707 = vmatpush.msra.mxu0 0.0
  %708 = vmatpush.msra.mxu0 0.0
  %709 = vmatpush.msra.mxu0 0.0
  %710 = vmatpush.msra.mxu0 0.0
  %711 = vmatpush.msra.mxu0 0.0
  %712 = vmatpush.msra.mxu0 0.0
  %713 = vmatpush.msra.mxu0 0.0
  %714 = vmatpush.msra.mxu0 %v678
  %715 = vmatpush.msra.mxu0 %v523
  %716 = vmatmul.f32.gmra.mxu0 %v692
  %v717 = vpop.f32.mrf.mxu0
  %v718 = vadd.f32 0.0, %v717
  %719 = vmatmul.f32.gmra.mxu0 %v694
  %v720 = vpop.f32.mrf.mxu0
  %v721 = vadd.f32 0.0, %v720
  %722 = vmatmul.f32.gmra.mxu0 %v696
  %v723 = vpop.f32.mrf.mxu0
  %v724 = vadd.f32 0.0, %v723
  %725 = vmatmul.f32.gmra.mxu0 %v698
  %v726 = vpop.f32.mrf.mxu0
  %v727 = vadd.f32 0.0, %v726
  %728 = vdwg.mxu0
  %v729 = vsel %vm691, %v57, 0
  %v731 = vsel %vm691, %v58, 0
  %v733 = vsel %vm691, %v59, 0
  %v735 = vsel %vm691, %v60, 0
  %737 = vmatpush.msra.mxu0 0.0
  %738 = vmatpush.msra.mxu0 0.0
  %739 = vmatpush.msra.mxu0 0.0
  %740 = vmatpush.msra.mxu0 0.0
  %741 = vmatpush.msra.mxu0 0.0
  %742 = vmatpush.msra.mxu0 0.0
  %743 = vmatpush.msra.mxu0 0.0
  %744 = vmatpush.msra.mxu0 0.0
  %745 = vmatpush.msra.mxu0 0.0
  %746 = vmatpush.msra.mxu0 0.0
  %747 = vmatpush.msra.mxu0 0.0
  %748 = vmatpush.msra.mxu0 0.0
  %749 = vmatpush.msra.mxu0 0.0
  %750 = vmatpush.msra.mxu0 0.0
  %751 = vmatpush.msra.mxu0 %v368
  %752 = vmatpush.msra.mxu0 %v214
  %753 = vmatmul.f32.gmra.mxu0 %v729
  %v754 = vpop.f32.mrf.mxu0
  %v755 = vadd.f32 %v718, %v754
  %756 = vmatmul.f32.gmra.mxu0 %v731
  %v757 = vpop.f32.mrf.mxu0
  %v758 = vadd.f32 %v721, %v757
  %759 = vmatmul.f32.gmra.mxu0 %v733
  %v760 = vpop.f32.mrf.mxu0
  %v761 = vadd.f32 %v724, %v760
  %762 = vmatmul.f32.gmra.mxu0 %v735
  %v763 = vpop.f32.mrf.mxu0
  %v764 = vadd.f32 %v727, %v763
  %765 = vdwg.mxu0
  %766 = vset.pattern.permute.xlu0 100
  %767 = vperm.xlu0 %766, %v57
  %v768 = vpop.permute.xlu0 %767
  %770 = vset.pattern.permute.xlu0 100
  %771 = vperm.xlu0 %770, %v58
  %v772 = vpop.permute.xlu0 %771
  %774 = vset.pattern.permute.xlu0 100
  %775 = vperm.xlu0 %774, %v59
  %v776 = vpop.permute.xlu0 %775
  %778 = vset.pattern.permute.xlu0 100
  %779 = vperm.xlu0 %778, %v60
  %v780 = vpop.permute.xlu0 %779
  %v782 = vadd.f32 %v755, %v768
  %v783 = vadd.f32 %v758, %v772
  %v784 = vadd.f32 %v761, %v776
  %v785 = vadd.f32 %v764, %v780
  %v786 = vxor.u32 %v782, 2147483648
  %v787 = vxor.u32 %v783, 2147483648
  %v788 = vxor.u32 %v784, 2147483648
  %v789 = vxor.u32 %v785, 2147483648
  %v790 = vmul.f32 %v786, 1.442695
  %v791 = vpow.pop %v790
  %v792 = vmul.f32 %v787, 1.442695
  %v793 = vpow.pop %v792
  %v794 = vmul.f32 %v788, 1.442695
  %v795 = vpow.pop %v794
  %v796 = vmul.f32 %v789, 1.442695
  %v797 = vpow.pop %v796
  %v798 = vadd.f32 %v791, 1.0
  %v799 = vadd.f32 %v793, 1.0
  %v800 = vadd.f32 %v795, 1.0
  %v801 = vadd.f32 %v797, 1.0
  %v802 = vrcp.pop %v798
  %v803 = vmul.f32 %v798, %v802
  %v804 = vsub.f32 1.0, %v803
  %v805 = vmul.f32 %v802, %v804
  %v806 = vadd.f32 %v802, %v805
  %vm807 = vweird.f32 %v798
  %vm808 = vweird.f32 %v802
  %vm809 = vmor %vm807, %vm808
  %v810 = vsel %vm809, %v802, %v806
  %v811 = vand.u32 2147483647, %v798
  %vm812 = vcmp.eq.f32.partialorder %v811, 8.507059e+37
  %v813 = vand.u32 %v798, 2147483648
  %v814 = vor.u32 1.1754944e-38, %v813
  %v815 = vsel %vm812, %v814, %v810
  %v816 = vmul.f32 1.0, %v815
  %v817 = vrcp.pop %v799
  %v818 = vmul.f32 %v799, %v817
  %v819 = vsub.f32 1.0, %v818
  %v820 = vmul.f32 %v817, %v819
  %v821 = vadd.f32 %v817, %v820
  %vm822 = vweird.f32 %v799
  %vm823 = vweird.f32 %v817
  %vm824 = vmor %vm822, %vm823
  %v825 = vsel %vm824, %v817, %v821
  %v826 = vand.u32 2147483647, %v799
  %vm827 = vcmp.eq.f32.partialorder %v826, 8.507059e+37
  %v828 = vand.u32 %v799, 2147483648
  %v829 = vor.u32 1.1754944e-38, %v828
  %v830 = vsel %vm827, %v829, %v825
  %v831 = vmul.f32 1.0, %v830
  %v832 = vrcp.pop %v800
  %v833 = vmul.f32 %v800, %v832
  %v834 = vsub.f32 1.0, %v833
  %v835 = vmul.f32 %v832, %v834
  %v836 = vadd.f32 %v832, %v835
  %vm837 = vweird.f32 %v800
  %vm838 = vweird.f32 %v832
  %vm839 = vmor %vm837, %vm838
  %v840 = vsel %vm839, %v832, %v836
  %v841 = vand.u32 2147483647, %v800
  %vm842 = vcmp.eq.f32.partialorder %v841, 8.507059e+37
  %v843 = vand.u32 %v800, 2147483648
  %v844 = vor.u32 1.1754944e-38, %v843
  %v845 = vsel %vm842, %v844, %v840
  %v846 = vmul.f32 1.0, %v845
  %v847 = vrcp.pop %v801
  %v848 = vmul.f32 %v801, %v847
  %v849 = vsub.f32 1.0, %v848
  %v850 = vmul.f32 %v847, %v849
  %v851 = vadd.f32 %v847, %v850
  %vm852 = vweird.f32 %v801
  %vm853 = vweird.f32 %v847
  %vm854 = vmor %vm852, %vm853
  %v855 = vsel %vm854, %v847, %v851
  %v856 = vand.u32 2147483647, %v801
  %vm857 = vcmp.eq.f32.partialorder %v856, 8.507059e+37
  %v858 = vand.u32 %v801, 2147483648
  %v859 = vor.u32 1.1754944e-38, %v858
  %v860 = vsel %vm857, %v859, %v855
  %v861 = vmul.f32 1.0, %v860
  %v862 = vmul.f32 %v782, %v816
  %v863 = vmul.f32 %v783, %v831
  %v864 = vmul.f32 %v784, %v846
  %v865 = vmul.f32 %v785, %v861
  %866 = vset.pattern.permute.xlu0 101
  %867 = vperm.xlu0 %866, %v57
  %v868 = vpop.permute.xlu0 %867
  %870 = vset.pattern.permute.xlu0 101
  %871 = vperm.xlu0 %870, %v58
  %v872 = vpop.permute.xlu0 %871
  %874 = vset.pattern.permute.xlu0 101
  %875 = vperm.xlu0 %874, %v59
  %v876 = vpop.permute.xlu0 %875
  %878 = vset.pattern.permute.xlu0 101
  %879 = vperm.xlu0 %878, %v60
  %v880 = vpop.permute.xlu0 %879
  %882 = vrot.lane.b32.xlu0 %v57, 96
  %v883 = vpop.permute.xlu0 %882
  %884 = vrot.lane.b32.xlu0 %v58, 96
  %v885 = vpop.permute.xlu0 %884
  %886 = vrot.lane.b32.xlu0 %v59, 96
  %v887 = vpop.permute.xlu0 %886
  %888 = vrot.lane.b32.xlu0 %v60, 96
  %v889 = vpop.permute.xlu0 %888
  %vm890 = vcmask 261120
  %v891 = vsel %vm890, %v883, 0
  %v893 = vsel %vm890, %v885, 0
  %v895 = vsel %vm890, %v887, 0
  %v897 = vsel %vm890, %v889, 0
  %899 = vmatpush.msra.mxu0 0.0
  %900 = vmatpush.msra.mxu0 0.0
  %901 = vmatpush.msra.mxu0 0.0
  %902 = vmatpush.msra.mxu0 0.0
  %903 = vmatpush.msra.mxu0 0.0
  %904 = vmatpush.msra.mxu0 0.0
  %905 = vmatpush.msra.mxu0 0.0
  %906 = vmatpush.msra.mxu0 0.0
  %907 = vmatpush.msra.mxu0 0.0
  %908 = vmatpush.msra.mxu0 0.0
  %909 = vmatpush.msra.mxu0 0.0
  %910 = vmatpush.msra.mxu0 0.0
  %911 = vmatpush.msra.mxu0 %v865
  %912 = vmatpush.msra.mxu0 %v864
  %913 = vmatpush.msra.mxu0 %v863
  %914 = vmatpush.msra.mxu0 %v862
  %915 = vmatmul.f32.gmra.mxu0 %v891
  %v916 = vpop.f32.mrf.mxu0
  %v917 = vadd.f32 %v868, %v916
  %918 = vmatmul.f32.gmra.mxu0 %v893
  %v919 = vpop.f32.mrf.mxu0
  %v920 = vadd.f32 %v872, %v919
  %921 = vmatmul.f32.gmra.mxu0 %v895
  %v922 = vpop.f32.mrf.mxu0
  %v923 = vadd.f32 %v876, %v922
  %924 = vmatmul.f32.gmra.mxu0 %v897
  %v925 = vpop.f32.mrf.mxu0
  %v926 = vadd.f32 %v880, %v925
  %927 = vdwg.mxu0
  %v929 = vperm.slane %v29, 0
  %v930 = vperm.slane %v29, 1
  %v931 = vperm.slane %v29, 2
  %v932 = vperm.slane %v29, 3
  %v933 = vperm.slane %v29, 4
  %v935 = vrot.slane %v930, 4
  %v936 = vrot.slane %v932, 4
  %vm937 = vcmask 1043456
  %v938 = vsel %vm937, %v929, %v935
  %v939 = vsel %vm937, %v931, %v936
  %v942 = vmul.f32 %v20, %v938
  %v943 = vmul.f32 %v21, %v939
  %v944 = vmul.f32 %v22, %v933
  %v946 = vperm.slane %v33, 0
  %v947 = vperm.slane %v33, 1
  %v948 = vperm.slane %v33, 2
  %v949 = vperm.slane %v33, 3
  %v950 = vperm.slane %v33, 4
  %v952 = vrot.slane %v947, 4
  %v953 = vrot.slane %v949, 4
  %v954 = vsel %vm937, %v946, %v952
  %v955 = vsel %vm937, %v948, %v953
  %v958 = vmul.f32 %v20, %v954
  %v959 = vmul.f32 %v21, %v955
  %v960 = vmul.f32 %v22, %v950
  %964 = vst [vmem:[#allocation1] ss:$2 sm:$0xff] %v942
  %s965 = scalar_lea.vmem [#allocation1], 16
  %966 = vst [vmem:[%s965] ss:$2 sm:$0xff] %v943
  %s967 = scalar_lea.vmem [#allocation1], 32
  %968 = vst [vmem:[%s967] ss:$2 sm:$0xff] %v944
  %v969 = vld.sshfl [vmem:[#allocation1] sm:$0xff pattern:$0x75316420]
  %v970 = vld.sshfl [vmem:[#allocation1 + $0x8] sm:$0xff pattern:$0x75316420]
  %v971 = vld.sshfl [vmem:[#allocation1 + $0x10] sm:$0xff pattern:$0x75316420]
  %v972 = vld.sshfl [vmem:[#allocation1 + $0x18] sm:$0xff pattern:$0x75316420]
  %v973 = vld.sshfl [vmem:[#allocation1 + $0x20] sm:$0xff pattern:$0x75316420]
  %979 = vrot.lane.b32.xlu0 %v969, 17
  %v980 = vpop.permute.xlu0 %979
  %981 = vrot.lane.b32.xlu0 %v970, 17
  %v982 = vpop.permute.xlu0 %981
  %983 = vrot.lane.b32.xlu0 %v971, 17
  %v984 = vpop.permute.xlu0 %983
  %985 = vrot.lane.b32.xlu0 %v972, 17
  %v986 = vpop.permute.xlu0 %985
  %987 = vrot.lane.b32.xlu0 %v973, 17
  %v988 = vpop.permute.xlu0 %987
  %v989 = vlaneseq
  %v990 = vand.u32 %v989, 127
  %vm991 = vcmp.lt.s32.totalorder %v990, 17
  %v992 = vsel %vm991, %v986, %v988
  %v993 = vsel %vm991, %v984, %v986
  %v994 = vsel %vm991, %v982, %v984
  %v995 = vsel %vm991, %v980, %v982
  %v996 = vsel %vm991, %v988, %v980
  %997 = vst [vmem:[#allocation3] sm:$0xf] %v996
  %998 = vst [vmem:[#allocation3 + $0x8] sm:$0xf] %v995
  %999 = vst [vmem:[#allocation3 + $0x10] sm:$0xf] %v994
  %1000 = vst [vmem:[#allocation3 + $0x18] sm:$0xf] %v993
  %1001 = vst [vmem:[#allocation3 + $0x20] sm:$0xf] %v992
  %1005 = vst [vmem:[#allocation1] ss:$2 sm:$0xff] %v20
  %s1006 = scalar_lea.vmem [#allocation1], 16
  %1007 = vst [vmem:[%s1006] ss:$2 sm:$0xff] %v21
  %s1008 = scalar_lea.vmem [#allocation1], 32
  %1009 = vst [vmem:[%s1008] ss:$2 sm:$0xff] %v22
  %v1010 = vld.sshfl [vmem:[#allocation1] sm:$0xff pattern:$0x75316420]
  %v1011 = vld.sshfl [vmem:[#allocation1 + $0x8] sm:$0xff pattern:$0x75316420]
  %v1012 = vld.sshfl [vmem:[#allocation1 + $0x10] sm:$0xff pattern:$0x75316420]
  %v1013 = vld.sshfl [vmem:[#allocation1 + $0x18] sm:$0xff pattern:$0x75316420]
  %v1014 = vld.sshfl [vmem:[#allocation1 + $0x20] sm:$0xff pattern:$0x75316420]
  %1020 = vrot.lane.b32.xlu0 %v1010, 16
  %v1021 = vpop.permute.xlu0 %1020
  %1022 = vrot.lane.b32.xlu0 %v1011, 16
  %v1023 = vpop.permute.xlu0 %1022
  %1024 = vrot.lane.b32.xlu0 %v1012, 16
  %v1025 = vpop.permute.xlu0 %1024
  %1026 = vrot.lane.b32.xlu0 %v1013, 16
  %v1027 = vpop.permute.xlu0 %1026
  %1028 = vrot.lane.b32.xlu0 %v1014, 16
  %v1029 = vpop.permute.xlu0 %1028
  %vm1030 = vcmp.lt.s32.totalorder %v990, 16
  %v1031 = vsel %vm1030, %v1027, %v1029
  %v1032 = vsel %vm1030, %v1025, %v1027
  %v1033 = vsel %vm1030, %v1023, %v1025
  %v1034 = vsel %vm1030, %v1021, %v1023
  %v1035 = vsel %vm1030, %v1029, %v1021
  %v1041 = vrot.slane %v1035, 4
  %v1042 = vrot.slane %v1034, 4
  %v1043 = vrot.slane %v1033, 4
  %v1044 = vrot.slane %v1032, 4
  %v1045 = vrot.slane %v1031, 4
  %1051 = vst [vmem:[#allocation3] sm:$0xf0] %v1041
  %1052 = vst [vmem:[#allocation3 + $0x8] sm:$0xf0] %v1042
  %1053 = vst [vmem:[#allocation3 + $0x10] sm:$0xf0] %v1043
  %1054 = vst [vmem:[#allocation3 + $0x18] sm:$0xf0] %v1044
  %1055 = vst [vmem:[#allocation3 + $0x20] sm:$0xf0] %v1045
  %1059 = vst [vmem:[#allocation1] ss:$2 sm:$0xff] %v958
  %s1060 = scalar_lea.vmem [#allocation1], 16
  %1061 = vst [vmem:[%s1060] ss:$2 sm:$0xff] %v959
  %s1062 = scalar_lea.vmem [#allocation1], 32
  %1063 = vst [vmem:[%s1062] ss:$2 sm:$0xff] %v960
  %v1064 = vld.sshfl [vmem:[#allocation1] sm:$0xff pattern:$0x75316420]
  %v1065 = vld.sshfl [vmem:[#allocation1 + $0x8] sm:$0xff pattern:$0x75316420]
  %v1066 = vld.sshfl [vmem:[#allocation1 + $0x10] sm:$0xff pattern:$0x75316420]
  %v1067 = vld.sshfl [vmem:[#allocation1 + $0x18] sm:$0xff pattern:$0x75316420]
  %v1068 = vld.sshfl [vmem:[#allocation1 + $0x20] sm:$0xff pattern:$0x75316420]
  %1074 = vrot.lane.b32.xlu0 %v1064, 15
  %v1075 = vpop.permute.xlu0 %1074
  %1076 = vrot.lane.b32.xlu0 %v1065, 15
  %v1077 = vpop.permute.xlu0 %1076
  %1078 = vrot.lane.b32.xlu0 %v1066, 15
  %v1079 = vpop.permute.xlu0 %1078
  %1080 = vrot.lane.b32.xlu0 %v1067, 15
  %v1081 = vpop.permute.xlu0 %1080
  %1082 = vrot.lane.b32.xlu0 %v1068, 15
  %v1083 = vpop.permute.xlu0 %1082
  %vm1084 = vcmp.lt.s32.totalorder %v990, 15
  %v1085 = vsel %vm1084, %v1081, %v1083
  %v1086 = vsel %vm1084, %v1079, %v1081
  %v1087 = vsel %vm1084, %v1077, %v1079
  %v1088 = vsel %vm1084, %v1075, %v1077
  %v1089 = vsel %vm1084, %v1083, %v1075
  %1090 = vst [vmem:[#allocation3 + $0x28] sm:$0xf] %v1089
  %1091 = vst [vmem:[#allocation3 + $0x30] sm:$0xf] %v1088
  %1092 = vst [vmem:[#allocation3 + $0x38] sm:$0xf] %v1087
  %1093 = vst [vmem:[#allocation3 + $0x40] sm:$0xf] %v1086
  %1094 = vst [vmem:[#allocation3 + $0x48] sm:$0xf] %v1085
  %1095 = vst [vmem:[#allocation1] ss:$2 sm:$0xff] %v942
  %s1096 = scalar_lea.vmem [#allocation1], 16
  %1097 = vst [vmem:[%s1096] ss:$2 sm:$0xff] %v943
  %s1098 = scalar_lea.vmem [#allocation1], 32
  %1099 = vst [vmem:[%s1098] ss:$2 sm:$0xff] %v944
  %v1100 = vld.sshfl [vmem:[#allocation1] sm:$0xff pattern:$0x75316420]
  %v1101 = vld.sshfl [vmem:[#allocation1 + $0x8] sm:$0xff pattern:$0x75316420]
  %v1102 = vld.sshfl [vmem:[#allocation1 + $0x10] sm:$0xff pattern:$0x75316420]
  %v1103 = vld.sshfl [vmem:[#allocation1 + $0x18] sm:$0xff pattern:$0x75316420]
  %v1104 = vld.sshfl [vmem:[#allocation1 + $0x20] sm:$0xff pattern:$0x75316420]
  %1110 = vrot.lane.b32.xlu0 %v1100, 1
  %v1111 = vpop.permute.xlu0 %1110
  %1112 = vrot.lane.b32.xlu0 %v1101, 1
  %v1113 = vpop.permute.xlu0 %1112
  %1114 = vrot.lane.b32.xlu0 %v1102, 1
  %v1115 = vpop.permute.xlu0 %1114
  %1116 = vrot.lane.b32.xlu0 %v1103, 1
  %v1117 = vpop.permute.xlu0 %1116
  %1118 = vrot.lane.b32.xlu0 %v1104, 1
  %v1119 = vpop.permute.xlu0 %1118
  %vm1120 = vcmp.lt.s32.totalorder %v990, 1
  %v1121 = vsel %vm1120, %v1117, %v1119
  %v1122 = vsel %vm1120, %v1115, %v1117
  %v1123 = vsel %vm1120, %v1113, %v1115
  %v1124 = vsel %vm1120, %v1111, %v1113
  %v1125 = vsel %vm1120, %v1119, %v1111
  %v1131 = vrot.slane %v1125, 4
  %v1132 = vrot.slane %v1124, 4
  %v1133 = vrot.slane %v1123, 4
  %v1134 = vrot.slane %v1122, 4
  %v1135 = vrot.slane %v1121, 4
  %1141 = vst [vmem:[#allocation3 + $0x28] sm:$0xf0] %v1131
  %1142 = vst [vmem:[#allocation3 + $0x30] sm:$0xf0] %v1132
  %1143 = vst [vmem:[#allocation3 + $0x38] sm:$0xf0] %v1133
  %1144 = vst [vmem:[#allocation3 + $0x40] sm:$0xf0] %v1134
  %1145 = vst [vmem:[#allocation3 + $0x48] sm:$0xf0] %v1135
  %1146 = vst [vmem:[#allocation1] ss:$2 sm:$0xff] %v20
  %s1147 = scalar_lea.vmem [#allocation1], 16
  %1148 = vst [vmem:[%s1147] ss:$2 sm:$0xff] %v21
  %s1149 = scalar_lea.vmem [#allocation1], 32
  %1150 = vst [vmem:[%s1149] ss:$2 sm:$0xff] %v22
  %v1151 = vld.sshfl [vmem:[#allocation1] sm:$0xff pattern:$0x75316420]
  %v1152 = vld.sshfl [vmem:[#allocation1 + $0x8] sm:$0xff pattern:$0x75316420]
  %v1153 = vld.sshfl [vmem:[#allocation1 + $0x10] sm:$0xff pattern:$0x75316420]
  %v1154 = vld.sshfl [vmem:[#allocation1 + $0x18] sm:$0xff pattern:$0x75316420]
  %v1155 = vld.sshfl [vmem:[#allocation1 + $0x20] sm:$0xff pattern:$0x75316420]
  %1161 = vst [vmem:[#allocation3 + $0x50] sm:$0xf] %v1151
  %1162 = vst [vmem:[#allocation3 + $0x58] sm:$0xf] %v1152
  %1163 = vst [vmem:[#allocation3 + $0x60] sm:$0xf] %v1153
  %1164 = vst [vmem:[#allocation3 + $0x68] sm:$0xf] %v1154
  %1165 = vst [vmem:[#allocation3 + $0x70] sm:$0xf] %v1155
  %1166 = vst [vmem:[#allocation1] ss:$2 sm:$0xff] %v958
  %s1167 = scalar_lea.vmem [#allocation1], 16
  %1168 = vst [vmem:[%s1167] ss:$2 sm:$0xff] %v959
  %s1169 = scalar_lea.vmem [#allocation1], 32
  %1170 = vst [vmem:[%s1169] ss:$2 sm:$0xff] %v960
  %v1171 = vld.sshfl [vmem:[#allocation1] sm:$0xff pattern:$0x75316420]
  %v1172 = vld.sshfl [vmem:[#allocation1 + $0x8] sm:$0xff pattern:$0x75316420]
  %v1173 = vld.sshfl [vmem:[#allocation1 + $0x10] sm:$0xff pattern:$0x75316420]
  %v1174 = vld.sshfl [vmem:[#allocation1 + $0x18] sm:$0xff pattern:$0x75316420]
  %v1175 = vld.sshfl [vmem:[#allocation1 + $0x20] sm:$0xff pattern:$0x75316420]
  %1181 = vrot.lane.b32.xlu0 %v1171, 127
  %v1182 = vpop.permute.xlu0 %1181
  %1183 = vrot.lane.b32.xlu0 %v1172, 127
  %v1184 = vpop.permute.xlu0 %1183
  %1185 = vrot.lane.b32.xlu0 %v1173, 127
  %v1186 = vpop.permute.xlu0 %1185
  %1187 = vrot.lane.b32.xlu0 %v1174, 127
  %v1188 = vpop.permute.xlu0 %1187
  %1189 = vrot.lane.b32.xlu0 %v1175, 127
  %v1190 = vpop.permute.xlu0 %1189
  %vm1191 = vcmp.lt.s32.totalorder %v990, 127
  %v1192 = vsel %vm1191, %v1188, %v1190
  %v1193 = vsel %vm1191, %v1186, %v1188
  %v1194 = vsel %vm1191, %v1184, %v1186
  %v1195 = vsel %vm1191, %v1182, %v1184
  %v1196 = vsel %vm1191, %v1190, %v1182
  %v1202 = vrot.slane %v1195, 4
  %v1203 = vrot.slane %v1194, 4
  %v1204 = vrot.slane %v1193, 4
  %v1205 = vrot.slane %v1192, 4
  %v1206 = vrot.slane %v1196, 4
  %1212 = vst [vmem:[#allocation3 + $0x50] sm:$0xf0] %v1202
  %1213 = vst [vmem:[#allocation3 + $0x58] sm:$0xf0] %v1203
  %1214 = vst [vmem:[#allocation3 + $0x60] sm:$0xf0] %v1204
  %1215 = vst [vmem:[#allocation3 + $0x68] sm:$0xf0] %v1205
  %1216 = vst [vmem:[#allocation3 + $0x70] sm:$0xf0] %v1206
  %1217 = vst [vmem:[#allocation1] ss:$2 sm:$0xff] %v942
  %s1218 = scalar_lea.vmem [#allocation1], 16
  %1219 = vst [vmem:[%s1218] ss:$2 sm:$0xff] %v943
  %s1220 = scalar_lea.vmem [#allocation1], 32
  %1221 = vst [vmem:[%s1220] ss:$2 sm:$0xff] %v944
  %v1222 = vld.sshfl [vmem:[#allocation1] sm:$0xff pattern:$0x75316420]
  %v1223 = vld.sshfl [vmem:[#allocation1 + $0x8] sm:$0xff pattern:$0x75316420]
  %v1224 = vld.sshfl [vmem:[#allocation1 + $0x10] sm:$0xff pattern:$0x75316420]
  %v1225 = vld.sshfl [vmem:[#allocation1 + $0x18] sm:$0xff pattern:$0x75316420]
  %v1226 = vld.sshfl [vmem:[#allocation1 + $0x20] sm:$0xff pattern:$0x75316420]
  %1232 = vrot.lane.b32.xlu0 %v1222, 113
  %v1233 = vpop.permute.xlu0 %1232
  %1234 = vrot.lane.b32.xlu0 %v1223, 113
  %v1235 = vpop.permute.xlu0 %1234
  %1236 = vrot.lane.b32.xlu0 %v1224, 113
  %v1237 = vpop.permute.xlu0 %1236
  %1238 = vrot.lane.b32.xlu0 %v1225, 113
  %v1239 = vpop.permute.xlu0 %1238
  %1240 = vrot.lane.b32.xlu0 %v1226, 113
  %v1241 = vpop.permute.xlu0 %1240
  %vm1242 = vcmp.lt.s32.totalorder %v990, 113
  %v1243 = vsel %vm1242, %v1239, %v1241
  %v1244 = vsel %vm1242, %v1237, %v1239
  %v1245 = vsel %vm1242, %v1235, %v1237
  %v1246 = vsel %vm1242, %v1233, %v1235
  %v1247 = vsel %vm1242, %v1241, %v1233
  %1248 = vst [vmem:[#allocation3 + $0x78] sm:$0xf] %v1246
  %1249 = vst [vmem:[#allocation3 + $0x80] sm:$0xf] %v1245
  %1250 = vst [vmem:[#allocation3 + $0x88] sm:$0xf] %v1244
  %1251 = vst [vmem:[#allocation3 + $0x90] sm:$0xf] %v1243
  %1252 = vst [vmem:[#allocation3 + $0x98] sm:$0xf] %v1247
  %1253 = vst [vmem:[#allocation1] ss:$2 sm:$0xff] %v20
  %s1254 = scalar_lea.vmem [#allocation1], 16
  %1255 = vst [vmem:[%s1254] ss:$2 sm:$0xff] %v21
  %s1256 = scalar_lea.vmem [#allocation1], 32
  %1257 = vst [vmem:[%s1256] ss:$2 sm:$0xff] %v22
  %v1258 = vld.sshfl [vmem:[#allocation1] sm:$0xff pattern:$0x75316420]
  %v1259 = vld.sshfl [vmem:[#allocation1 + $0x8] sm:$0xff pattern:$0x75316420]
  %v1260 = vld.sshfl [vmem:[#allocation1 + $0x10] sm:$0xff pattern:$0x75316420]
  %v1261 = vld.sshfl [vmem:[#allocation1 + $0x18] sm:$0xff pattern:$0x75316420]
  %v1262 = vld.sshfl [vmem:[#allocation1 + $0x20] sm:$0xff pattern:$0x75316420]
  %1268 = vrot.lane.b32.xlu0 %v1258, 112
  %v1269 = vpop.permute.xlu0 %1268
  %1270 = vrot.lane.b32.xlu0 %v1259, 112
  %v1271 = vpop.permute.xlu0 %1270
  %1272 = vrot.lane.b32.xlu0 %v1260, 112
  %v1273 = vpop.permute.xlu0 %1272
  %1274 = vrot.lane.b32.xlu0 %v1261, 112
  %v1275 = vpop.permute.xlu0 %1274
  %1276 = vrot.lane.b32.xlu0 %v1262, 112
  %v1277 = vpop.permute.xlu0 %1276
  %vm1278 = vcmp.lt.s32.totalorder %v990, 112
  %v1279 = vsel %vm1278, %v1275, %v1277
  %v1280 = vsel %vm1278, %v1273, %v1275
  %v1281 = vsel %vm1278, %v1271, %v1273
  %v1282 = vsel %vm1278, %v1269, %v1271
  %v1283 = vsel %vm1278, %v1277, %v1269
  %v1289 = vrot.slane %v1282, 4
  %v1290 = vrot.slane %v1281, 4
  %v1291 = vrot.slane %v1280, 4
  %v1292 = vrot.slane %v1279, 4
  %v1293 = vrot.slane %v1283, 4
  %1299 = vst [vmem:[#allocation3 + $0x78] sm:$0xf0] %v1289
  %1300 = vst [vmem:[#allocation3 + $0x80] sm:$0xf0] %v1290
  %1301 = vst [vmem:[#allocation3 + $0x88] sm:$0xf0] %v1291
  %1302 = vst [vmem:[#allocation3 + $0x90] sm:$0xf0] %v1292
  %1303 = vst [vmem:[#allocation3 + $0x98] sm:$0xf0] %v1293
  %1304 = vst [vmem:[#allocation1] ss:$2 sm:$0xff] %v958
  %s1305 = scalar_lea.vmem [#allocation1], 16
  %1306 = vst [vmem:[%s1305] ss:$2 sm:$0xff] %v959
  %s1307 = scalar_lea.vmem [#allocation1], 32
  %1308 = vst [vmem:[%s1307] ss:$2 sm:$0xff] %v960
  %v1309 = vld.sshfl [vmem:[#allocation1] sm:$0xff pattern:$0x75316420]
  %v1310 = vld.sshfl [vmem:[#allocation1 + $0x8] sm:$0xff pattern:$0x75316420]
  %v1311 = vld.sshfl [vmem:[#allocation1 + $0x10] sm:$0xff pattern:$0x75316420]
  %v1312 = vld.sshfl [vmem:[#allocation1 + $0x18] sm:$0xff pattern:$0x75316420]
  %v1313 = vld.sshfl [vmem:[#allocation1 + $0x20] sm:$0xff pattern:$0x75316420]
  %1319 = vrot.lane.b32.xlu0 %v1309, 111
  %v1320 = vpop.permute.xlu0 %1319
  %1321 = vrot.lane.b32.xlu0 %v1310, 111
  %v1322 = vpop.permute.xlu0 %1321
  %1323 = vrot.lane.b32.xlu0 %v1311, 111
  %v1324 = vpop.permute.xlu0 %1323
  %1325 = vrot.lane.b32.xlu0 %v1312, 111
  %v1326 = vpop.permute.xlu0 %1325
  %1327 = vrot.lane.b32.xlu0 %v1313, 111
  %v1328 = vpop.permute.xlu0 %1327
  %vm1329 = vcmp.lt.s32.totalorder %v990, 111
  %v1330 = vsel %vm1329, %v1326, %v1328
  %v1331 = vsel %vm1329, %v1324, %v1326
  %v1332 = vsel %vm1329, %v1322, %v1324
  %v1333 = vsel %vm1329, %v1320, %v1322
  %v1334 = vsel %vm1329, %v1328, %v1320
  %1335 = vst [vmem:[#allocation3 + $0xa0] sm:$0xf] %v1333
  %1336 = vst [vmem:[#allocation3 + $0xa8] sm:$0xf] %v1332
  %1337 = vst [vmem:[#allocation3 + $0xb0] sm:$0xf] %v1331
  %1338 = vst [vmem:[#allocation3 + $0xb8] sm:$0xf] %v1330
  %1339 = vst [vmem:[#allocation3 + $0xc0] sm:$0xf] %v1334
  %v1345 = vrot.slane %v34, 7
  %v1346 = vrot.slane %v35, 7
  %v1347 = vrot.slane %v36, 7
  %v1348 = vrot.slane %v37, 7
  %v1349 = vrot.slane %v38, 7
  %1355 = vst [vmem:[#allocation3 + $0xa0] sm:$0x30] %v1345
  %1356 = vst [vmem:[#allocation3 + $0xa8] sm:$0x30] %v1346
  %1357 = vst [vmem:[#allocation3 + $0xb0] sm:$0x30] %v1347
  %1358 = vst [vmem:[#allocation3 + $0xb8] sm:$0x30] %v1348
  %1359 = vst [vmem:[#allocation3 + $0xc0] sm:$0x30] %v1349
  %v1360 = vld [vmem:[%s3] sm:$0xff]
  %v1361 = vld [vmem:[%s3 + $0x8] sm:$0xff]
  %v1362 = vld [vmem:[%s3 + $0x10] sm:$0xff]
  %v1363 = vld [vmem:[%s3 + $0x18] sm:$0xff]
  %1368 = vrot.lane.b32.xlu0 %v1360, 64
  %v1369 = vpop.permute.xlu0 %1368
  %1370 = vrot.lane.b32.xlu0 %v1361, 64
  %v1371 = vpop.permute.xlu0 %1370
  %1372 = vrot.lane.b32.xlu0 %v1362, 64
  %v1373 = vpop.permute.xlu0 %1372
  %1374 = vrot.lane.b32.xlu0 %v1363, 64
  %v1375 = vpop.permute.xlu0 %1374
  %vm1380 = vcmask 293888
  %1381 = vst.msk [vmem:[#allocation2] sm:$0xff] %vm1380, %v1369
  %1382 = vst.msk [vmem:[#allocation2 + $0x8] sm:$0xff] %vm1380, %v1371
  %1383 = vst.msk [vmem:[#allocation2 + $0x10] sm:$0xff] %vm1380, %v1373
  %1384 = vst.msk [vmem:[#allocation2 + $0x18] sm:$0xff] %vm1380, %v1375
  %1385 = vset.pattern.permute.xlu0 102
  %1386 = vperm.xlu0 %1385, %v1360
  %v1387 = vpop.permute.xlu0 %1386
  %1389 = vset.pattern.permute.xlu0 102
  %1390 = vperm.xlu0 %1389, %v1361
  %v1391 = vpop.permute.xlu0 %1390
  %1393 = vset.pattern.permute.xlu0 102
  %1394 = vperm.xlu0 %1393, %v1362
  %v1395 = vpop.permute.xlu0 %1394
  %1397 = vset.pattern.permute.xlu0 102
  %1398 = vperm.xlu0 %1397, %v1363
  %v1399 = vpop.permute.xlu0 %1398
  %v1401 = vadd.f32 %v917, %v1387
  %v1402 = vadd.f32 %v920, %v1391
  %v1403 = vadd.f32 %v923, %v1395
  %v1404 = vadd.f32 %v926, %v1399
  %1409 = vrot.lane.b32.xlu0 %v1401, 36
  %v1410 = vpop.permute.xlu0 %1409
  %1411 = vrot.lane.b32.xlu0 %v1402, 36
  %v1412 = vpop.permute.xlu0 %1411
  %1413 = vrot.lane.b32.xlu0 %v1403, 36
  %v1414 = vpop.permute.xlu0 %1413
  %1415 = vrot.lane.b32.xlu0 %v1404, 36
  %v1416 = vpop.permute.xlu0 %1415
  %vm1421 = vcmask 310560
  %1422 = vst.msk [vmem:[#allocation2] sm:$0xff] %vm1421, %v1410
  %1423 = vst.msk [vmem:[#allocation2 + $0x8] sm:$0xff] %vm1421, %v1412
  %1424 = vst.msk [vmem:[#allocation2 + $0x10] sm:$0xff] %vm1421, %v1414
  %1425 = vst.msk [vmem:[#allocation2 + $0x18] sm:$0xff] %vm1421, %v1416
  %v1426 = vld [vmem:[#allocation2] sm:$0xff]
  %v1427 = vld [vmem:[#allocation2 + $0x8] sm:$0xff]
  %v1428 = vld [vmem:[#allocation2 + $0x10] sm:$0xff]
  %v1429 = vld [vmem:[#allocation2 + $0x18] sm:$0xff]
  %v1430 = vld [vmem:[#allocation3] sm:$0xff]
  %v1431 = vld [vmem:[#allocation3 + $0x8] sm:$0xff]
  %v1432 = vld [vmem:[#allocation3 + $0x10] sm:$0xff]
  %v1433 = vld [vmem:[#allocation3 + $0x18] sm:$0xff]
  %v1434 = vld [vmem:[#allocation3 + $0x20] sm:$0xff]
  %v1435 = vld [vmem:[#allocation3 + $0x28] sm:$0xff]
  %v1436 = vld [vmem:[#allocation3 + $0x30] sm:$0xff]
  %v1437 = vld [vmem:[#allocation3 + $0x38] sm:$0xff]
  %v1438 = vld [vmem:[#allocation3 + $0x40] sm:$0xff]
  %v1439 = vld [vmem:[#allocation3 + $0x48] sm:$0xff]
  %v1440 = vld [vmem:[#allocation3 + $0x50] sm:$0xff]
  %v1441 = vld [vmem:[#allocation3 + $0x58] sm:$0xff]
  %v1442 = vld [vmem:[#allocation3 + $0x60] sm:$0xff]
  %v1443 = vld [vmem:[#allocation3 + $0x68] sm:$0xff]
  %v1444 = vld [vmem:[#allocation3 + $0x70] sm:$0xff]
  %v1445 = vld [vmem:[#allocation3 + $0x78] sm:$0xff]
  %v1446 = vld [vmem:[#allocation3 + $0x80] sm:$0xff]
  %v1447 = vld [vmem:[#allocation3 + $0x88] sm:$0xff]
  %v1448 = vld [vmem:[#allocation3 + $0x90] sm:$0xff]
  %v1449 = vld [vmem:[#allocation3 + $0x98] sm:$0xff]
  %v1450 = vld [vmem:[#allocation3 + $0xa0] sm:$0x3f]
  %v1451 = vld [vmem:[#allocation3 + $0xa8] sm:$0x3f]
  %v1452 = vld [vmem:[#allocation3 + $0xb0] sm:$0x3f]
  %v1453 = vld [vmem:[#allocation3 + $0xb8] sm:$0x3f]
  %v1454 = vld [vmem:[#allocation3 + $0xc0] sm:$0x3f]
  %vm1455 = vcmask 310272
  %v1457 = vsel %vm1455, %v1426, 0
  %v1460 = vsel %vm1455, %v1427, 0
  %v1463 = vsel %vm1455, %v1428, 0
  %v1466 = vsel %vm1455, %v1429, 0
  %vm1468 = vcmask 1045504
  %v1470 = vsel %vm1468, %v1450, 0
  %v1473 = vsel %vm1468, %v1451, 0
  %v1476 = vsel %vm1468, %v1452, 0
  %v1479 = vsel %vm1468, %v1453, 0
  %v1482 = vsel %vm1468, %v1454, 0
  %1484 = vmatpush.msra.mxu0 0.0
  %1485 = vmatpush.msra.mxu0 0.0
  %1486 = vmatpush.msra.mxu0 0.0
  %1487 = vmatpush.msra.mxu0 0.0
  %1488 = vmatpush.msra.mxu0 0.0
  %1489 = vmatpush.msra.mxu0 0.0
  %1490 = vmatpush.msra.mxu0 0.0
  %1491 = vmatpush.msra.mxu0 0.0
  %1492 = vmatpush.msra.mxu0 0.0
  %1493 = vmatpush.msra.mxu0 0.0
  %1494 = vmatpush.msra.mxu0 0.0
  %1495 = vmatpush.msra.mxu0 %v1470
  %1496 = vmatpush.msra.mxu0 %v1445
  %1497 = vmatpush.msra.mxu0 %v1440
  %1498 = vmatpush.msra.mxu0 %v1435
  %1499 = vmatpush.msra.mxu0 %v1430
  %1500 = vmatmul.f32.gmra.mxu0 %v1457
  %v1501 = vpop.f32.mrf.mxu0
  %v1502 = vadd.f32 0.0, %v1501
  %1503 = vmatmul.f32.gmra.mxu0 %v1460
  %v1504 = vpop.f32.mrf.mxu0
  %v1505 = vadd.f32 0.0, %v1504
  %1506 = vmatmul.f32.gmra.mxu0 %v1463
  %v1507 = vpop.f32.mrf.mxu0
  %v1508 = vadd.f32 0.0, %v1507
  %1509 = vmatmul.f32.gmra.mxu0 %v1466
  %v1510 = vpop.f32.mrf.mxu0
  %v1511 = vadd.f32 0.0, %v1510
  %1512 = vdwg.mxu0
  %1513 = vmatpush.msra.mxu0 0.0
  %1514 = vmatpush.msra.mxu0 0.0
  %1515 = vmatpush.msra.mxu0 0.0
  %1516 = vmatpush.msra.mxu0 0.0
  %1517 = vmatpush.msra.mxu0 0.0
  %1518 = vmatpush.msra.mxu0 0.0
  %1519 = vmatpush.msra.mxu0 0.0
  %1520 = vmatpush.msra.mxu0 0.0
  %1521 = vmatpush.msra.mxu0 0.0
  %1522 = vmatpush.msra.mxu0 0.0
  %1523 = vmatpush.msra.mxu0 0.0
  %1524 = vmatpush.msra.mxu0 %v1473
  %1525 = vmatpush.msra.mxu0 %v1446
  %1526 = vmatpush.msra.mxu0 %v1441
  %1527 = vmatpush.msra.mxu0 %v1436
  %1528 = vmatpush.msra.mxu0 %v1431
  %1529 = vmatmul.f32.gmra.mxu0 %v1457
  %v1530 = vpop.f32.mrf.mxu0
  %v1531 = vadd.f32 0.0, %v1530
  %1532 = vmatmul.f32.gmra.mxu0 %v1460
  %v1533 = vpop.f32.mrf.mxu0
  %v1534 = vadd.f32 0.0, %v1533
  %1535 = vmatmul.f32.gmra.mxu0 %v1463
  %v1536 = vpop.f32.mrf.mxu0
  %v1537 = vadd.f32 0.0, %v1536
  %1538 = vmatmul.f32.gmra.mxu0 %v1466
  %v1539 = vpop.f32.mrf.mxu0
  %v1540 = vadd.f32 0.0, %v1539
  %1541 = vdwg.mxu0
  %1542 = vmatpush.msra.mxu0 0.0
  %1543 = vmatpush.msra.mxu0 0.0
  %1544 = vmatpush.msra.mxu0 0.0
  %1545 = vmatpush.msra.mxu0 0.0
  %1546 = vmatpush.msra.mxu0 0.0
  %1547 = vmatpush.msra.mxu0 0.0
  %1548 = vmatpush.msra.mxu0 0.0
  %1549 = vmatpush.msra.mxu0 0.0
  %1550 = vmatpush.msra.mxu0 0.0
  %1551 = vmatpush.msra.mxu0 0.0
  %1552 = vmatpush.msra.mxu0 0.0
  %1553 = vmatpush.msra.mxu0 %v1476
  %1554 = vmatpush.msra.mxu0 %v1447
  %1555 = vmatpush.msra.mxu0 %v1442
  %1556 = vmatpush.msra.mxu0 %v1437
  %1557 = vmatpush.msra.mxu0 %v1432
  %1558 = vmatmul.f32.gmra.mxu0 %v1457
  %v1559 = vpop.f32.mrf.mxu0
  %v1560 = vadd.f32 0.0, %v1559
  %1561 = vmatmul.f32.gmra.mxu0 %v1460
  %v1562 = vpop.f32.mrf.mxu0
  %v1563 = vadd.f32 0.0, %v1562
  %1564 = vmatmul.f32.gmra.mxu0 %v1463
  %v1565 = vpop.f32.mrf.mxu0
  %v1566 = vadd.f32 0.0, %v1565
  %1567 = vmatmul.f32.gmra.mxu0 %v1466
  %v1568 = vpop.f32.mrf.mxu0
  %v1569 = vadd.f32 0.0, %v1568
  %1570 = vdwg.mxu0
  %1571 = vmatpush.msra.mxu0 0.0
  %1572 = vmatpush.msra.mxu0 0.0
  %1573 = vmatpush.msra.mxu0 0.0
  %1574 = vmatpush.msra.mxu0 0.0
  %1575 = vmatpush.msra.mxu0 0.0
  %1576 = vmatpush.msra.mxu0 0.0
  %1577 = vmatpush.msra.mxu0 0.0
  %1578 = vmatpush.msra.mxu0 0.0
  %1579 = vmatpush.msra.mxu0 0.0
  %1580 = vmatpush.msra.mxu0 0.0
  %1581 = vmatpush.msra.mxu0 0.0
  %1582 = vmatpush.msra.mxu0 %v1479
  %1583 = vmatpush.msra.mxu0 %v1448
  %1584 = vmatpush.msra.mxu0 %v1443
  %1585 = vmatpush.msra.mxu0 %v1438
  %1586 = vmatpush.msra.mxu0 %v1433
  %1587 = vmatmul.f32.gmra.mxu0 %v1457
  %v1588 = vpop.f32.mrf.mxu0
  %v1589 = vadd.f32 0.0, %v1588
  %1590 = vmatmul.f32.gmra.mxu0 %v1460
  %v1591 = vpop.f32.mrf.mxu0
  %v1592 = vadd.f32 0.0, %v1591
  %1593 = vmatmul.f32.gmra.mxu0 %v1463
  %v1594 = vpop.f32.mrf.mxu0
  %v1595 = vadd.f32 0.0, %v1594
  %1596 = vmatmul.f32.gmra.mxu0 %v1466
  %v1597 = vpop.f32.mrf.mxu0
  %v1598 = vadd.f32 0.0, %v1597
  %1599 = vdwg.mxu0
  %1600 = vmatpush.msra.mxu0 0.0
  %1601 = vmatpush.msra.mxu0 0.0
  %1602 = vmatpush.msra.mxu0 0.0
  %1603 = vmatpush.msra.mxu0 0.0
  %1604 = vmatpush.msra.mxu0 0.0
  %1605 = vmatpush.msra.mxu0 0.0
  %1606 = vmatpush.msra.mxu0 0.0
  %1607 = vmatpush.msra.mxu0 0.0
  %1608 = vmatpush.msra.mxu0 0.0
  %1609 = vmatpush.msra.mxu0 0.0
  %1610 = vmatpush.msra.mxu0 0.0
  %1611 = vmatpush.msra.mxu0 %v1482
  %1612 = vmatpush.msra.mxu0 %v1449
  %1613 = vmatpush.msra.mxu0 %v1444
  %1614 = vmatpush.msra.mxu0 %v1439
  %1615 = vmatpush.msra.mxu0 %v1434
  %1616 = vmatmul.f32.gmra.mxu0 %v1457
  %v1617 = vpop.f32.mrf.mxu0
  %v1618 = vadd.f32 0.0, %v1617
  %1619 = vmatmul.f32.gmra.mxu0 %v1460
  %v1620 = vpop.f32.mrf.mxu0
  %v1621 = vadd.f32 0.0, %v1620
  %1622 = vmatmul.f32.gmra.mxu0 %v1463
  %v1623 = vpop.f32.mrf.mxu0
  %v1624 = vadd.f32 0.0, %v1623
  %1625 = vmatmul.f32.gmra.mxu0 %v1466
  %v1626 = vpop.f32.mrf.mxu0
  %v1627 = vadd.f32 0.0, %v1626
  %1628 = vdwg.mxu0
  %v1629 = vxor.u32 %v1502, 2147483648
  %v1630 = vxor.u32 %v1531, 2147483648
  %v1631 = vxor.u32 %v1560, 2147483648
  %v1632 = vxor.u32 %v1589, 2147483648
  %v1633 = vxor.u32 %v1618, 2147483648
  %v1634 = vxor.u32 %v1505, 2147483648
  %v1635 = vxor.u32 %v1534, 2147483648
  %v1636 = vxor.u32 %v1563, 2147483648
  %v1637 = vxor.u32 %v1592, 2147483648
  %v1638 = vxor.u32 %v1621, 2147483648
  %v1639 = vxor.u32 %v1508, 2147483648
  %v1640 = vxor.u32 %v1537, 2147483648
  %v1641 = vxor.u32 %v1566, 2147483648
  %v1642 = vxor.u32 %v1595, 2147483648
  %v1643 = vxor.u32 %v1624, 2147483648
  %v1644 = vxor.u32 %v1511, 2147483648
  %v1645 = vxor.u32 %v1540, 2147483648
  %v1646 = vxor.u32 %v1569, 2147483648
  %v1647 = vxor.u32 %v1598, 2147483648
  %v1648 = vxor.u32 %v1627, 2147483648
  %v1649 = vmul.f32 %v1629, 1.442695
  %v1650 = vpow.pop %v1649
  %v1651 = vmul.f32 %v1630, 1.442695
  %v1652 = vpow.pop %v1651
  %v1653 = vmul.f32 %v1631, 1.442695
  %v1654 = vpow.pop %v1653
  %v1655 = vmul.f32 %v1632, 1.442695
  %v1656 = vpow.pop %v1655
  %v1657 = vmul.f32 %v1633, 1.442695
  %v1658 = vpow.pop %v1657
  %v1659 = vmul.f32 %v1634, 1.442695
  %v1660 = vpow.pop %v1659
  %v1661 = vmul.f32 %v1635, 1.442695
  %v1662 = vpow.pop %v1661
  %v1663 = vmul.f32 %v1636, 1.442695
  %v1664 = vpow.pop %v1663
  %v1665 = vmul.f32 %v1637, 1.442695
  %v1666 = vpow.pop %v1665
  %v1667 = vmul.f32 %v1638, 1.442695
  %v1668 = vpow.pop %v1667
  %v1669 = vmul.f32 %v1639, 1.442695
  %v1670 = vpow.pop %v1669
  %v1671 = vmul.f32 %v1640, 1.442695
  %v1672 = vpow.pop %v1671
  %v1673 = vmul.f32 %v1641, 1.442695
  %v1674 = vpow.pop %v1673
  %v1675 = vmul.f32 %v1642, 1.442695
  %v1676 = vpow.pop %v1675
  %v1677 = vmul.f32 %v1643, 1.442695
  %v1678 = vpow.pop %v1677
  %v1679 = vmul.f32 %v1644, 1.442695
  %v1680 = vpow.pop %v1679
  %v1681 = vmul.f32 %v1645, 1.442695
  %v1682 = vpow.pop %v1681
  %v1683 = vmul.f32 %v1646, 1.442695
  %v1684 = vpow.pop %v1683
  %v1685 = vmul.f32 %v1647, 1.442695
  %v1686 = vpow.pop %v1685
  %v1687 = vmul.f32 %v1648, 1.442695
  %v1688 = vpow.pop %v1687
  %v1689 = vadd.f32 %v1650, 1.0
  %v1690 = vadd.f32 %v1652, 1.0
  %v1691 = vadd.f32 %v1654, 1.0
  %v1692 = vadd.f32 %v1656, 1.0
  %v1693 = vadd.f32 %v1658, 1.0
  %v1694 = vadd.f32 %v1660, 1.0
  %v1695 = vadd.f32 %v1662, 1.0
  %v1696 = vadd.f32 %v1664, 1.0
  %v1697 = vadd.f32 %v1666, 1.0
  %v1698 = vadd.f32 %v1668, 1.0
  %v1699 = vadd.f32 %v1670, 1.0
  %v1700 = vadd.f32 %v1672, 1.0
  %v1701 = vadd.f32 %v1674, 1.0
  %v1702 = vadd.f32 %v1676, 1.0
  %v1703 = vadd.f32 %v1678, 1.0
  %v1704 = vadd.f32 %v1680, 1.0
  %v1705 = vadd.f32 %v1682, 1.0
  %v1706 = vadd.f32 %v1684, 1.0
  %v1707 = vadd.f32 %v1686, 1.0
  %v1708 = vadd.f32 %v1688, 1.0
  %v1709 = vrcp.pop %v1689
  %v1710 = vmul.f32 %v1689, %v1709
  %v1711 = vsub.f32 1.0, %v1710
  %v1712 = vmul.f32 %v1709, %v1711
  %v1713 = vadd.f32 %v1709, %v1712
  %vm1714 = vweird.f32 %v1689
  %vm1715 = vweird.f32 %v1709
  %vm1716 = vmor %vm1714, %vm1715
  %v1717 = vsel %vm1716, %v1709, %v1713
  %v1718 = vand.u32 2147483647, %v1689
  %vm1719 = vcmp.eq.f32.partialorder %v1718, 8.507059e+37
  %v1720 = vand.u32 %v1689, 2147483648
  %v1721 = vor.u32 1.1754944e-38, %v1720
  %v1722 = vsel %vm1719, %v1721, %v1717
  %v1723 = vmul.f32 1.0, %v1722
  %v1724 = vrcp.pop %v1690
  %v1725 = vmul.f32 %v1690, %v1724
  %v1726 = vsub.f32 1.0, %v1725
  %v1727 = vmul.f32 %v1724, %v1726
  %v1728 = vadd.f32 %v1724, %v1727
  %vm1729 = vweird.f32 %v1690
  %vm1730 = vweird.f32 %v1724
  %vm1731 = vmor %vm1729, %vm1730
  %v1732 = vsel %vm1731, %v1724, %v1728
  %v1733 = vand.u32 2147483647, %v1690
  %vm1734 = vcmp.eq.f32.partialorder %v1733, 8.507059e+37
  %v1735 = vand.u32 %v1690, 2147483648
  %v1736 = vor.u32 1.1754944e-38, %v1735
  %v1737 = vsel %vm1734, %v1736, %v1732
  %v1738 = vmul.f32 1.0, %v1737
  %v1739 = vrcp.pop %v1691
  %v1740 = vmul.f32 %v1691, %v1739
  %v1741 = vsub.f32 1.0, %v1740
  %v1742 = vmul.f32 %v1739, %v1741
  %v1743 = vadd.f32 %v1739, %v1742
  %vm1744 = vweird.f32 %v1691
  %vm1745 = vweird.f32 %v1739
  %vm1746 = vmor %vm1744, %vm1745
  %v1747 = vsel %vm1746, %v1739, %v1743
  %v1748 = vand.u32 2147483647, %v1691
  %vm1749 = vcmp.eq.f32.partialorder %v1748, 8.507059e+37
  %v1750 = vand.u32 %v1691, 2147483648
  %v1751 = vor.u32 1.1754944e-38, %v1750
  %v1752 = vsel %vm1749, %v1751, %v1747
  %v1753 = vmul.f32 1.0, %v1752
  %v1754 = vrcp.pop %v1692
  %v1755 = vmul.f32 %v1692, %v1754
  %v1756 = vsub.f32 1.0, %v1755
  %v1757 = vmul.f32 %v1754, %v1756
  %v1758 = vadd.f32 %v1754, %v1757
  %vm1759 = vweird.f32 %v1692
  %vm1760 = vweird.f32 %v1754
  %vm1761 = vmor %vm1759, %vm1760
  %v1762 = vsel %vm1761, %v1754, %v1758
  %v1763 = vand.u32 2147483647, %v1692
  %vm1764 = vcmp.eq.f32.partialorder %v1763, 8.507059e+37
  %v1765 = vand.u32 %v1692, 2147483648
  %v1766 = vor.u32 1.1754944e-38, %v1765
  %v1767 = vsel %vm1764, %v1766, %v1762
  %v1768 = vmul.f32 1.0, %v1767
  %v1769 = vrcp.pop %v1693
  %v1770 = vmul.f32 %v1693, %v1769
  %v1771 = vsub.f32 1.0, %v1770
  %v1772 = vmul.f32 %v1769, %v1771
  %v1773 = vadd.f32 %v1769, %v1772
  %vm1774 = vweird.f32 %v1693
  %vm1775 = vweird.f32 %v1769
  %vm1776 = vmor %vm1774, %vm1775
  %v1777 = vsel %vm1776, %v1769, %v1773
  %v1778 = vand.u32 2147483647, %v1693
  %vm1779 = vcmp.eq.f32.partialorder %v1778, 8.507059e+37
  %v1780 = vand.u32 %v1693, 2147483648
  %v1781 = vor.u32 1.1754944e-38, %v1780
  %v1782 = vsel %vm1779, %v1781, %v1777
  %v1783 = vmul.f32 1.0, %v1782
  %v1784 = vrcp.pop %v1694
  %v1785 = vmul.f32 %v1694, %v1784
  %v1786 = vsub.f32 1.0, %v1785
  %v1787 = vmul.f32 %v1784, %v1786
  %v1788 = vadd.f32 %v1784, %v1787
  %vm1789 = vweird.f32 %v1694
  %vm1790 = vweird.f32 %v1784
  %vm1791 = vmor %vm1789, %vm1790
  %v1792 = vsel %vm1791, %v1784, %v1788
  %v1793 = vand.u32 2147483647, %v1694
  %vm1794 = vcmp.eq.f32.partialorder %v1793, 8.507059e+37
  %v1795 = vand.u32 %v1694, 2147483648
  %v1796 = vor.u32 1.1754944e-38, %v1795
  %v1797 = vsel %vm1794, %v1796, %v1792
  %v1798 = vmul.f32 1.0, %v1797
  %v1799 = vrcp.pop %v1695
  %v1800 = vmul.f32 %v1695, %v1799
  %v1801 = vsub.f32 1.0, %v1800
  %v1802 = vmul.f32 %v1799, %v1801
  %v1803 = vadd.f32 %v1799, %v1802
  %vm1804 = vweird.f32 %v1695
  %vm1805 = vweird.f32 %v1799
  %vm1806 = vmor %vm1804, %vm1805
  %v1807 = vsel %vm1806, %v1799, %v1803
  %v1808 = vand.u32 2147483647, %v1695
  %vm1809 = vcmp.eq.f32.partialorder %v1808, 8.507059e+37
  %v1810 = vand.u32 %v1695, 2147483648
  %v1811 = vor.u32 1.1754944e-38, %v1810
  %v1812 = vsel %vm1809, %v1811, %v1807
  %v1813 = vmul.f32 1.0, %v1812
  %v1814 = vrcp.pop %v1696
  %v1815 = vmul.f32 %v1696, %v1814
  %v1816 = vsub.f32 1.0, %v1815
  %v1817 = vmul.f32 %v1814, %v1816
  %v1818 = vadd.f32 %v1814, %v1817
  %vm1819 = vweird.f32 %v1696
  %vm1820 = vweird.f32 %v1814
  %vm1821 = vmor %vm1819, %vm1820
  %v1822 = vsel %vm1821, %v1814, %v1818
  %v1823 = vand.u32 2147483647, %v1696
  %vm1824 = vcmp.eq.f32.partialorder %v1823, 8.507059e+37
  %v1825 = vand.u32 %v1696, 2147483648
  %v1826 = vor.u32 1.1754944e-38, %v1825
  %v1827 = vsel %vm1824, %v1826, %v1822
  %v1828 = vmul.f32 1.0, %v1827
  %v1829 = vrcp.pop %v1697
  %v1830 = vmul.f32 %v1697, %v1829
  %v1831 = vsub.f32 1.0, %v1830
  %v1832 = vmul.f32 %v1829, %v1831
  %v1833 = vadd.f32 %v1829, %v1832
  %vm1834 = vweird.f32 %v1697
  %vm1835 = vweird.f32 %v1829
  %vm1836 = vmor %vm1834, %vm1835
  %v1837 = vsel %vm1836, %v1829, %v1833
  %v1838 = vand.u32 2147483647, %v1697
  %vm1839 = vcmp.eq.f32.partialorder %v1838, 8.507059e+37
  %v1840 = vand.u32 %v1697, 2147483648
  %v1841 = vor.u32 1.1754944e-38, %v1840
  %v1842 = vsel %vm1839, %v1841, %v1837
  %v1843 = vmul.f32 1.0, %v1842
  %v1844 = vrcp.pop %v1698
  %v1845 = vmul.f32 %v1698, %v1844
  %v1846 = vsub.f32 1.0, %v1845
  %v1847 = vmul.f32 %v1844, %v1846
  %v1848 = vadd.f32 %v1844, %v1847
  %vm1849 = vweird.f32 %v1698
  %vm1850 = vweird.f32 %v1844
  %vm1851 = vmor %vm1849, %vm1850
  %v1852 = vsel %vm1851, %v1844, %v1848
  %v1853 = vand.u32 2147483647, %v1698
  %vm1854 = vcmp.eq.f32.partialorder %v1853, 8.507059e+37
  %v1855 = vand.u32 %v1698, 2147483648
  %v1856 = vor.u32 1.1754944e-38, %v1855
  %v1857 = vsel %vm1854, %v1856, %v1852
  %v1858 = vmul.f32 1.0, %v1857
  %v1859 = vrcp.pop %v1699
  %v1860 = vmul.f32 %v1699, %v1859
  %v1861 = vsub.f32 1.0, %v1860
  %v1862 = vmul.f32 %v1859, %v1861
  %v1863 = vadd.f32 %v1859, %v1862
  %vm1864 = vweird.f32 %v1699
  %vm1865 = vweird.f32 %v1859
  %vm1866 = vmor %vm1864, %vm1865
  %v1867 = vsel %vm1866, %v1859, %v1863
  %v1868 = vand.u32 2147483647, %v1699
  %vm1869 = vcmp.eq.f32.partialorder %v1868, 8.507059e+37
  %v1870 = vand.u32 %v1699, 2147483648
  %v1871 = vor.u32 1.1754944e-38, %v1870
  %v1872 = vsel %vm1869, %v1871, %v1867
  %v1873 = vmul.f32 1.0, %v1872
  %v1874 = vrcp.pop %v1700
  %v1875 = vmul.f32 %v1700, %v1874
  %v1876 = vsub.f32 1.0, %v1875
  %v1877 = vmul.f32 %v1874, %v1876
  %v1878 = vadd.f32 %v1874, %v1877
  %vm1879 = vweird.f32 %v1700
  %vm1880 = vweird.f32 %v1874
  %vm1881 = vmor %vm1879, %vm1880
  %v1882 = vsel %vm1881, %v1874, %v1878
  %v1883 = vand.u32 2147483647, %v1700
  %vm1884 = vcmp.eq.f32.partialorder %v1883, 8.507059e+37
  %v1885 = vand.u32 %v1700, 2147483648
  %v1886 = vor.u32 1.1754944e-38, %v1885
  %v1887 = vsel %vm1884, %v1886, %v1882
  %v1888 = vmul.f32 1.0, %v1887
  %v1889 = vrcp.pop %v1701
  %v1890 = vmul.f32 %v1701, %v1889
  %v1891 = vsub.f32 1.0, %v1890
  %v1892 = vmul.f32 %v1889, %v1891
  %v1893 = vadd.f32 %v1889, %v1892
  %vm1894 = vweird.f32 %v1701
  %vm1895 = vweird.f32 %v1889
  %vm1896 = vmor %vm1894, %vm1895
  %v1897 = vsel %vm1896, %v1889, %v1893
  %v1898 = vand.u32 2147483647, %v1701
  %vm1899 = vcmp.eq.f32.partialorder %v1898, 8.507059e+37
  %v1900 = vand.u32 %v1701, 2147483648
  %v1901 = vor.u32 1.1754944e-38, %v1900
  %v1902 = vsel %vm1899, %v1901, %v1897
  %v1903 = vmul.f32 1.0, %v1902
  %v1904 = vrcp.pop %v1702
  %v1905 = vmul.f32 %v1702, %v1904
  %v1906 = vsub.f32 1.0, %v1905
  %v1907 = vmul.f32 %v1904, %v1906
  %v1908 = vadd.f32 %v1904, %v1907
  %vm1909 = vweird.f32 %v1702
  %vm1910 = vweird.f32 %v1904
  %vm1911 = vmor %vm1909, %vm1910
  %v1912 = vsel %vm1911, %v1904, %v1908
  %v1913 = vand.u32 2147483647, %v1702
  %vm1914 = vcmp.eq.f32.partialorder %v1913, 8.507059e+37
  %v1915 = vand.u32 %v1702, 2147483648
  %v1916 = vor.u32 1.1754944e-38, %v1915
  %v1917 = vsel %vm1914, %v1916, %v1912
  %v1918 = vmul.f32 1.0, %v1917
  %v1919 = vrcp.pop %v1703
  %v1920 = vmul.f32 %v1703, %v1919
  %v1921 = vsub.f32 1.0, %v1920
  %v1922 = vmul.f32 %v1919, %v1921
  %v1923 = vadd.f32 %v1919, %v1922
  %vm1924 = vweird.f32 %v1703
  %vm1925 = vweird.f32 %v1919
  %vm1926 = vmor %vm1924, %vm1925
  %v1927 = vsel %vm1926, %v1919, %v1923
  %v1928 = vand.u32 2147483647, %v1703
  %vm1929 = vcmp.eq.f32.partialorder %v1928, 8.507059e+37
  %v1930 = vand.u32 %v1703, 2147483648
  %v1931 = vor.u32 1.1754944e-38, %v1930
  %v1932 = vsel %vm1929, %v1931, %v1927
  %v1933 = vmul.f32 1.0, %v1932
  %v1934 = vrcp.pop %v1704
  %v1935 = vmul.f32 %v1704, %v1934
  %v1936 = vsub.f32 1.0, %v1935
  %v1937 = vmul.f32 %v1934, %v1936
  %v1938 = vadd.f32 %v1934, %v1937
  %vm1939 = vweird.f32 %v1704
  %vm1940 = vweird.f32 %v1934
  %vm1941 = vmor %vm1939, %vm1940
  %v1942 = vsel %vm1941, %v1934, %v1938
  %v1943 = vand.u32 2147483647, %v1704
  %vm1944 = vcmp.eq.f32.partialorder %v1943, 8.507059e+37
  %v1945 = vand.u32 %v1704, 2147483648
  %v1946 = vor.u32 1.1754944e-38, %v1945
  %v1947 = vsel %vm1944, %v1946, %v1942
  %v1948 = vmul.f32 1.0, %v1947
  %v1949 = vrcp.pop %v1705
  %v1950 = vmul.f32 %v1705, %v1949
  %v1951 = vsub.f32 1.0, %v1950
  %v1952 = vmul.f32 %v1949, %v1951
  %v1953 = vadd.f32 %v1949, %v1952
  %vm1954 = vweird.f32 %v1705
  %vm1955 = vweird.f32 %v1949
  %vm1956 = vmor %vm1954, %vm1955
  %v1957 = vsel %vm1956, %v1949, %v1953
  %v1958 = vand.u32 2147483647, %v1705
  %vm1959 = vcmp.eq.f32.partialorder %v1958, 8.507059e+37
  %v1960 = vand.u32 %v1705, 2147483648
  %v1961 = vor.u32 1.1754944e-38, %v1960
  %v1962 = vsel %vm1959, %v1961, %v1957
  %v1963 = vmul.f32 1.0, %v1962
  %v1964 = vrcp.pop %v1706
  %v1965 = vmul.f32 %v1706, %v1964
  %v1966 = vsub.f32 1.0, %v1965
  %v1967 = vmul.f32 %v1964, %v1966
  %v1968 = vadd.f32 %v1964, %v1967
  %vm1969 = vweird.f32 %v1706
  %vm1970 = vweird.f32 %v1964
  %vm1971 = vmor %vm1969, %vm1970
  %v1972 = vsel %vm1971, %v1964, %v1968
  %v1973 = vand.u32 2147483647, %v1706
  %vm1974 = vcmp.eq.f32.partialorder %v1973, 8.507059e+37
  %v1975 = vand.u32 %v1706, 2147483648
  %v1976 = vor.u32 1.1754944e-38, %v1975
  %v1977 = vsel %vm1974, %v1976, %v1972
  %v1978 = vmul.f32 1.0, %v1977
  %v1979 = vrcp.pop %v1707
  %v1980 = vmul.f32 %v1707, %v1979
  %v1981 = vsub.f32 1.0, %v1980
  %v1982 = vmul.f32 %v1979, %v1981
  %v1983 = vadd.f32 %v1979, %v1982
  %vm1984 = vweird.f32 %v1707
  %vm1985 = vweird.f32 %v1979
  %vm1986 = vmor %vm1984, %vm1985
  %v1987 = vsel %vm1986, %v1979, %v1983
  %v1988 = vand.u32 2147483647, %v1707
  %vm1989 = vcmp.eq.f32.partialorder %v1988, 8.507059e+37
  %v1990 = vand.u32 %v1707, 2147483648
  %v1991 = vor.u32 1.1754944e-38, %v1990
  %v1992 = vsel %vm1989, %v1991, %v1987
  %v1993 = vmul.f32 1.0, %v1992
  %v1994 = vrcp.pop %v1708
  %v1995 = vmul.f32 %v1708, %v1994
  %v1996 = vsub.f32 1.0, %v1995
  %v1997 = vmul.f32 %v1994, %v1996
  %v1998 = vadd.f32 %v1994, %v1997
  %vm1999 = vweird.f32 %v1708
  %vm2000 = vweird.f32 %v1994
  %vm2001 = vmor %vm1999, %vm2000
  %v2002 = vsel %vm2001, %v1994, %v1998
  %v2003 = vand.u32 2147483647, %v1708
  %vm2004 = vcmp.eq.f32.partialorder %v2003, 8.507059e+37
  %v2005 = vand.u32 %v1708, 2147483648
  %v2006 = vor.u32 1.1754944e-38, %v2005
  %v2007 = vsel %vm2004, %v2006, %v2002
  %v2008 = vmul.f32 1.0, %v2007
  %v2009 = vmul.f32 %v1502, %v1723
  %v2010 = vmul.f32 %v1531, %v1738
  %v2011 = vmul.f32 %v1560, %v1753
  %v2012 = vmul.f32 %v1589, %v1768
  %v2013 = vmul.f32 %v1618, %v1783
  %v2014 = vmul.f32 %v1505, %v1798
  %v2015 = vmul.f32 %v1534, %v1813
  %v2016 = vmul.f32 %v1563, %v1828
  %v2017 = vmul.f32 %v1592, %v1843
  %v2018 = vmul.f32 %v1621, %v1858
  %v2019 = vmul.f32 %v1508, %v1873
  %v2020 = vmul.f32 %v1537, %v1888
  %v2021 = vmul.f32 %v1566, %v1903
  %v2022 = vmul.f32 %v1595, %v1918
  %v2023 = vmul.f32 %v1624, %v1933
  %v2024 = vmul.f32 %v1511, %v1948
  %v2025 = vmul.f32 %v1540, %v1963
  %v2026 = vmul.f32 %v1569, %v1978
  %v2027 = vmul.f32 %v1598, %v1993
  %v2028 = vmul.f32 %v1627, %v2008
  %v2030 = vperm.slane %v25, 0
  %v2031 = vperm.slane %v25, 1
  %v2032 = vperm.slane %v25, 2
  %v2033 = vperm.slane %v25, 3
  %v2034 = vperm.slane %v25, 4
  %v2040 = vmul.f32 %v2009, %v2030
  %v2041 = vmul.f32 %v2010, %v2031
  %v2042 = vmul.f32 %v2011, %v2032
  %v2043 = vmul.f32 %v2012, %v2033
  %v2044 = vmul.f32 %v2013, %v2034
  %v2045 = vmul.f32 %v2014, %v2030
  %v2046 = vmul.f32 %v2015, %v2031
  %v2047 = vmul.f32 %v2016, %v2032
  %v2048 = vmul.f32 %v2017, %v2033
  %v2049 = vmul.f32 %v2018, %v2034
  %v2050 = vmul.f32 %v2019, %v2030
  %v2051 = vmul.f32 %v2020, %v2031
  %v2052 = vmul.f32 %v2021, %v2032
  %v2053 = vmul.f32 %v2022, %v2033
  %v2054 = vmul.f32 %v2023, %v2034
  %v2055 = vmul.f32 %v2024, %v2030
  %v2056 = vmul.f32 %v2025, %v2031
  %v2057 = vmul.f32 %v2026, %v2032
  %v2058 = vmul.f32 %v2027, %v2033
  %v2059 = vmul.f32 %v2028, %v2034
  %v2064 = vmul.f32 %v2009, %v929
  %v2065 = vmul.f32 %v2010, %v930
  %v2066 = vmul.f32 %v2011, %v931
  %v2067 = vmul.f32 %v2012, %v932
  %v2068 = vmul.f32 %v2013, %v933
  %v2069 = vmul.f32 %v2014, %v929
  %v2070 = vmul.f32 %v2015, %v930
  %v2071 = vmul.f32 %v2016, %v931
  %v2072 = vmul.f32 %v2017, %v932
  %v2073 = vmul.f32 %v2018, %v933
  %v2074 = vmul.f32 %v2019, %v929
  %v2075 = vmul.f32 %v2020, %v930
  %v2076 = vmul.f32 %v2021, %v931
  %v2077 = vmul.f32 %v2022, %v932
  %v2078 = vmul.f32 %v2023, %v933
  %v2079 = vmul.f32 %v2024, %v929
  %v2080 = vmul.f32 %v2025, %v930
  %v2081 = vmul.f32 %v2026, %v931
  %v2082 = vmul.f32 %v2027, %v932
  %v2083 = vmul.f32 %v2028, %v933
  %v2088 = vmul.f32 %v2009, %v946
  %v2089 = vmul.f32 %v2010, %v947
  %v2090 = vmul.f32 %v2011, %v948
  %v2091 = vmul.f32 %v2012, %v949
  %v2092 = vmul.f32 %v2013, %v950
  %v2093 = vmul.f32 %v2014, %v946
  %v2094 = vmul.f32 %v2015, %v947
  %v2095 = vmul.f32 %v2016, %v948
  %v2096 = vmul.f32 %v2017, %v949
  %v2097 = vmul.f32 %v2018, %v950
  %v2098 = vmul.f32 %v2019, %v946
  %v2099 = vmul.f32 %v2020, %v947
  %v2100 = vmul.f32 %v2021, %v948
  %v2101 = vmul.f32 %v2022, %v949
  %v2102 = vmul.f32 %v2023, %v950
  %v2103 = vmul.f32 %v2024, %v946
  %v2104 = vmul.f32 %v2025, %v947
  %v2105 = vmul.f32 %v2026, %v948
  %v2106 = vmul.f32 %v2027, %v949
  %v2107 = vmul.f32 %v2028, %v950
  %2108 = vrot.lane.b32.xlu0 %v2064, 17
  %v2109 = vpop.permute.xlu0 %2108
  %2110 = vrot.lane.b32.xlu0 %v2069, 17
  %v2111 = vpop.permute.xlu0 %2110
  %2112 = vrot.lane.b32.xlu0 %v2074, 17
  %v2113 = vpop.permute.xlu0 %2112
  %2114 = vrot.lane.b32.xlu0 %v2079, 17
  %v2115 = vpop.permute.xlu0 %2114
  %2116 = vrot.lane.b32.xlu0 %v2065, 17
  %v2117 = vpop.permute.xlu0 %2116
  %2118 = vrot.lane.b32.xlu0 %v2070, 17
  %v2119 = vpop.permute.xlu0 %2118
  %2120 = vrot.lane.b32.xlu0 %v2075, 17
  %v2121 = vpop.permute.xlu0 %2120
  %2122 = vrot.lane.b32.xlu0 %v2080, 17
  %v2123 = vpop.permute.xlu0 %2122
  %2124 = vrot.lane.b32.xlu0 %v2066, 17
  %v2125 = vpop.permute.xlu0 %2124
  %2126 = vrot.lane.b32.xlu0 %v2071, 17
  %v2127 = vpop.permute.xlu0 %2126
  %2128 = vrot.lane.b32.xlu0 %v2076, 17
  %v2129 = vpop.permute.xlu0 %2128
  %2130 = vrot.lane.b32.xlu0 %v2081, 17
  %v2131 = vpop.permute.xlu0 %2130
  %2132 = vrot.lane.b32.xlu0 %v2067, 17
  %v2133 = vpop.permute.xlu0 %2132
  %2134 = vrot.lane.b32.xlu0 %v2072, 17
  %v2135 = vpop.permute.xlu0 %2134
  %2136 = vrot.lane.b32.xlu0 %v2077, 17
  %v2137 = vpop.permute.xlu0 %2136
  %2138 = vrot.lane.b32.xlu0 %v2082, 17
  %v2139 = vpop.permute.xlu0 %2138
  %2140 = vrot.lane.b32.xlu0 %v2068, 17
  %v2141 = vpop.permute.xlu0 %2140
  %2142 = vrot.lane.b32.xlu0 %v2073, 17
  %v2143 = vpop.permute.xlu0 %2142
  %2144 = vrot.lane.b32.xlu0 %v2078, 17
  %v2145 = vpop.permute.xlu0 %2144
  %2146 = vrot.lane.b32.xlu0 %v2083, 17
  %v2147 = vpop.permute.xlu0 %2146
  %v2148 = vsel %vm991, %v2133, %v2141
  %v2149 = vsel %vm991, %v2135, %v2143
  %v2150 = vsel %vm991, %v2137, %v2145
  %v2151 = vsel %vm991, %v2139, %v2147
  %v2152 = vsel %vm991, %v2125, %v2133
  %v2153 = vsel %vm991, %v2127, %v2135
  %v2154 = vsel %vm991, %v2129, %v2137
  %v2155 = vsel %vm991, %v2131, %v2139
  %v2156 = vsel %vm991, %v2117, %v2125
  %v2157 = vsel %vm991, %v2119, %v2127
  %v2158 = vsel %vm991, %v2121, %v2129
  %v2159 = vsel %vm991, %v2123, %v2131
  %v2160 = vsel %vm991, %v2109, %v2117
  %v2161 = vsel %vm991, %v2111, %v2119
  %v2162 = vsel %vm991, %v2113, %v2121
  %v2163 = vsel %vm991, %v2115, %v2123
  %v2164 = vsel %vm991, %v2141, %v2109
  %v2165 = vsel %vm991, %v2143, %v2111
  %v2166 = vsel %vm991, %v2145, %v2113
  %v2167 = vsel %vm991, %v2147, %v2115
  %2168 = vst [vmem:[#allocation4] sm:$0xff] %v2164
  %2169 = vst [vmem:[#allocation4 + $0x8] sm:$0xff] %v2160
  %2170 = vst [vmem:[#allocation4 + $0x10] sm:$0xff] %v2156
  %2171 = vst [vmem:[#allocation4 + $0x18] sm:$0xff] %v2152
  %2172 = vst [vmem:[#allocation4 + $0x20] sm:$0xff] %v2148
  %2173 = vst [vmem:[#allocation4 + $0x28] sm:$0xff] %v2165
  %2174 = vst [vmem:[#allocation4 + $0x30] sm:$0xff] %v2161
  %2175 = vst [vmem:[#allocation4 + $0x38] sm:$0xff] %v2157
  %2176 = vst [vmem:[#allocation4 + $0x40] sm:$0xff] %v2153
  %2177 = vst [vmem:[#allocation4 + $0x48] sm:$0xff] %v2149
  %2178 = vst [vmem:[#allocation4 + $0x50] sm:$0xff] %v2166
  %2179 = vst [vmem:[#allocation4 + $0x58] sm:$0xff] %v2162
  %2180 = vst [vmem:[#allocation4 + $0x60] sm:$0xff] %v2158
  %2181 = vst [vmem:[#allocation4 + $0x68] sm:$0xff] %v2154
  %2182 = vst [vmem:[#allocation4 + $0x70] sm:$0xff] %v2150
  %2183 = vst [vmem:[#allocation4 + $0x78] sm:$0xff] %v2167
  %2184 = vst [vmem:[#allocation4 + $0x80] sm:$0xff] %v2163
  %2185 = vst [vmem:[#allocation4 + $0x88] sm:$0xff] %v2159
  %2186 = vst [vmem:[#allocation4 + $0x90] sm:$0xff] %v2155
  %2187 = vst [vmem:[#allocation4 + $0x98] sm:$0xff] %v2151
  %2188 = vrot.lane.b32.xlu0 %v2040, 16
  %v2189 = vpop.permute.xlu0 %2188
  %2190 = vrot.lane.b32.xlu0 %v2045, 16
  %v2191 = vpop.permute.xlu0 %2190
  %2192 = vrot.lane.b32.xlu0 %v2050, 16
  %v2193 = vpop.permute.xlu0 %2192
  %2194 = vrot.lane.b32.xlu0 %v2055, 16
  %v2195 = vpop.permute.xlu0 %2194
  %2196 = vrot.lane.b32.xlu0 %v2041, 16
  %v2197 = vpop.permute.xlu0 %2196
  %2198 = vrot.lane.b32.xlu0 %v2046, 16
  %v2199 = vpop.permute.xlu0 %2198
  %2200 = vrot.lane.b32.xlu0 %v2051, 16
  %v2201 = vpop.permute.xlu0 %2200
  %2202 = vrot.lane.b32.xlu0 %v2056, 16
  %v2203 = vpop.permute.xlu0 %2202
  %2204 = vrot.lane.b32.xlu0 %v2042, 16
  %v2205 = vpop.permute.xlu0 %2204
  %2206 = vrot.lane.b32.xlu0 %v2047, 16
  %v2207 = vpop.permute.xlu0 %2206
  %2208 = vrot.lane.b32.xlu0 %v2052, 16
  %v2209 = vpop.permute.xlu0 %2208
  %2210 = vrot.lane.b32.xlu0 %v2057, 16
  %v2211 = vpop.permute.xlu0 %2210
  %2212 = vrot.lane.b32.xlu0 %v2043, 16
  %v2213 = vpop.permute.xlu0 %2212
  %2214 = vrot.lane.b32.xlu0 %v2048, 16
  %v2215 = vpop.permute.xlu0 %2214
  %2216 = vrot.lane.b32.xlu0 %v2053, 16
  %v2217 = vpop.permute.xlu0 %2216
  %2218 = vrot.lane.b32.xlu0 %v2058, 16
  %v2219 = vpop.permute.xlu0 %2218
  %2220 = vrot.lane.b32.xlu0 %v2044, 16
  %v2221 = vpop.permute.xlu0 %2220
  %2222 = vrot.lane.b32.xlu0 %v2049, 16
  %v2223 = vpop.permute.xlu0 %2222
  %2224 = vrot.lane.b32.xlu0 %v2054, 16
  %v2225 = vpop.permute.xlu0 %2224
  %2226 = vrot.lane.b32.xlu0 %v2059, 16
  %v2227 = vpop.permute.xlu0 %2226
  %v2228 = vsel %vm1030, %v2213, %v2221
  %v2229 = vsel %vm1030, %v2215, %v2223
  %v2230 = vsel %vm1030, %v2217, %v2225
  %v2231 = vsel %vm1030, %v2219, %v2227
  %v2232 = vsel %vm1030, %v2205, %v2213
  %v2233 = vsel %vm1030, %v2207, %v2215
  %v2234 = vsel %vm1030, %v2209, %v2217
  %v2235 = vsel %vm1030, %v2211, %v2219
  %v2236 = vsel %vm1030, %v2197, %v2205
  %v2237 = vsel %vm1030, %v2199, %v2207
  %v2238 = vsel %vm1030, %v2201, %v2209
  %v2239 = vsel %vm1030, %v2203, %v2211
  %v2240 = vsel %vm1030, %v2189, %v2197
  %v2241 = vsel %vm1030, %v2191, %v2199
  %v2242 = vsel %vm1030, %v2193, %v2201
  %v2243 = vsel %vm1030, %v2195, %v2203
  %v2244 = vsel %vm1030, %v2221, %v2189
  %v2245 = vsel %vm1030, %v2223, %v2191
  %v2246 = vsel %vm1030, %v2225, %v2193
  %v2247 = vsel %vm1030, %v2227, %v2195
  %2248 = vst [vmem:[#allocation4 + $0xa0] sm:$0xff] %v2244
  %2249 = vst [vmem:[#allocation4 + $0xa8] sm:$0xff] %v2240
  %2250 = vst [vmem:[#allocation4 + $0xb0] sm:$0xff] %v2236
  %2251 = vst [vmem:[#allocation4 + $0xb8] sm:$0xff] %v2232
  %2252 = vst [vmem:[#allocation4 + $0xc0] sm:$0xff] %v2228
  %2253 = vst [vmem:[#allocation4 + $0xc8] sm:$0xff] %v2245
  %2254 = vst [vmem:[#allocation4 + $0xd0] sm:$0xff] %v2241
  %2255 = vst [vmem:[#allocation4 + $0xd8] sm:$0xff] %v2237
  %2256 = vst [vmem:[#allocation4 + $0xe0] sm:$0xff] %v2233
  %2257 = vst [vmem:[#allocation4 + $0xe8] sm:$0xff] %v2229
  %2258 = vst [vmem:[#allocation4 + $0xf0] sm:$0xff] %v2246
  %2259 = vst [vmem:[#allocation4 + $0xf8] sm:$0xff] %v2242
  %2260 = vst [vmem:[#allocation4 + $0x100] sm:$0xff] %v2238
  %2261 = vst [vmem:[#allocation4 + $0x108] sm:$0xff] %v2234
  %2262 = vst [vmem:[#allocation4 + $0x110] sm:$0xff] %v2230
  %2263 = vst [vmem:[#allocation4 + $0x118] sm:$0xff] %v2247
  %2264 = vst [vmem:[#allocation4 + $0x120] sm:$0xff] %v2243
  %2265 = vst [vmem:[#allocation4 + $0x128] sm:$0xff] %v2239
  %2266 = vst [vmem:[#allocation4 + $0x130] sm:$0xff] %v2235
  %2267 = vst [vmem:[#allocation4 + $0x138] sm:$0xff] %v2231
  %2268 = vrot.lane.b32.xlu0 %v2088, 15
  %v2269 = vpop.permute.xlu0 %2268
  %2270 = vrot.lane.b32.xlu0 %v2093, 15
  %v2271 = vpop.permute.xlu0 %2270
  %2272 = vrot.lane.b32.xlu0 %v2098, 15
  %v2273 = vpop.permute.xlu0 %2272
  %2274 = vrot.lane.b32.xlu0 %v2103, 15
  %v2275 = vpop.permute.xlu0 %2274
  %2276 = vrot.lane.b32.xlu0 %v2089, 15
  %v2277 = vpop.permute.xlu0 %2276
  %2278 = vrot.lane.b32.xlu0 %v2094, 15
  %v2279 = vpop.permute.xlu0 %2278
  %2280 = vrot.lane.b32.xlu0 %v2099, 15
  %v2281 = vpop.permute.xlu0 %2280
  %2282 = vrot.lane.b32.xlu0 %v2104, 15
  %v2283 = vpop.permute.xlu0 %2282
  %2284 = vrot.lane.b32.xlu0 %v2090, 15
  %v2285 = vpop.permute.xlu0 %2284
  %2286 = vrot.lane.b32.xlu0 %v2095, 15
  %v2287 = vpop.permute.xlu0 %2286
  %2288 = vrot.lane.b32.xlu0 %v2100, 15
  %v2289 = vpop.permute.xlu0 %2288
  %2290 = vrot.lane.b32.xlu0 %v2105, 15
  %v2291 = vpop.permute.xlu0 %2290
  %2292 = vrot.lane.b32.xlu0 %v2091, 15
  %v2293 = vpop.permute.xlu0 %2292
  %2294 = vrot.lane.b32.xlu0 %v2096, 15
  %v2295 = vpop.permute.xlu0 %2294
  %2296 = vrot.lane.b32.xlu0 %v2101, 15
  %v2297 = vpop.permute.xlu0 %2296
  %2298 = vrot.lane.b32.xlu0 %v2106, 15
  %v2299 = vpop.permute.xlu0 %2298
  %2300 = vrot.lane.b32.xlu0 %v2092, 15
  %v2301 = vpop.permute.xlu0 %2300
  %2302 = vrot.lane.b32.xlu0 %v2097, 15
  %v2303 = vpop.permute.xlu0 %2302
  %2304 = vrot.lane.b32.xlu0 %v2102, 15
  %v2305 = vpop.permute.xlu0 %2304
  %2306 = vrot.lane.b32.xlu0 %v2107, 15
  %v2307 = vpop.permute.xlu0 %2306
  %v2308 = vsel %vm1084, %v2293, %v2301
  %v2309 = vsel %vm1084, %v2295, %v2303
  %v2310 = vsel %vm1084, %v2297, %v2305
  %v2311 = vsel %vm1084, %v2299, %v2307
  %v2312 = vsel %vm1084, %v2285, %v2293
  %v2313 = vsel %vm1084, %v2287, %v2295
  %v2314 = vsel %vm1084, %v2289, %v2297
  %v2315 = vsel %vm1084, %v2291, %v2299
  %v2316 = vsel %vm1084, %v2277, %v2285
  %v2317 = vsel %vm1084, %v2279, %v2287
  %v2318 = vsel %vm1084, %v2281, %v2289
  %v2319 = vsel %vm1084, %v2283, %v2291
  %v2320 = vsel %vm1084, %v2269, %v2277
  %v2321 = vsel %vm1084, %v2271, %v2279
  %v2322 = vsel %vm1084, %v2273, %v2281
  %v2323 = vsel %vm1084, %v2275, %v2283
  %v2324 = vsel %vm1084, %v2301, %v2269
  %v2325 = vsel %vm1084, %v2303, %v2271
  %v2326 = vsel %vm1084, %v2305, %v2273
  %v2327 = vsel %vm1084, %v2307, %v2275
  %2328 = vst [vmem:[#allocation4 + $0x140] sm:$0xff] %v2324
  %2329 = vst [vmem:[#allocation4 + $0x148] sm:$0xff] %v2320
  %2330 = vst [vmem:[#allocation4 + $0x150] sm:$0xff] %v2316
  %2331 = vst [vmem:[#allocation4 + $0x158] sm:$0xff] %v2312
  %2332 = vst [vmem:[#allocation4 + $0x160] sm:$0xff] %v2308
  %2333 = vst [vmem:[#allocation4 + $0x168] sm:$0xff] %v2325
  %2334 = vst [vmem:[#allocation4 + $0x170] sm:$0xff] %v2321
  %2335 = vst [vmem:[#allocation4 + $0x178] sm:$0xff] %v2317
  %2336 = vst [vmem:[#allocation4 + $0x180] sm:$0xff] %v2313
  %2337 = vst [vmem:[#allocation4 + $0x188] sm:$0xff] %v2309
  %2338 = vst [vmem:[#allocation4 + $0x190] sm:$0xff] %v2326
  %2339 = vst [vmem:[#allocation4 + $0x198] sm:$0xff] %v2322
  %2340 = vst [vmem:[#allocation4 + $0x1a0] sm:$0xff] %v2318
  %2341 = vst [vmem:[#allocation4 + $0x1a8] sm:$0xff] %v2314
  %2342 = vst [vmem:[#allocation4 + $0x1b0] sm:$0xff] %v2310
  %2343 = vst [vmem:[#allocation4 + $0x1b8] sm:$0xff] %v2327
  %2344 = vst [vmem:[#allocation4 + $0x1c0] sm:$0xff] %v2323
  %2345 = vst [vmem:[#allocation4 + $0x1c8] sm:$0xff] %v2319
  %2346 = vst [vmem:[#allocation4 + $0x1d0] sm:$0xff] %v2315
  %2347 = vst [vmem:[#allocation4 + $0x1d8] sm:$0xff] %v2311
  %2348 = vrot.lane.b32.xlu0 %v2064, 1
  %v2349 = vpop.permute.xlu0 %2348
  %2350 = vrot.lane.b32.xlu0 %v2069, 1
  %v2351 = vpop.permute.xlu0 %2350
  %2352 = vrot.lane.b32.xlu0 %v2074, 1
  %v2353 = vpop.permute.xlu0 %2352
  %2354 = vrot.lane.b32.xlu0 %v2079, 1
  %v2355 = vpop.permute.xlu0 %2354
  %2356 = vrot.lane.b32.xlu0 %v2065, 1
  %v2357 = vpop.permute.xlu0 %2356
  %2358 = vrot.lane.b32.xlu0 %v2070, 1
  %v2359 = vpop.permute.xlu0 %2358
  %2360 = vrot.lane.b32.xlu0 %v2075, 1
  %v2361 = vpop.permute.xlu0 %2360
  %2362 = vrot.lane.b32.xlu0 %v2080, 1
  %v2363 = vpop.permute.xlu0 %2362
  %2364 = vrot.lane.b32.xlu0 %v2066, 1
  %v2365 = vpop.permute.xlu0 %2364
  %2366 = vrot.lane.b32.xlu0 %v2071, 1
  %v2367 = vpop.permute.xlu0 %2366
  %2368 = vrot.lane.b32.xlu0 %v2076, 1
  %v2369 = vpop.permute.xlu0 %2368
  %2370 = vrot.lane.b32.xlu0 %v2081, 1
  %v2371 = vpop.permute.xlu0 %2370
  %2372 = vrot.lane.b32.xlu0 %v2067, 1
  %v2373 = vpop.permute.xlu0 %2372
  %2374 = vrot.lane.b32.xlu0 %v2072, 1
  %v2375 = vpop.permute.xlu0 %2374
  %2376 = vrot.lane.b32.xlu0 %v2077, 1
  %v2377 = vpop.permute.xlu0 %2376
  %2378 = vrot.lane.b32.xlu0 %v2082, 1
  %v2379 = vpop.permute.xlu0 %2378
  %2380 = vrot.lane.b32.xlu0 %v2068, 1
  %v2381 = vpop.permute.xlu0 %2380
  %2382 = vrot.lane.b32.xlu0 %v2073, 1
  %v2383 = vpop.permute.xlu0 %2382
  %2384 = vrot.lane.b32.xlu0 %v2078, 1
  %v2385 = vpop.permute.xlu0 %2384
  %2386 = vrot.lane.b32.xlu0 %v2083, 1
  %v2387 = vpop.permute.xlu0 %2386
  %v2388 = vsel %vm1120, %v2373, %v2381
  %v2389 = vsel %vm1120, %v2375, %v2383
  %v2390 = vsel %vm1120, %v2377, %v2385
  %v2391 = vsel %vm1120, %v2379, %v2387
  %v2392 = vsel %vm1120, %v2365, %v2373
  %v2393 = vsel %vm1120, %v2367, %v2375
  %v2394 = vsel %vm1120, %v2369, %v2377
  %v2395 = vsel %vm1120, %v2371, %v2379
  %v2396 = vsel %vm1120, %v2357, %v2365
  %v2397 = vsel %vm1120, %v2359, %v2367
  %v2398 = vsel %vm1120, %v2361, %v2369
  %v2399 = vsel %vm1120, %v2363, %v2371
  %v2400 = vsel %vm1120, %v2349, %v2357
  %v2401 = vsel %vm1120, %v2351, %v2359
  %v2402 = vsel %vm1120, %v2353, %v2361
  %v2403 = vsel %vm1120, %v2355, %v2363
  %v2404 = vsel %vm1120, %v2381, %v2349
  %v2405 = vsel %vm1120, %v2383, %v2351
  %v2406 = vsel %vm1120, %v2385, %v2353
  %v2407 = vsel %vm1120, %v2387, %v2355
  %2408 = vst [vmem:[#allocation4 + $0x1e0] sm:$0xff] %v2404
  %2409 = vst [vmem:[#allocation4 + $0x1e8] sm:$0xff] %v2400
  %2410 = vst [vmem:[#allocation4 + $0x1f0] sm:$0xff] %v2396
  %2411 = vst [vmem:[#allocation4 + $0x1f8] sm:$0xff] %v2392
  %2412 = vst [vmem:[#allocation4 + $0x200] sm:$0xff] %v2388
  %2413 = vst [vmem:[#allocation4 + $0x208] sm:$0xff] %v2405
  %2414 = vst [vmem:[#allocation4 + $0x210] sm:$0xff] %v2401
  %2415 = vst [vmem:[#allocation4 + $0x218] sm:$0xff] %v2397
  %2416 = vst [vmem:[#allocation4 + $0x220] sm:$0xff] %v2393
  %2417 = vst [vmem:[#allocation4 + $0x228] sm:$0xff] %v2389
  %2418 = vst [vmem:[#allocation4 + $0x230] sm:$0xff] %v2406
  %2419 = vst [vmem:[#allocation4 + $0x238] sm:$0xff] %v2402
  %2420 = vst [vmem:[#allocation4 + $0x240] sm:$0xff] %v2398
  %2421 = vst [vmem:[#allocation4 + $0x248] sm:$0xff] %v2394
  %2422 = vst [vmem:[#allocation4 + $0x250] sm:$0xff] %v2390
  %2423 = vst [vmem:[#allocation4 + $0x258] sm:$0xff] %v2407
  %2424 = vst [vmem:[#allocation4 + $0x260] sm:$0xff] %v2403
  %2425 = vst [vmem:[#allocation4 + $0x268] sm:$0xff] %v2399
  %2426 = vst [vmem:[#allocation4 + $0x270] sm:$0xff] %v2395
  %2427 = vst [vmem:[#allocation4 + $0x278] sm:$0xff] %v2391
  %2428 = vst [vmem:[#allocation4 + $0x280] sm:$0xff] %v2040
  %2429 = vst [vmem:[#allocation4 + $0x288] sm:$0xff] %v2041
  %2430 = vst [vmem:[#allocation4 + $0x290] sm:$0xff] %v2042
  %2431 = vst [vmem:[#allocation4 + $0x298] sm:$0xff] %v2043
  %2432 = vst [vmem:[#allocation4 + $0x2a0] sm:$0xff] %v2044
  %2433 = vst [vmem:[#allocation4 + $0x2a8] sm:$0xff] %v2045
  %2434 = vst [vmem:[#allocation4 + $0x2b0] sm:$0xff] %v2046
  %2435 = vst [vmem:[#allocation4 + $0x2b8] sm:$0xff] %v2047
  %2436 = vst [vmem:[#allocation4 + $0x2c0] sm:$0xff] %v2048
  %2437 = vst [vmem:[#allocation4 + $0x2c8] sm:$0xff] %v2049
  %2438 = vst [vmem:[#allocation4 + $0x2d0] sm:$0xff] %v2050
  %2439 = vst [vmem:[#allocation4 + $0x2d8] sm:$0xff] %v2051
  %2440 = vst [vmem:[#allocation4 + $0x2e0] sm:$0xff] %v2052
  %2441 = vst [vmem:[#allocation4 + $0x2e8] sm:$0xff] %v2053
  %2442 = vst [vmem:[#allocation4 + $0x2f0] sm:$0xff] %v2054
  %2443 = vst [vmem:[#allocation4 + $0x2f8] sm:$0xff] %v2055
  %2444 = vst [vmem:[#allocation4 + $0x300] sm:$0xff] %v2056
  %2445 = vst [vmem:[#allocation4 + $0x308] sm:$0xff] %v2057
  %2446 = vst [vmem:[#allocation4 + $0x310] sm:$0xff] %v2058
  %2447 = vst [vmem:[#allocation4 + $0x318] sm:$0xff] %v2059
  %2448 = vrot.lane.b32.xlu0 %v2088, 127
  %v2449 = vpop.permute.xlu0 %2448
  %2450 = vrot.lane.b32.xlu0 %v2093, 127
  %v2451 = vpop.permute.xlu0 %2450
  %2452 = vrot.lane.b32.xlu0 %v2098, 127
  %v2453 = vpop.permute.xlu0 %2452
  %2454 = vrot.lane.b32.xlu0 %v2103, 127
  %v2455 = vpop.permute.xlu0 %2454
  %2456 = vrot.lane.b32.xlu0 %v2089, 127
  %v2457 = vpop.permute.xlu0 %2456
  %2458 = vrot.lane.b32.xlu0 %v2094, 127
  %v2459 = vpop.permute.xlu0 %2458
  %2460 = vrot.lane.b32.xlu0 %v2099, 127
  %v2461 = vpop.permute.xlu0 %2460
  %2462 = vrot.lane.b32.xlu0 %v2104, 127
  %v2463 = vpop.permute.xlu0 %2462
  %2464 = vrot.lane.b32.xlu0 %v2090, 127
  %v2465 = vpop.permute.xlu0 %2464
  %2466 = vrot.lane.b32.xlu0 %v2095, 127
  %v2467 = vpop.permute.xlu0 %2466
  %2468 = vrot.lane.b32.xlu0 %v2100, 127
  %v2469 = vpop.permute.xlu0 %2468
  %2470 = vrot.lane.b32.xlu0 %v2105, 127
  %v2471 = vpop.permute.xlu0 %2470
  %2472 = vrot.lane.b32.xlu0 %v2091, 127
  %v2473 = vpop.permute.xlu0 %2472
  %2474 = vrot.lane.b32.xlu0 %v2096, 127
  %v2475 = vpop.permute.xlu0 %2474
  %2476 = vrot.lane.b32.xlu0 %v2101, 127
  %v2477 = vpop.permute.xlu0 %2476
  %2478 = vrot.lane.b32.xlu0 %v2106, 127
  %v2479 = vpop.permute.xlu0 %2478
  %2480 = vrot.lane.b32.xlu0 %v2092, 127
  %v2481 = vpop.permute.xlu0 %2480
  %2482 = vrot.lane.b32.xlu0 %v2097, 127
  %v2483 = vpop.permute.xlu0 %2482
  %2484 = vrot.lane.b32.xlu0 %v2102, 127
  %v2485 = vpop.permute.xlu0 %2484
  %2486 = vrot.lane.b32.xlu0 %v2107, 127
  %v2487 = vpop.permute.xlu0 %2486
  %v2488 = vsel %vm1191, %v2473, %v2481
  %v2489 = vsel %vm1191, %v2475, %v2483
  %v2490 = vsel %vm1191, %v2477, %v2485
  %v2491 = vsel %vm1191, %v2479, %v2487
  %v2492 = vsel %vm1191, %v2465, %v2473
  %v2493 = vsel %vm1191, %v2467, %v2475
  %v2494 = vsel %vm1191, %v2469, %v2477
  %v2495 = vsel %vm1191, %v2471, %v2479
  %v2496 = vsel %vm1191, %v2457, %v2465
  %v2497 = vsel %vm1191, %v2459, %v2467
  %v2498 = vsel %vm1191, %v2461, %v2469
  %v2499 = vsel %vm1191, %v2463, %v2471
  %v2500 = vsel %vm1191, %v2449, %v2457
  %v2501 = vsel %vm1191, %v2451, %v2459
  %v2502 = vsel %vm1191, %v2453, %v2461
  %v2503 = vsel %vm1191, %v2455, %v2463
  %v2504 = vsel %vm1191, %v2481, %v2449
  %v2505 = vsel %vm1191, %v2483, %v2451
  %v2506 = vsel %vm1191, %v2485, %v2453
  %v2507 = vsel %vm1191, %v2487, %v2455
  %2508 = vst [vmem:[#allocation4 + $0x320] sm:$0xff] %v2500
  %2509 = vst [vmem:[#allocation4 + $0x328] sm:$0xff] %v2496
  %2510 = vst [vmem:[#allocation4 + $0x330] sm:$0xff] %v2492
  %2511 = vst [vmem:[#allocation4 + $0x338] sm:$0xff] %v2488
  %2512 = vst [vmem:[#allocation4 + $0x340] sm:$0xff] %v2504
  %2513 = vst [vmem:[#allocation4 + $0x348] sm:$0xff] %v2501
  %2514 = vst [vmem:[#allocation4 + $0x350] sm:$0xff] %v2497
  %2515 = vst [vmem:[#allocation4 + $0x358] sm:$0xff] %v2493
  %2516 = vst [vmem:[#allocation4 + $0x360] sm:$0xff] %v2489
  %2517 = vst [vmem:[#allocation4 + $0x368] sm:$0xff] %v2505
  %2518 = vst [vmem:[#allocation4 + $0x370] sm:$0xff] %v2502
  %2519 = vst [vmem:[#allocation4 + $0x378] sm:$0xff] %v2498
  %2520 = vst [vmem:[#allocation4 + $0x380] sm:$0xff] %v2494
  %2521 = vst [vmem:[#allocation4 + $0x388] sm:$0xff] %v2490
  %2522 = vst [vmem:[#allocation4 + $0x390] sm:$0xff] %v2506
  %2523 = vst [vmem:[#allocation4 + $0x398] sm:$0xff] %v2503
  %2524 = vst [vmem:[#allocation4 + $0x3a0] sm:$0xff] %v2499
  %2525 = vst [vmem:[#allocation4 + $0x3a8] sm:$0xff] %v2495
  %2526 = vst [vmem:[#allocation4 + $0x3b0] sm:$0xff] %v2491
  %2527 = vst [vmem:[#allocation4 + $0x3b8] sm:$0xff] %v2507
  %2528 = vrot.lane.b32.xlu0 %v2064, 113
  %v2529 = vpop.permute.xlu0 %2528
  %2530 = vrot.lane.b32.xlu0 %v2069, 113
  %v2531 = vpop.permute.xlu0 %2530
  %2532 = vrot.lane.b32.xlu0 %v2074, 113
  %v2533 = vpop.permute.xlu0 %2532
  %2534 = vrot.lane.b32.xlu0 %v2079, 113
  %v2535 = vpop.permute.xlu0 %2534
  %2536 = vrot.lane.b32.xlu0 %v2065, 113
  %v2537 = vpop.permute.xlu0 %2536
  %2538 = vrot.lane.b32.xlu0 %v2070, 113
  %v2539 = vpop.permute.xlu0 %2538
  %2540 = vrot.lane.b32.xlu0 %v2075, 113
  %v2541 = vpop.permute.xlu0 %2540
  %2542 = vrot.lane.b32.xlu0 %v2080, 113
  %v2543 = vpop.permute.xlu0 %2542
  %2544 = vrot.lane.b32.xlu0 %v2066, 113
  %v2545 = vpop.permute.xlu0 %2544
  %2546 = vrot.lane.b32.xlu0 %v2071, 113
  %v2547 = vpop.permute.xlu0 %2546
  %2548 = vrot.lane.b32.xlu0 %v2076, 113
  %v2549 = vpop.permute.xlu0 %2548
  %2550 = vrot.lane.b32.xlu0 %v2081, 113
  %v2551 = vpop.permute.xlu0 %2550
  %2552 = vrot.lane.b32.xlu0 %v2067, 113
  %v2553 = vpop.permute.xlu0 %2552
  %2554 = vrot.lane.b32.xlu0 %v2072, 113
  %v2555 = vpop.permute.xlu0 %2554
  %2556 = vrot.lane.b32.xlu0 %v2077, 113
  %v2557 = vpop.permute.xlu0 %2556
  %2558 = vrot.lane.b32.xlu0 %v2082, 113
  %v2559 = vpop.permute.xlu0 %2558
  %2560 = vrot.lane.b32.xlu0 %v2068, 113
  %v2561 = vpop.permute.xlu0 %2560
  %2562 = vrot.lane.b32.xlu0 %v2073, 113
  %v2563 = vpop.permute.xlu0 %2562
  %2564 = vrot.lane.b32.xlu0 %v2078, 113
  %v2565 = vpop.permute.xlu0 %2564
  %2566 = vrot.lane.b32.xlu0 %v2083, 113
  %v2567 = vpop.permute.xlu0 %2566
  %v2568 = vsel %vm1242, %v2553, %v2561
  %v2569 = vsel %vm1242, %v2555, %v2563
  %v2570 = vsel %vm1242, %v2557, %v2565
  %v2571 = vsel %vm1242, %v2559, %v2567
  %v2572 = vsel %vm1242, %v2545, %v2553
  %v2573 = vsel %vm1242, %v2547, %v2555
  %v2574 = vsel %vm1242, %v2549, %v2557
  %v2575 = vsel %vm1242, %v2551, %v2559
  %v2576 = vsel %vm1242, %v2537, %v2545
  %v2577 = vsel %vm1242, %v2539, %v2547
  %v2578 = vsel %vm1242, %v2541, %v2549
  %v2579 = vsel %vm1242, %v2543, %v2551
  %v2580 = vsel %vm1242, %v2529, %v2537
  %v2581 = vsel %vm1242, %v2531, %v2539
  %v2582 = vsel %vm1242, %v2533, %v2541
  %v2583 = vsel %vm1242, %v2535, %v2543
  %v2584 = vsel %vm1242, %v2561, %v2529
  %v2585 = vsel %vm1242, %v2563, %v2531
  %v2586 = vsel %vm1242, %v2565, %v2533
  %v2587 = vsel %vm1242, %v2567, %v2535
  %2588 = vst [vmem:[#allocation4 + $0x3c0] sm:$0xff] %v2580
  %2589 = vst [vmem:[#allocation4 + $0x3c8] sm:$0xff] %v2576
  %2590 = vst [vmem:[#allocation4 + $0x3d0] sm:$0xff] %v2572
  %2591 = vst [vmem:[#allocation4 + $0x3d8] sm:$0xff] %v2568
  %2592 = vst [vmem:[#allocation4 + $0x3e0] sm:$0xff] %v2584
  %2593 = vst [vmem:[#allocation4 + $0x3e8] sm:$0xff] %v2581
  %2594 = vst [vmem:[#allocation4 + $0x3f0] sm:$0xff] %v2577
  %2595 = vst [vmem:[#allocation4 + $0x3f8] sm:$0xff] %v2573
  %2596 = vst [vmem:[#allocation4 + $0x400] sm:$0xff] %v2569
  %2597 = vst [vmem:[#allocation4 + $0x408] sm:$0xff] %v2585
  %2598 = vst [vmem:[#allocation4 + $0x410] sm:$0xff] %v2582
  %2599 = vst [vmem:[#allocation4 + $0x418] sm:$0xff] %v2578
  %2600 = vst [vmem:[#allocation4 + $0x420] sm:$0xff] %v2574
  %2601 = vst [vmem:[#allocation4 + $0x428] sm:$0xff] %v2570
  %2602 = vst [vmem:[#allocation4 + $0x430] sm:$0xff] %v2586
  %2603 = vst [vmem:[#allocation4 + $0x438] sm:$0xff] %v2583
  %2604 = vst [vmem:[#allocation4 + $0x440] sm:$0xff] %v2579
  %2605 = vst [vmem:[#allocation4 + $0x448] sm:$0xff] %v2575
  %2606 = vst [vmem:[#allocation4 + $0x450] sm:$0xff] %v2571
  %2607 = vst [vmem:[#allocation4 + $0x458] sm:$0xff] %v2587
  %2608 = vrot.lane.b32.xlu0 %v2040, 112
  %v2609 = vpop.permute.xlu0 %2608
  %2610 = vrot.lane.b32.xlu0 %v2045, 112
  %v2611 = vpop.permute.xlu0 %2610
  %2612 = vrot.lane.b32.xlu0 %v2050, 112
  %v2613 = vpop.permute.xlu0 %2612
  %2614 = vrot.lane.b32.xlu0 %v2055, 112
  %v2615 = vpop.permute.xlu0 %2614
  %2616 = vrot.lane.b32.xlu0 %v2041, 112
  %v2617 = vpop.permute.xlu0 %2616
  %2618 = vrot.lane.b32.xlu0 %v2046, 112
  %v2619 = vpop.permute.xlu0 %2618
  %2620 = vrot.lane.b32.xlu0 %v2051, 112
  %v2621 = vpop.permute.xlu0 %2620
  %2622 = vrot.lane.b32.xlu0 %v2056, 112
  %v2623 = vpop.permute.xlu0 %2622
  %2624 = vrot.lane.b32.xlu0 %v2042, 112
  %v2625 = vpop.permute.xlu0 %2624
  %2626 = vrot.lane.b32.xlu0 %v2047, 112
  %v2627 = vpop.permute.xlu0 %2626
  %2628 = vrot.lane.b32.xlu0 %v2052, 112
  %v2629 = vpop.permute.xlu0 %2628
  %2630 = vrot.lane.b32.xlu0 %v2057, 112
  %v2631 = vpop.permute.xlu0 %2630
  %2632 = vrot.lane.b32.xlu0 %v2043, 112
  %v2633 = vpop.permute.xlu0 %2632
  %2634 = vrot.lane.b32.xlu0 %v2048, 112
  %v2635 = vpop.permute.xlu0 %2634
  %2636 = vrot.lane.b32.xlu0 %v2053, 112
  %v2637 = vpop.permute.xlu0 %2636
  %2638 = vrot.lane.b32.xlu0 %v2058, 112
  %v2639 = vpop.permute.xlu0 %2638
  %2640 = vrot.lane.b32.xlu0 %v2044, 112
  %v2641 = vpop.permute.xlu0 %2640
  %2642 = vrot.lane.b32.xlu0 %v2049, 112
  %v2643 = vpop.permute.xlu0 %2642
  %2644 = vrot.lane.b32.xlu0 %v2054, 112
  %v2645 = vpop.permute.xlu0 %2644
  %2646 = vrot.lane.b32.xlu0 %v2059, 112
  %v2647 = vpop.permute.xlu0 %2646
  %v2648 = vsel %vm1278, %v2633, %v2641
  %v2649 = vsel %vm1278, %v2635, %v2643
  %v2650 = vsel %vm1278, %v2637, %v2645
  %v2651 = vsel %vm1278, %v2639, %v2647
  %v2652 = vsel %vm1278, %v2625, %v2633
  %v2653 = vsel %vm1278, %v2627, %v2635
  %v2654 = vsel %vm1278, %v2629, %v2637
  %v2655 = vsel %vm1278, %v2631, %v2639
  %v2656 = vsel %vm1278, %v2617, %v2625
  %v2657 = vsel %vm1278, %v2619, %v2627
  %v2658 = vsel %vm1278, %v2621, %v2629
  %v2659 = vsel %vm1278, %v2623, %v2631
  %v2660 = vsel %vm1278, %v2609, %v2617
  %v2661 = vsel %vm1278, %v2611, %v2619
  %v2662 = vsel %vm1278, %v2613, %v2621
  %v2663 = vsel %vm1278, %v2615, %v2623
  %v2664 = vsel %vm1278, %v2641, %v2609
  %v2665 = vsel %vm1278, %v2643, %v2611
  %v2666 = vsel %vm1278, %v2645, %v2613
  %v2667 = vsel %vm1278, %v2647, %v2615
  %2668 = vst [vmem:[#allocation4 + $0x460] sm:$0xff] %v2660
  %2669 = vst [vmem:[#allocation4 + $0x468] sm:$0xff] %v2656
  %2670 = vst [vmem:[#allocation4 + $0x470] sm:$0xff] %v2652
  %2671 = vst [vmem:[#allocation4 + $0x478] sm:$0xff] %v2648
  %2672 = vst [vmem:[#allocation4 + $0x480] sm:$0xff] %v2664
  %2673 = vst [vmem:[#allocation4 + $0x488] sm:$0xff] %v2661
  %2674 = vst [vmem:[#allocation4 + $0x490] sm:$0xff] %v2657
  %2675 = vst [vmem:[#allocation4 + $0x498] sm:$0xff] %v2653
  %2676 = vst [vmem:[#allocation4 + $0x4a0] sm:$0xff] %v2649
  %2677 = vst [vmem:[#allocation4 + $0x4a8] sm:$0xff] %v2665
  %2678 = vst [vmem:[#allocation4 + $0x4b0] sm:$0xff] %v2662
  %2679 = vst [vmem:[#allocation4 + $0x4b8] sm:$0xff] %v2658
  %2680 = vst [vmem:[#allocation4 + $0x4c0] sm:$0xff] %v2654
  %2681 = vst [vmem:[#allocation4 + $0x4c8] sm:$0xff] %v2650
  %2682 = vst [vmem:[#allocation4 + $0x4d0] sm:$0xff] %v2666
  %2683 = vst [vmem:[#allocation4 + $0x4d8] sm:$0xff] %v2663
  %2684 = vst [vmem:[#allocation4 + $0x4e0] sm:$0xff] %v2659
  %2685 = vst [vmem:[#allocation4 + $0x4e8] sm:$0xff] %v2655
  %2686 = vst [vmem:[#allocation4 + $0x4f0] sm:$0xff] %v2651
  %2687 = vst [vmem:[#allocation4 + $0x4f8] sm:$0xff] %v2667
  %2688 = vrot.lane.b32.xlu0 %v2088, 111
  %v2689 = vpop.permute.xlu0 %2688
  %2690 = vrot.lane.b32.xlu0 %v2093, 111
  %v2691 = vpop.permute.xlu0 %2690
  %2692 = vrot.lane.b32.xlu0 %v2098, 111
  %v2693 = vpop.permute.xlu0 %2692
  %2694 = vrot.lane.b32.xlu0 %v2103, 111
  %v2695 = vpop.permute.xlu0 %2694
  %2696 = vrot.lane.b32.xlu0 %v2089, 111
  %v2697 = vpop.permute.xlu0 %2696
  %2698 = vrot.lane.b32.xlu0 %v2094, 111
  %v2699 = vpop.permute.xlu0 %2698
  %2700 = vrot.lane.b32.xlu0 %v2099, 111
  %v2701 = vpop.permute.xlu0 %2700
  %2702 = vrot.lane.b32.xlu0 %v2104, 111
  %v2703 = vpop.permute.xlu0 %2702
  %2704 = vrot.lane.b32.xlu0 %v2090, 111
  %v2705 = vpop.permute.xlu0 %2704
  %2706 = vrot.lane.b32.xlu0 %v2095, 111
  %v2707 = vpop.permute.xlu0 %2706
  %2708 = vrot.lane.b32.xlu0 %v2100, 111
  %v2709 = vpop.permute.xlu0 %2708
  %2710 = vrot.lane.b32.xlu0 %v2105, 111
  %v2711 = vpop.permute.xlu0 %2710
  %2712 = vrot.lane.b32.xlu0 %v2091, 111
  %v2713 = vpop.permute.xlu0 %2712
  %2714 = vrot.lane.b32.xlu0 %v2096, 111
  %v2715 = vpop.permute.xlu0 %2714
  %2716 = vrot.lane.b32.xlu0 %v2101, 111
  %v2717 = vpop.permute.xlu0 %2716
  %2718 = vrot.lane.b32.xlu0 %v2106, 111
  %v2719 = vpop.permute.xlu0 %2718
  %2720 = vrot.lane.b32.xlu0 %v2092, 111
  %v2721 = vpop.permute.xlu0 %2720
  %2722 = vrot.lane.b32.xlu0 %v2097, 111
  %v2723 = vpop.permute.xlu0 %2722
  %2724 = vrot.lane.b32.xlu0 %v2102, 111
  %v2725 = vpop.permute.xlu0 %2724
  %2726 = vrot.lane.b32.xlu0 %v2107, 111
  %v2727 = vpop.permute.xlu0 %2726
  %v2728 = vsel %vm1329, %v2713, %v2721
  %v2729 = vsel %vm1329, %v2715, %v2723
  %v2730 = vsel %vm1329, %v2717, %v2725
  %v2731 = vsel %vm1329, %v2719, %v2727
  %v2732 = vsel %vm1329, %v2705, %v2713
  %v2733 = vsel %vm1329, %v2707, %v2715
  %v2734 = vsel %vm1329, %v2709, %v2717
  %v2735 = vsel %vm1329, %v2711, %v2719
  %v2736 = vsel %vm1329, %v2697, %v2705
  %v2737 = vsel %vm1329, %v2699, %v2707
  %v2738 = vsel %vm1329, %v2701, %v2709
  %v2739 = vsel %vm1329, %v2703, %v2711
  %v2740 = vsel %vm1329, %v2689, %v2697
  %v2741 = vsel %vm1329, %v2691, %v2699
  %v2742 = vsel %vm1329, %v2693, %v2701
  %v2743 = vsel %vm1329, %v2695, %v2703
  %v2744 = vsel %vm1329, %v2721, %v2689
  %v2745 = vsel %vm1329, %v2723, %v2691
  %v2746 = vsel %vm1329, %v2725, %v2693
  %v2747 = vsel %vm1329, %v2727, %v2695
  %2748 = vst [vmem:[#allocation4 + $0x500] sm:$0xff] %v2740
  %2749 = vst [vmem:[#allocation4 + $0x508] sm:$0xff] %v2736
  %2750 = vst [vmem:[#allocation4 + $0x510] sm:$0xff] %v2732
  %2751 = vst [vmem:[#allocation4 + $0x518] sm:$0xff] %v2728
  %2752 = vst [vmem:[#allocation4 + $0x520] sm:$0xff] %v2744
  %2753 = vst [vmem:[#allocation4 + $0x528] sm:$0xff] %v2741
  %2754 = vst [vmem:[#allocation4 + $0x530] sm:$0xff] %v2737
  %2755 = vst [vmem:[#allocation4 + $0x538] sm:$0xff] %v2733
  %2756 = vst [vmem:[#allocation4 + $0x540] sm:$0xff] %v2729
  %2757 = vst [vmem:[#allocation4 + $0x548] sm:$0xff] %v2745
  %2758 = vst [vmem:[#allocation4 + $0x550] sm:$0xff] %v2742
  %2759 = vst [vmem:[#allocation4 + $0x558] sm:$0xff] %v2738
  %2760 = vst [vmem:[#allocation4 + $0x560] sm:$0xff] %v2734
  %2761 = vst [vmem:[#allocation4 + $0x568] sm:$0xff] %v2730
  %2762 = vst [vmem:[#allocation4 + $0x570] sm:$0xff] %v2746
  %2763 = vst [vmem:[#allocation4 + $0x578] sm:$0xff] %v2743
  %2764 = vst [vmem:[#allocation4 + $0x580] sm:$0xff] %v2739
  %2765 = vst [vmem:[#allocation4 + $0x588] sm:$0xff] %v2735
  %2766 = vst [vmem:[#allocation4 + $0x590] sm:$0xff] %v2731
  %2767 = vst [vmem:[#allocation4 + $0x598] sm:$0xff] %v2747
  %v2768 = vld [vmem:[%s3] sm:$0xf]
  %v2769 = vld [vmem:[%s4] sm:$0xff]
  %v2770 = vld [vmem:[%s4 + $0x8] sm:$0xf]
  %v2771 = vld [vmem:[#allocation4] sm:$0xff]
  %v2772 = vld [vmem:[#allocation4 + $0x8] sm:$0xff]
  %v2773 = vld [vmem:[#allocation4 + $0x10] sm:$0xff]
  %v2774 = vld [vmem:[#allocation4 + $0x18] sm:$0xff]
  %v2775 = vld [vmem:[#allocation4 + $0x20] sm:$0xff]
  %v2776 = vld [vmem:[#allocation4 + $0x28] sm:$0xff]
  %v2777 = vld [vmem:[#allocation4 + $0x30] sm:$0xff]
  %v2778 = vld [vmem:[#allocation4 + $0x38] sm:$0xff]
  %v2779 = vld [vmem:[#allocation4 + $0x40] sm:$0xff]
  %v2780 = vld [vmem:[#allocation4 + $0x48] sm:$0xff]
  %v2781 = vld [vmem:[#allocation4 + $0x50] sm:$0xff]
  %v2782 = vld [vmem:[#allocation4 + $0x58] sm:$0xff]
  %v2783 = vld [vmem:[#allocation4 + $0x60] sm:$0xff]
  %v2784 = vld [vmem:[#allocation4 + $0x68] sm:$0xff]
  %v2785 = vld [vmem:[#allocation4 + $0x70] sm:$0xff]
  %v2786 = vld [vmem:[#allocation4 + $0x78] sm:$0xff]
  %v2787 = vld [vmem:[#allocation4 + $0x80] sm:$0xff]
  %v2788 = vld [vmem:[#allocation4 + $0x88] sm:$0xff]
  %v2789 = vld [vmem:[#allocation4 + $0x90] sm:$0xff]
  %v2790 = vld [vmem:[#allocation4 + $0x98] sm:$0xff]
  %v2791 = vld [vmem:[#allocation4 + $0xa0] sm:$0xff]
  %v2792 = vld [vmem:[#allocation4 + $0xa8] sm:$0xff]
  %v2793 = vld [vmem:[#allocation4 + $0xb0] sm:$0xff]
  %v2794 = vld [vmem:[#allocation4 + $0xb8] sm:$0xff]
  %v2795 = vld [vmem:[#allocation4 + $0xc0] sm:$0xff]
  %v2796 = vld [vmem:[#allocation4 + $0xc8] sm:$0xff]
  %v2797 = vld [vmem:[#allocation4 + $0xd0] sm:$0xff]
  %v2798 = vld [vmem:[#allocation4 + $0xd8] sm:$0xff]
  %v2799 = vld [vmem:[#allocation4 + $0xe0] sm:$0xff]
  %v2800 = vld [vmem:[#allocation4 + $0xe8] sm:$0xff]
  %v2801 = vld [vmem:[#allocation4 + $0xf0] sm:$0xff]
  %v2802 = vld [vmem:[#allocation4 + $0xf8] sm:$0xff]
  %v2803 = vld [vmem:[#allocation4 + $0x100] sm:$0xff]
  %v2804 = vld [vmem:[#allocation4 + $0x108] sm:$0xff]
  %v2805 = vld [vmem:[#allocation4 + $0x110] sm:$0xff]
  %v2806 = vld [vmem:[#allocation4 + $0x118] sm:$0xff]
  %v2807 = vld [vmem:[#allocation4 + $0x120] sm:$0xff]
  %v2808 = vld [vmem:[#allocation4 + $0x128] sm:$0xff]
  %v2809 = vld [vmem:[#allocation4 + $0x130] sm:$0xff]
  %v2810 = vld [vmem:[#allocation4 + $0x138] sm:$0xff]
  %v2811 = vld [vmem:[#allocation4 + $0x140] sm:$0xff]
  %v2812 = vld [vmem:[#allocation4 + $0x148] sm:$0xff]
  %v2813 = vld [vmem:[#allocation4 + $0x150] sm:$0xff]
  %v2814 = vld [vmem:[#allocation4 + $0x158] sm:$0xff]
  %v2815 = vld [vmem:[#allocation4 + $0x160] sm:$0xff]
  %v2816 = vld [vmem:[#allocation4 + $0x168] sm:$0xff]
  %v2817 = vld [vmem:[#allocation4 + $0x170] sm:$0xff]
  %v2818 = vld [vmem:[#allocation4 + $0x178] sm:$0xff]
  %v2819 = vld [vmem:[#allocation4 + $0x180] sm:$0xff]
  %v2820 = vld [vmem:[#allocation4 + $0x188] sm:$0xff]
  %v2821 = vld [vmem:[#allocation4 + $0x190] sm:$0xff]
  %v2822 = vld [vmem:[#allocation4 + $0x198] sm:$0xff]
  %v2823 = vld [vmem:[#allocation4 + $0x1a0] sm:$0xff]
  %v2824 = vld [vmem:[#allocation4 + $0x1a8] sm:$0xff]
  %v2825 = vld [vmem:[#allocation4 + $0x1b0] sm:$0xff]
  %v2826 = vld [vmem:[#allocation4 + $0x1b8] sm:$0xff]
  %v2827 = vld [vmem:[#allocation4 + $0x1c0] sm:$0xff]
  %v2828 = vld [vmem:[#allocation4 + $0x1c8] sm:$0xff]
  %v2829 = vld [vmem:[#allocation4 + $0x1d0] sm:$0xff]
  %v2830 = vld [vmem:[#allocation4 + $0x1d8] sm:$0xff]
  %v2831 = vld [vmem:[#allocation4 + $0x1e0] sm:$0xff]
  %v2832 = vld [vmem:[#allocation4 + $0x1e8] sm:$0xff]
  %v2833 = vld [vmem:[#allocation4 + $0x1f0] sm:$0xff]
  %v2834 = vld [vmem:[#allocation4 + $0x1f8] sm:$0xff]
  %v2835 = vld [vmem:[#allocation4 + $0x200] sm:$0xff]
  %v2836 = vld [vmem:[#allocation4 + $0x208] sm:$0xff]
  %v2837 = vld [vmem:[#allocation4 + $0x210] sm:$0xff]
  %v2838 = vld [vmem:[#allocation4 + $0x218] sm:$0xff]
  %v2839 = vld [vmem:[#allocation4 + $0x220] sm:$0xff]
  %v2840 = vld [vmem:[#allocation4 + $0x228] sm:$0xff]
  %v2841 = vld [vmem:[#allocation4 + $0x230] sm:$0xff]
  %v2842 = vld [vmem:[#allocation4 + $0x238] sm:$0xff]
  %v2843 = vld [vmem:[#allocation4 + $0x240] sm:$0xff]
  %v2844 = vld [vmem:[#allocation4 + $0x248] sm:$0xff]
  %v2845 = vld [vmem:[#allocation4 + $0x250] sm:$0xff]
  %v2846 = vld [vmem:[#allocation4 + $0x258] sm:$0xff]
  %v2847 = vld [vmem:[#allocation4 + $0x260] sm:$0xff]
  %v2848 = vld [vmem:[#allocation4 + $0x268] sm:$0xff]
  %v2849 = vld [vmem:[#allocation4 + $0x270] sm:$0xff]
  %v2850 = vld [vmem:[#allocation4 + $0x278] sm:$0xff]
  %v2851 = vld [vmem:[#allocation4 + $0x280] sm:$0xff]
  %v2852 = vld [vmem:[#allocation4 + $0x288] sm:$0xff]
  %v2853 = vld [vmem:[#allocation4 + $0x290] sm:$0xff]
  %v2854 = vld [vmem:[#allocation4 + $0x298] sm:$0xff]
  %v2855 = vld [vmem:[#allocation4 + $0x2a0] sm:$0xff]
  %v2856 = vld [vmem:[#allocation4 + $0x2a8] sm:$0xff]
  %v2857 = vld [vmem:[#allocation4 + $0x2b0] sm:$0xff]
  %v2858 = vld [vmem:[#allocation4 + $0x2b8] sm:$0xff]
  %v2859 = vld [vmem:[#allocation4 + $0x2c0] sm:$0xff]
  %v2860 = vld [vmem:[#allocation4 + $0x2c8] sm:$0xff]
  %v2861 = vld [vmem:[#allocation4 + $0x2d0] sm:$0xff]
  %v2862 = vld [vmem:[#allocation4 + $0x2d8] sm:$0xff]
  %v2863 = vld [vmem:[#allocation4 + $0x2e0] sm:$0xff]
  %v2864 = vld [vmem:[#allocation4 + $0x2e8] sm:$0xff]
  %v2865 = vld [vmem:[#allocation4 + $0x2f0] sm:$0xff]
  %v2866 = vld [vmem:[#allocation4 + $0x2f8] sm:$0xff]
  %v2867 = vld [vmem:[#allocation4 + $0x300] sm:$0xff]
  %v2868 = vld [vmem:[#allocation4 + $0x308] sm:$0xff]
  %v2869 = vld [vmem:[#allocation4 + $0x310] sm:$0xff]
  %v2870 = vld [vmem:[#allocation4 + $0x318] sm:$0xff]
  %v2871 = vld [vmem:[#allocation4 + $0x320] sm:$0xff]
  %v2872 = vld [vmem:[#allocation4 + $0x328] sm:$0xff]
  %v2873 = vld [vmem:[#allocation4 + $0x330] sm:$0xff]
  %v2874 = vld [vmem:[#allocation4 + $0x338] sm:$0xff]
  %v2875 = vld [vmem:[#allocation4 + $0x340] sm:$0xff]
  %v2876 = vld [vmem:[#allocation4 + $0x348] sm:$0xff]
  %v2877 = vld [vmem:[#allocation4 + $0x350] sm:$0xff]
  %v2878 = vld [vmem:[#allocation4 + $0x358] sm:$0xff]
  %v2879 = vld [vmem:[#allocation4 + $0x360] sm:$0xff]
  %v2880 = vld [vmem:[#allocation4 + $0x368] sm:$0xff]
  %v2881 = vld [vmem:[#allocation4 + $0x370] sm:$0xff]
  %v2882 = vld [vmem:[#allocation4 + $0x378] sm:$0xff]
  %v2883 = vld [vmem:[#allocation4 + $0x380] sm:$0xff]
  %v2884 = vld [vmem:[#allocation4 + $0x388] sm:$0xff]
  %v2885 = vld [vmem:[#allocation4 + $0x390] sm:$0xff]
  %v2886 = vld [vmem:[#allocation4 + $0x398] sm:$0xff]
  %v2887 = vld [vmem:[#allocation4 + $0x3a0] sm:$0xff]
  %v2888 = vld [vmem:[#allocation4 + $0x3a8] sm:$0xff]
  %v2889 = vld [vmem:[#allocation4 + $0x3b0] sm:$0xff]
  %v2890 = vld [vmem:[#allocation4 + $0x3b8] sm:$0xff]
  %v2891 = vld [vmem:[#allocation4 + $0x3c0] sm:$0xff]
  %v2892 = vld [vmem:[#allocation4 + $0x3c8] sm:$0xff]
  %v2893 = vld [vmem:[#allocation4 + $0x3d0] sm:$0xff]
  %v2894 = vld [vmem:[#allocation4 + $0x3d8] sm:$0xff]
  %v2895 = vld [vmem:[#allocation4 + $0x3e0] sm:$0xff]
  %v2896 = vld [vmem:[#allocation4 + $0x3e8] sm:$0xff]
  %v2897 = vld [vmem:[#allocation4 + $0x3f0] sm:$0xff]
  %v2898 = vld [vmem:[#allocation4 + $0x3f8] sm:$0xff]
  %v2899 = vld [vmem:[#allocation4 + $0x400] sm:$0xff]
  %v2900 = vld [vmem:[#allocation4 + $0x408] sm:$0xff]
  %v2901 = vld [vmem:[#allocation4 + $0x410] sm:$0xff]
  %v2902 = vld [vmem:[#allocation4 + $0x418] sm:$0xff]
  %v2903 = vld [vmem:[#allocation4 + $0x420] sm:$0xff]
  %v2904 = vld [vmem:[#allocation4 + $0x428] sm:$0xff]
  %v2905 = vld [vmem:[#allocation4 + $0x430] sm:$0xff]
  %v2906 = vld [vmem:[#allocation4 + $0x438] sm:$0xff]
  %v2907 = vld [vmem:[#allocation4 + $0x440] sm:$0xff]
  %v2908 = vld [vmem:[#allocation4 + $0x448] sm:$0xff]
  %v2909 = vld [vmem:[#allocation4 + $0x450] sm:$0xff]
  %v2910 = vld [vmem:[#allocation4 + $0x458] sm:$0xff]
  %v2911 = vld [vmem:[#allocation4 + $0x460] sm:$0xff]
  %v2912 = vld [vmem:[#allocation4 + $0x468] sm:$0xff]
  %v2913 = vld [vmem:[#allocation4 + $0x470] sm:$0xff]
  %v2914 = vld [vmem:[#allocation4 + $0x478] sm:$0xff]
  %v2915 = vld [vmem:[#allocation4 + $0x480] sm:$0xff]
  %v2916 = vld [vmem:[#allocation4 + $0x488] sm:$0xff]
  %v2917 = vld [vmem:[#allocation4 + $0x490] sm:$0xff]
  %v2918 = vld [vmem:[#allocation4 + $0x498] sm:$0xff]
  %v2919 = vld [vmem:[#allocation4 + $0x4a0] sm:$0xff]
  %v2920 = vld [vmem:[#allocation4 + $0x4a8] sm:$0xff]
  %v2921 = vld [vmem:[#allocation4 + $0x4b0] sm:$0xff]
  %v2922 = vld [vmem:[#allocation4 + $0x4b8] sm:$0xff]
  %v2923 = vld [vmem:[#allocation4 + $0x4c0] sm:$0xff]
  %v2924 = vld [vmem:[#allocation4 + $0x4c8] sm:$0xff]
  %v2925 = vld [vmem:[#allocation4 + $0x4d0] sm:$0xff]
  %v2926 = vld [vmem:[#allocation4 + $0x4d8] sm:$0xff]
  %v2927 = vld [vmem:[#allocation4 + $0x4e0] sm:$0xff]
  %v2928 = vld [vmem:[#allocation4 + $0x4e8] sm:$0xff]
  %v2929 = vld [vmem:[#allocation4 + $0x4f0] sm:$0xff]
  %v2930 = vld [vmem:[#allocation4 + $0x4f8] sm:$0xff]
  %v2931 = vld [vmem:[#allocation4 + $0x500] sm:$0xff]
  %v2932 = vld [vmem:[#allocation4 + $0x508] sm:$0xff]
  %v2933 = vld [vmem:[#allocation4 + $0x510] sm:$0xff]
  %v2934 = vld [vmem:[#allocation4 + $0x518] sm:$0xff]
  %v2935 = vld [vmem:[#allocation4 + $0x520] sm:$0xff]
  %v2936 = vld [vmem:[#allocation4 + $0x528] sm:$0xff]
  %v2937 = vld [vmem:[#allocation4 + $0x530] sm:$0xff]
  %v2938 = vld [vmem:[#allocation4 + $0x538] sm:$0xff]
  %v2939 = vld [vmem:[#allocation4 + $0x540] sm:$0xff]
  %v2940 = vld [vmem:[#allocation4 + $0x548] sm:$0xff]
  %v2941 = vld [vmem:[#allocation4 + $0x550] sm:$0xff]
  %v2942 = vld [vmem:[#allocation4 + $0x558] sm:$0xff]
  %v2943 = vld [vmem:[#allocation4 + $0x560] sm:$0xff]
  %v2944 = vld [vmem:[#allocation4 + $0x568] sm:$0xff]
  %v2945 = vld [vmem:[#allocation4 + $0x570] sm:$0xff]
  %v2946 = vld [vmem:[#allocation4 + $0x578] sm:$0xff]
  %v2947 = vld [vmem:[#allocation4 + $0x580] sm:$0xff]
  %v2948 = vld [vmem:[#allocation4 + $0x588] sm:$0xff]
  %v2949 = vld [vmem:[#allocation4 + $0x590] sm:$0xff]
  %v2950 = vld [vmem:[#allocation4 + $0x598] sm:$0xff]
  %2952 = vset.pattern.permute.xlu0 103
  %2953 = vperm.xlu0 %2952, %v2768
  %v2954 = vpop.permute.xlu0 %2953
  %2958 = vst [vmem:[#allocation1] ss:$2 sm:$0xff] %v2769
  %s2959 = scalar_lea.vmem [#allocation1], 16
  %2960 = vst [vmem:[%s2959] ss:$2 sm:$0xff] %v2770
  %v2961 = vld.sshfl [vmem:[#allocation1] sm:$0xff pattern:$0x75316420]
  %v2962 = vld.sshfl [vmem:[#allocation1 + $0x8] sm:$0xff pattern:$0x75316420]
  %v2963 = vld.sshfl [vmem:[#allocation1 + $0x10] sm:$0xff pattern:$0x75316420]
  %v2966 = vsel %vm890, %v2963, 0
  %2968 = vmatpush.msra.mxu0 %v2846
  %2969 = vmatpush.msra.mxu0 %v2841
  %2970 = vmatpush.msra.mxu0 %v2836
  %2971 = vmatpush.msra.mxu0 %v2831
  %2972 = vmatpush.msra.mxu0 %v2826
  %2973 = vmatpush.msra.mxu0 %v2821
  %2974 = vmatpush.msra.mxu0 %v2816
  %2975 = vmatpush.msra.mxu0 %v2811
  %2976 = vmatpush.msra.mxu0 %v2806
  %2977 = vmatpush.msra.mxu0 %v2801
  %2978 = vmatpush.msra.mxu0 %v2796
  %2979 = vmatpush.msra.mxu0 %v2791
  %2980 = vmatpush.msra.mxu0 %v2786
  %2981 = vmatpush.msra.mxu0 %v2781
  %2982 = vmatpush.msra.mxu0 %v2776
  %2983 = vmatpush.msra.mxu0 %v2771
  %2984 = vmatmul.f32.gmra.mxu0 %v2961
  %v2985 = vpop.f32.mrf.mxu0
  %v2986 = vadd.f32 %v2954, %v2985
  %2987 = vdwg.mxu0
  %2988 = vmatpush.msra.mxu0 %v2926
  %2989 = vmatpush.msra.mxu0 %v2921
  %2990 = vmatpush.msra.mxu0 %v2916
  %2991 = vmatpush.msra.mxu0 %v2911
  %2992 = vmatpush.msra.mxu0 %v2906
  %2993 = vmatpush.msra.mxu0 %v2901
  %2994 = vmatpush.msra.mxu0 %v2896
  %2995 = vmatpush.msra.mxu0 %v2891
  %2996 = vmatpush.msra.mxu0 %v2886
  %2997 = vmatpush.msra.mxu0 %v2881
  %2998 = vmatpush.msra.mxu0 %v2876
  %2999 = vmatpush.msra.mxu0 %v2871
  %3000 = vmatpush.msra.mxu0 %v2866
  %3001 = vmatpush.msra.mxu0 %v2861
  %3002 = vmatpush.msra.mxu0 %v2856
  %3003 = vmatpush.msra.mxu0 %v2851
  %3004 = vmatmul.f32.gmra.mxu0 %v2962
  %v3005 = vpop.f32.mrf.mxu0
  %v3006 = vadd.f32 %v2986, %v3005
  %3007 = vdwg.mxu0
  %3008 = vmatpush.msra.mxu0 0.0
  %3009 = vmatpush.msra.mxu0 0.0
  %3010 = vmatpush.msra.mxu0 0.0
  %3011 = vmatpush.msra.mxu0 0.0
  %3012 = vmatpush.msra.mxu0 0.0
  %3013 = vmatpush.msra.mxu0 0.0
  %3014 = vmatpush.msra.mxu0 0.0
  %3015 = vmatpush.msra.mxu0 0.0
  %3016 = vmatpush.msra.mxu0 0.0
  %3017 = vmatpush.msra.mxu0 0.0
  %3018 = vmatpush.msra.mxu0 0.0
  %3019 = vmatpush.msra.mxu0 0.0
  %3020 = vmatpush.msra.mxu0 %v2946
  %3021 = vmatpush.msra.mxu0 %v2941
  %3022 = vmatpush.msra.mxu0 %v2936
  %3023 = vmatpush.msra.mxu0 %v2931
  %3024 = vmatmul.f32.gmra.mxu0 %v2966
  %v3025 = vpop.f32.mrf.mxu0
  %v3026 = vadd.f32 %v3006, %v3025
  %3027 = vdwg.mxu0
  %3028 = vmatpush.msra.mxu0 %v2847
  %3029 = vmatpush.msra.mxu0 %v2842
  %3030 = vmatpush.msra.mxu0 %v2837
  %3031 = vmatpush.msra.mxu0 %v2832
  %3032 = vmatpush.msra.mxu0 %v2827
  %3033 = vmatpush.msra.mxu0 %v2822
  %3034 = vmatpush.msra.mxu0 %v2817
  %3035 = vmatpush.msra.mxu0 %v2812
  %3036 = vmatpush.msra.mxu0 %v2807
  %3037 = vmatpush.msra.mxu0 %v2802
  %3038 = vmatpush.msra.mxu0 %v2797
  %3039 = vmatpush.msra.mxu0 %v2792
  %3040 = vmatpush.msra.mxu0 %v2787
  %3041 = vmatpush.msra.mxu0 %v2782
  %3042 = vmatpush.msra.mxu0 %v2777
  %3043 = vmatpush.msra.mxu0 %v2772
  %3044 = vmatmul.f32.gmra.mxu0 %v2961
  %v3045 = vpop.f32.mrf.mxu0
  %v3046 = vadd.f32 %v2954, %v3045
  %3047 = vdwg.mxu0
  %3048 = vmatpush.msra.mxu0 %v2927
  %3049 = vmatpush.msra.mxu0 %v2922
  %3050 = vmatpush.msra.mxu0 %v2917
  %3051 = vmatpush.msra.mxu0 %v2912
  %3052 = vmatpush.msra.mxu0 %v2907
  %3053 = vmatpush.msra.mxu0 %v2902
  %3054 = vmatpush.msra.mxu0 %v2897
  %3055 = vmatpush.msra.mxu0 %v2892
  %3056 = vmatpush.msra.mxu0 %v2887
  %3057 = vmatpush.msra.mxu0 %v2882
  %3058 = vmatpush.msra.mxu0 %v2877
  %3059 = vmatpush.msra.mxu0 %v2872
  %3060 = vmatpush.msra.mxu0 %v2867
  %3061 = vmatpush.msra.mxu0 %v2862
  %3062 = vmatpush.msra.mxu0 %v2857
  %3063 = vmatpush.msra.mxu0 %v2852
  %3064 = vmatmul.f32.gmra.mxu0 %v2962
  %v3065 = vpop.f32.mrf.mxu0
  %v3066 = vadd.f32 %v3046, %v3065
  %3067 = vdwg.mxu0
  %3068 = vmatpush.msra.mxu0 0.0
  %3069 = vmatpush.msra.mxu0 0.0
  %3070 = vmatpush.msra.mxu0 0.0
  %3071 = vmatpush.msra.mxu0 0.0
  %3072 = vmatpush.msra.mxu0 0.0
  %3073 = vmatpush.msra.mxu0 0.0
  %3074 = vmatpush.msra.mxu0 0.0
  %3075 = vmatpush.msra.mxu0 0.0
  %3076 = vmatpush.msra.mxu0 0.0
  %3077 = vmatpush.msra.mxu0 0.0
  %3078 = vmatpush.msra.mxu0 0.0
  %3079 = vmatpush.msra.mxu0 0.0
  %3080 = vmatpush.msra.mxu0 %v2947
  %3081 = vmatpush.msra.mxu0 %v2942
  %3082 = vmatpush.msra.mxu0 %v2937
  %3083 = vmatpush.msra.mxu0 %v2932
  %3084 = vmatmul.f32.gmra.mxu0 %v2966
  %v3085 = vpop.f32.mrf.mxu0
  %v3086 = vadd.f32 %v3066, %v3085
  %3087 = vdwg.mxu0
  %3088 = vmatpush.msra.mxu0 %v2848
  %3089 = vmatpush.msra.mxu0 %v2843
  %3090 = vmatpush.msra.mxu0 %v2838
  %3091 = vmatpush.msra.mxu0 %v2833
  %3092 = vmatpush.msra.mxu0 %v2828
  %3093 = vmatpush.msra.mxu0 %v2823
  %3094 = vmatpush.msra.mxu0 %v2818
  %3095 = vmatpush.msra.mxu0 %v2813
  %3096 = vmatpush.msra.mxu0 %v2808
  %3097 = vmatpush.msra.mxu0 %v2803
  %3098 = vmatpush.msra.mxu0 %v2798
  %3099 = vmatpush.msra.mxu0 %v2793
  %3100 = vmatpush.msra.mxu0 %v2788
  %3101 = vmatpush.msra.mxu0 %v2783
  %3102 = vmatpush.msra.mxu0 %v2778
  %3103 = vmatpush.msra.mxu0 %v2773
  %3104 = vmatmul.f32.gmra.mxu0 %v2961
  %v3105 = vpop.f32.mrf.mxu0
  %v3106 = vadd.f32 %v2954, %v3105
  %3107 = vdwg.mxu0
  %3108 = vmatpush.msra.mxu0 %v2928
  %3109 = vmatpush.msra.mxu0 %v2923
  %3110 = vmatpush.msra.mxu0 %v2918
  %3111 = vmatpush.msra.mxu0 %v2913
  %3112 = vmatpush.msra.mxu0 %v2908
  %3113 = vmatpush.msra.mxu0 %v2903
  %3114 = vmatpush.msra.mxu0 %v2898
  %3115 = vmatpush.msra.mxu0 %v2893
  %3116 = vmatpush.msra.mxu0 %v2888
  %3117 = vmatpush.msra.mxu0 %v2883
  %3118 = vmatpush.msra.mxu0 %v2878
  %3119 = vmatpush.msra.mxu0 %v2873
  %3120 = vmatpush.msra.mxu0 %v2868
  %3121 = vmatpush.msra.mxu0 %v2863
  %3122 = vmatpush.msra.mxu0 %v2858
  %3123 = vmatpush.msra.mxu0 %v2853
  %3124 = vmatmul.f32.gmra.mxu0 %v2962
  %v3125 = vpop.f32.mrf.mxu0
  %v3126 = vadd.f32 %v3106, %v3125
  %3127 = vdwg.mxu0
  %3128 = vmatpush.msra.mxu0 0.0
  %3129 = vmatpush.msra.mxu0 0.0
  %3130 = vmatpush.msra.mxu0 0.0
  %3131 = vmatpush.msra.mxu0 0.0
  %3132 = vmatpush.msra.mxu0 0.0
  %3133 = vmatpush.msra.mxu0 0.0
  %3134 = vmatpush.msra.mxu0 0.0
  %3135 = vmatpush.msra.mxu0 0.0
  %3136 = vmatpush.msra.mxu0 0.0
  %3137 = vmatpush.msra.mxu0 0.0
  %3138 = vmatpush.msra.mxu0 0.0
  %3139 = vmatpush.msra.mxu0 0.0
  %3140 = vmatpush.msra.mxu0 %v2948
  %3141 = vmatpush.msra.mxu0 %v2943
  %3142 = vmatpush.msra.mxu0 %v2938
  %3143 = vmatpush.msra.mxu0 %v2933
  %3144 = vmatmul.f32.gmra.mxu0 %v2966
  %v3145 = vpop.f32.mrf.mxu0
  %v3146 = vadd.f32 %v3126, %v3145
  %3147 = vdwg.mxu0
  %3148 = vmatpush.msra.mxu0 %v2849
  %3149 = vmatpush.msra.mxu0 %v2844
  %3150 = vmatpush.msra.mxu0 %v2839
  %3151 = vmatpush.msra.mxu0 %v2834
  %3152 = vmatpush.msra.mxu0 %v2829
  %3153 = vmatpush.msra.mxu0 %v2824
  %3154 = vmatpush.msra.mxu0 %v2819
  %3155 = vmatpush.msra.mxu0 %v2814
  %3156 = vmatpush.msra.mxu0 %v2809
  %3157 = vmatpush.msra.mxu0 %v2804
  %3158 = vmatpush.msra.mxu0 %v2799
  %3159 = vmatpush.msra.mxu0 %v2794
  %3160 = vmatpush.msra.mxu0 %v2789
  %3161 = vmatpush.msra.mxu0 %v2784
  %3162 = vmatpush.msra.mxu0 %v2779
  %3163 = vmatpush.msra.mxu0 %v2774
  %3164 = vmatmul.f32.gmra.mxu0 %v2961
  %v3165 = vpop.f32.mrf.mxu0
  %v3166 = vadd.f32 %v2954, %v3165
  %3167 = vdwg.mxu0
  %3168 = vmatpush.msra.mxu0 %v2929
  %3169 = vmatpush.msra.mxu0 %v2924
  %3170 = vmatpush.msra.mxu0 %v2919
  %3171 = vmatpush.msra.mxu0 %v2914
  %3172 = vmatpush.msra.mxu0 %v2909
  %3173 = vmatpush.msra.mxu0 %v2904
  %3174 = vmatpush.msra.mxu0 %v2899
  %3175 = vmatpush.msra.mxu0 %v2894
  %3176 = vmatpush.msra.mxu0 %v2889
  %3177 = vmatpush.msra.mxu0 %v2884
  %3178 = vmatpush.msra.mxu0 %v2879
  %3179 = vmatpush.msra.mxu0 %v2874
  %3180 = vmatpush.msra.mxu0 %v2869
  %3181 = vmatpush.msra.mxu0 %v2864
  %3182 = vmatpush.msra.mxu0 %v2859
  %3183 = vmatpush.msra.mxu0 %v2854
  %3184 = vmatmul.f32.gmra.mxu0 %v2962
  %v3185 = vpop.f32.mrf.mxu0
  %v3186 = vadd.f32 %v3166, %v3185
  %3187 = vdwg.mxu0
  %3188 = vmatpush.msra.mxu0 0.0
  %3189 = vmatpush.msra.mxu0 0.0
  %3190 = vmatpush.msra.mxu0 0.0
  %3191 = vmatpush.msra.mxu0 0.0
  %3192 = vmatpush.msra.mxu0 0.0
  %3193 = vmatpush.msra.mxu0 0.0
  %3194 = vmatpush.msra.mxu0 0.0
  %3195 = vmatpush.msra.mxu0 0.0
  %3196 = vmatpush.msra.mxu0 0.0
  %3197 = vmatpush.msra.mxu0 0.0
  %3198 = vmatpush.msra.mxu0 0.0
  %3199 = vmatpush.msra.mxu0 0.0
  %3200 = vmatpush.msra.mxu0 %v2949
  %3201 = vmatpush.msra.mxu0 %v2944
  %3202 = vmatpush.msra.mxu0 %v2939
  %3203 = vmatpush.msra.mxu0 %v2934
  %3204 = vmatmul.f32.gmra.mxu0 %v2966
  %v3205 = vpop.f32.mrf.mxu0
  %v3206 = vadd.f32 %v3186, %v3205
  %3207 = vdwg.mxu0
  %3208 = vmatpush.msra.mxu0 %v2850
  %3209 = vmatpush.msra.mxu0 %v2845
  %3210 = vmatpush.msra.mxu0 %v2840
  %3211 = vmatpush.msra.mxu0 %v2835
  %3212 = vmatpush.msra.mxu0 %v2830
  %3213 = vmatpush.msra.mxu0 %v2825
  %3214 = vmatpush.msra.mxu0 %v2820
  %3215 = vmatpush.msra.mxu0 %v2815
  %3216 = vmatpush.msra.mxu0 %v2810
  %3217 = vmatpush.msra.mxu0 %v2805
  %3218 = vmatpush.msra.mxu0 %v2800
  %3219 = vmatpush.msra.mxu0 %v2795
  %3220 = vmatpush.msra.mxu0 %v2790
  %3221 = vmatpush.msra.mxu0 %v2785
  %3222 = vmatpush.msra.mxu0 %v2780
  %3223 = vmatpush.msra.mxu0 %v2775
  %3224 = vmatmul.f32.gmra.mxu0 %v2961
  %v3225 = vpop.f32.mrf.mxu0
  %v3226 = vadd.f32 %v2954, %v3225
  %3227 = vdwg.mxu0
  %3228 = vmatpush.msra.mxu0 %v2930
  %3229 = vmatpush.msra.mxu0 %v2925
  %3230 = vmatpush.msra.mxu0 %v2920
  %3231 = vmatpush.msra.mxu0 %v2915
  %3232 = vmatpush.msra.mxu0 %v2910
  %3233 = vmatpush.msra.mxu0 %v2905
  %3234 = vmatpush.msra.mxu0 %v2900
  %3235 = vmatpush.msra.mxu0 %v2895
  %3236 = vmatpush.msra.mxu0 %v2890
  %3237 = vmatpush.msra.mxu0 %v2885
  %3238 = vmatpush.msra.mxu0 %v2880
  %3239 = vmatpush.msra.mxu0 %v2875
  %3240 = vmatpush.msra.mxu0 %v2870
  %3241 = vmatpush.msra.mxu0 %v2865
  %3242 = vmatpush.msra.mxu0 %v2860
  %3243 = vmatpush.msra.mxu0 %v2855
  %3244 = vmatmul.f32.gmra.mxu0 %v2962
  %v3245 = vpop.f32.mrf.mxu0
  %v3246 = vadd.f32 %v3226, %v3245
  %3247 = vdwg.mxu0
  %3248 = vmatpush.msra.mxu0 0.0
  %3249 = vmatpush.msra.mxu0 0.0
  %3250 = vmatpush.msra.mxu0 0.0
  %3251 = vmatpush.msra.mxu0 0.0
  %3252 = vmatpush.msra.mxu0 0.0
  %3253 = vmatpush.msra.mxu0 0.0
  %3254 = vmatpush.msra.mxu0 0.0
  %3255 = vmatpush.msra.mxu0 0.0
  %3256 = vmatpush.msra.mxu0 0.0
  %3257 = vmatpush.msra.mxu0 0.0
  %3258 = vmatpush.msra.mxu0 0.0
  %3259 = vmatpush.msra.mxu0 0.0
  %3260 = vmatpush.msra.mxu0 %v2950
  %3261 = vmatpush.msra.mxu0 %v2945
  %3262 = vmatpush.msra.mxu0 %v2940
  %3263 = vmatpush.msra.mxu0 %v2935
  %3264 = vmatmul.f32.gmra.mxu0 %v2966
  %v3265 = vpop.f32.mrf.mxu0
  %v3266 = vadd.f32 %v3246, %v3265
  %3267 = vdwg.mxu0
  %v3272 = vrot.slane %v3086, 4
  %v3273 = vrot.slane %v3206, 4
  %v3274 = vsel %vm937, %v3026, %v3272
  %v3275 = vsel %vm937, %v3146, %v3273
  %3278 = vst [vmem:[%s5] sm:$0xff] %v3274
  %3279 = vst [vmem:[%s5 + $0x8] sm:$0xff] %v3275
  %3280 = vst [vmem:[%s5 + $0x10] sm:$0xf] %v3266
  // Predicated region
  $region22: #{forward.1} parent=0 // pred_check
    _
  $region23: #{forward.1} parent=0 // pred_check_branch
    %3282 = sbr.rel (0) target = $region25
  $region24: #{forward.1} parent=0 // pred_region
    _
  $region25: #{forward.1} parent=0 // pred_fallthru
    _
  // Predicated region
  $region26: #{forward.1} parent=0 // pred_check
    _
  $region27: #{forward.1} parent=0 // pred_check_branch
    %3284 = sbr.rel (0) target = $region29
  $region28: #{forward.1} parent=0 // pred_region
    _
  $region29: #{forward.1} parent=0 // pred_fallthru
    _

</llo_original>
